<compile_context>
chip_gen: v6e
topology: v6e:2x2x1
jax: 0.10.0
libtpu: 0.0.40
codegen_flags: <defaults>
</compile_context>

<pallas_src>
import functools

import jax
import jax.numpy as jnp
import numpy as np
from jax import lax
from jax.experimental import pallas as pl
from jax.experimental.pallas import tpu as pltpu

EPS = 1e-5
LANE = 128

K1, P1 = 7, 3     # conv1
K2, P2 = 11, 5    # conv2 (stride = block stride)
K3, P3 = 7, 3     # conv3


def _round_up(x, m):
    return (x + m - 1) // m * m


def _residual_block_kernel(*refs, L, L_out, stride, tile_out, n1, n2, rf,
                           cdtype, has_downsample):
    """Fused ResidualBlock forward for one (batch, L-tile) grid step (NLC).

    refs = (x_win, w1, b1, w2, b2, w3, b3[, wd, bd], out, h1_scratch, h2_scratch)

    x_win : (n0, cpi)  haloed input window; row r = input position
                       tile_start*stride - rf + r (boundary zeros live in HBM).
    w*    : (K*Cin, Cpo) im2col conv weights with the BN scale folded in (bf16).
    b*    : (1, Cpo)     folded BN bias (f32).
    out   : (tile_out, Cpo)
    h1/h2 : VMEM scratch for the per-tile conv1 / conv2 activations
            (live rows start at row 0 -> aligned stores, no halo zeroing).
    """
    if has_downsample:
        (x_ref, w1_ref, b1_ref, w2_ref, b2_ref, w3_ref, b3_ref,
         wd_ref, bd_ref, o_ref, h1_ref, h2_ref) = refs
    else:
        (x_ref, w1_ref, b1_ref, w2_ref, b2_ref, w3_ref, b3_ref,
         o_ref, h1_ref, h2_ref) = refs
        wd_ref = bd_ref = None

    f32 = jnp.float32
    s = stride
    o0 = pl.program_id(1) * tile_out          # first output row of this tile

    def taps(ref, k_taps, n_rows, stride_):
        # Gather the K shifted windows into one (n_rows, K*C) operand so each
        # conv is a single MXU matmul with a >=256-deep contraction.
        if stride_ == 1:
            cols = [ref[pl.ds(k, n_rows), :] for k in range(k_taps)]
        else:
            cols = [ref[pl.ds(k, n_rows, stride=stride_), :] for k in range(k_taps)]
        return cols[0] if k_taps == 1 else jnp.concatenate(cols, axis=-1)

    def row_mask(n_rows, first_pos, limit):
        # 'same'-padding mask: rows whose global position falls outside
        # [0, limit) must be exactly zero for the next stage.
        pos = lax.broadcasted_iota(jnp.int32, (n_rows, 1), 0) + first_pos
        return (pos >= 0) & (pos < limit)

    # ---- conv1 (K=7, stride 1) + BN1 + ReLU --------------------------------
    # h1 row j = conv1 output at global position (o0 - P3)*s - P2 + j.
    a1 = taps(x_ref, K1, n1, 1)                               # (n1, K1*cpi)
    h1 = jnp.dot(a1, w1_ref[...], preferred_element_type=f32) + b1_ref[...]
    h1 = jnp.maximum(h1, 0.0)
    h1 = jnp.where(row_mask(n1, (o0 - P3) * s - P2, L), h1, 0.0)
    h1_ref[...] = h1.astype(cdtype)

    # ---- conv2 (K=11, stride s) + BN2 + ReLU (+ eval-mode dropout) ---------
    # h2 row i = conv2 output at global position o0 - P3 + i.
    # TODO(synk): nn.Dropout(0.2) is identity in eval mode; nothing emitted.
    a2 = taps(h1_ref, K2, n2, s)                              # (n2, K2*cpo)
    h2 = jnp.dot(a2, w2_ref[...], preferred_element_type=f32) + b2_ref[...]
    h2 = jnp.maximum(h2, 0.0)
    h2 = jnp.where(row_mask(n2, o0 - P3, L_out), h2, 0.0)
    h2_ref[...] = h2.astype(cdtype)

    # ---- conv3 (K=7, stride 1) + BN3 ---------------------------------------
    a3 = taps(h2_ref, K3, tile_out, 1)                        # (tile_out, K3*cpo)
    y = jnp.dot(a3, w3_ref[...], preferred_element_type=f32) + b3_ref[...]

    # ---- shortcut: 1x1 conv (stride s) + BNd, or identity ------------------
    # Output row m needs input position (o0 + m)*s == window row rf + m*s.
    if s == 1:
        xd = x_ref[pl.ds(rf, tile_out), :]
    else:
        xd = x_ref[pl.ds(rf, tile_out, stride=s), :]
    if has_downsample:
        res = jnp.dot(xd, wd_ref[...], preferred_element_type=f32) + bd_ref[...]
    else:
        res = xd.astype(f32)                  # identity shortcut: no matmul

    # ---- residual add + final ReLU -----------------------------------------
    o_ref[...] = jnp.maximum(y + res, 0.0).astype(o_ref.dtype)


def _fold_conv_bn(w_oik, gamma, beta, mean, var, cpi, cpo):
    """PyTorch (C_out, C_in, K) conv weight + BN stats -> lane-padded im2col
    weight (K*cpi, cpo) with the BN scale folded in, plus BN bias (1, cpo)."""
    c_out, c_in, k = w_oik.shape
    scale = gamma / jnp.sqrt(var + EPS)
    bias = beta - mean * scale
    w = jnp.transpose(w_oik, (2, 1, 0)) * scale[None, None, :]    # (K, C_in, C_out)
    w = jnp.pad(w, ((0, 0), (0, cpi - c_in), (0, cpo - c_out)))
    bias = jnp.pad(bias, (0, cpo - c_out))
    return w.reshape(k * cpi, cpo), bias.reshape(1, cpo)


def residual_block_forward(x_ncl, params, stride=1, *, tile_out=512,
                           compute_dtype=jnp.bfloat16):
    """Eval-mode ResidualBlock forward. x_ncl: (N, C_in, L) -> (N, C_out, L_out)."""
    N, C_in, L = x_ncl.shape
    C_out = params["w1"].shape[0]
    s = int(stride)
    L_out = (L - 1) // s + 1
    has_downsample = (s != 1) or (C_in != C_out)

    cpi = _round_up(C_in, LANE)   # lane-dense channel padding
    cpo = _round_up(C_out, LANE)

    # ---- static tile geometry (all stage row counts sublane-aligned) -------
    to = max(8, min(_round_up(tile_out, 8), _round_up(L_out, 8)))  # out rows/tile
    nt = pl.cdiv(L_out, to)                                        # number of L tiles
    rf = P3 * s + P2 + P1                     # receptive-field halo (input rows)
    n2 = _round_up(to + 2 * P3, 8)            # conv2 rows computed per tile
    n1 = _round_up((n2 - 1) * s + K2, 8)      # conv1 rows computed per tile
    n0 = _round_up(n1 + K1 - 1, 8)            # input rows needed per tile

    # ---- NCL -> NLC, bf16 MXU operands, lane-padded channels ---------------
    x = jnp.transpose(x_ncl, (0, 2, 1)).astype(compute_dtype)
    x = jnp.pad(x, ((0, 0), (0, 0), (0, cpi - C_in)))
    # Physically materialize the 'same' boundary zeros + tile halos along L,
    # then gather per-tile haloed windows (overlap-save) so the kernel input is
    # an ordinary pipelined BlockSpec block.
    lp = (nt - 1) * to * s + n0
    x = jnp.pad(x, ((0, 0), (rf, lp - rf - L), (0, 0)))
    starts = np.arange(nt, dtype=np.int32) * (to * s)
    win_idx = starts[:, None] + np.arange(n0, dtype=np.int32)[None, :]
    xw = x[:, win_idx, :]                                          # (N, nt, n0, cpi)
    # TODO(synk): when chaining blocks, keep activations in this padded NLC
    #             layout between blocks; NCL<->NLC conversion is per-network work.

    # ---- fold BN (running stats, eval mode) into the conv weights ----------
    w1, b1 = _fold_conv_bn(params["w1"], *params["bn1"], cpi, cpo)
    w2, b2 = _fold_conv_bn(params["w2"], *params["bn2"], cpo, cpo)
    w3, b3 = _fold_conv_bn(params["w3"], *params["bn3"], cpo, cpo)
    wb = [(w1, b1), (w2, b2), (w3, b3)]
    if has_downsample:
        wb.append(_fold_conv_bn(params["wd"], *params["bnd"], cpi, cpo))
    # Matmul operands in bf16; biases stay f32 for the epilogue.
    wb = [(w.astype(compute_dtype), b.astype(jnp.float32)) for w, b in wb]

    kernel = functools.partial(
        _residual_block_kernel, L=L, L_out=L_out, stride=s, tile_out=to,
        n1=n1, n2=n2, rf=rf, cdtype=compute_dtype, has_downsample=has_downsample)

    def const_spec(shape):
        # Grid-invariant operand: single-buffered, fetched once, stays resident.
        nd = len(shape)
        return pl.BlockSpec(shape, lambda n, t: (0,) * nd,
                            pipeline_mode=pl.Buffered(1))

    in_specs = [pl.BlockSpec((None, None, n0, cpi), lambda n, t: (n, t, 0, 0))]
    args = [xw]
    for w, b in wb:
        in_specs += [const_spec(w.shape), const_spec(b.shape)]
        args += [w, b]

    itemsize = jnp.dtype(compute_dtype).itemsize
    flops = 2 * N * nt * (n1 * K1 * cpi * cpo + n2 * K2 * cpo * cpo
                          + to * K3 * cpo * cpo
                          + (to * cpi * cpo if has_downsample else 0))
    bytes_accessed = (int(xw.size) * itemsize
                      + sum(int(w.size) * itemsize + int(b.size) * 4 for w, b in wb)
                      + N * nt * to * cpo * jnp.dtype(x_ncl.dtype).itemsize)

    out = pl.pallas_call(
        kernel,
        out_shape=jax.ShapeDtypeStruct((N, nt * to, cpo), x_ncl.dtype),
        grid=(N, nt),
        in_specs=in_specs,
        out_specs=pl.BlockSpec((None, to, cpo), lambda n, t: (n, t, 0)),
        scratch_shapes=[
            pltpu.VMEM((n1, cpo), compute_dtype),   # per-tile conv1 activations
            pltpu.VMEM((n2, cpo), compute_dtype),   # per-tile conv2 activations
        ],
        compiler_params=pltpu.CompilerParams(
            dimension_semantics=("parallel", "parallel"),
            vmem_limit_bytes=48 * 1024 * 1024),
        cost_estimate=pl.CostEstimate(flops=int(flops), transcendentals=0,
                                      bytes_accessed=int(bytes_accessed)),
    )(*args)

    # Drop the L / channel padding, back to PyTorch NCL layout.
    return jnp.transpose(out[:, :L_out, :C_out], (0, 2, 1))


# ---------------------------------------------------------------------------
# Pure-JAX reference (mirrors PyTorch eval-mode forward) for verification.
# ---------------------------------------------------------------------------
def _ref_conv_bn(x_ncl, w_oik, gamma, beta, mean, var, stride, relu):
    k = w_oik.shape[-1]
    p = (k - 1) // 2
    y = lax.conv_general_dilated(
        x_ncl, w_oik, window_strides=(stride,), padding=[(p, p)],
        dimension_numbers=("NCH", "OIH", "NCH"))
    scale = gamma / jnp.sqrt(var + EPS)
    bias = beta - mean * scale
    y = y * scale[None, :, None] + bias[None, :, None]
    if relu:
        y = jnp.maximum(y, 0.0)
    return y


def _ref_forward(x_ncl, p, stride):
    out = _ref_conv_bn(x_ncl, p["w1"], *p["bn1"], 1, True)
    out = _ref_conv_bn(out, p["w2"], *p["bn2"], stride, True)
    out = _ref_conv_bn(out, p["w3"], *p["bn3"], 1, False)
    if "wd" in p:
        res = _ref_conv_bn(x_ncl, p["wd"], *p["bnd"], stride, False)
    else:
        res = x_ncl
    return jnp.maximum(out + res, 0.0)


def make_params(key, c_in, c_out, stride):
    ks = iter(jax.random.split(key, 20))

    def conv_w(o, i, k):
        return jax.random.normal(next(ks), (o, i, k), jnp.float32) * 0.1

    def bn(c):
        gamma = 1.0 + 0.1 * jax.random.normal(next(ks), (c,), jnp.float32)
        beta = 0.1 * jax.random.normal(next(ks), (c,), jnp.float32)
        mean = 0.1 * jax.random.normal(next(ks), (c,), jnp.float32)
        var = 1.0 + 0.1 * jax.random.uniform(next(ks), (c,), jnp.float32)
        return (gamma, beta, mean, var)

    params = {
        "w1": conv_w(c_out, c_in, 7), "bn1": bn(c_out),
        "w2": conv_w(c_out, c_out, 11), "bn2": bn(c_out),
        "w3": conv_w(c_out, c_out, 7), "bn3": bn(c_out),
    }
    if stride != 1 or c_in != c_out:
        params["wd"] = conv_w(c_out, c_in, 1)
        params["bnd"] = bn(c_out)
    return params


if __name__ == "__main__":
    configs = [
        # (N, C_in, C_out, L, stride, tile_out)
        (2, 4, 8, 16, 1, 512),   # base demo shape; single L tile
        (2, 4, 8, 64, 1, 16),    # multiple L tiles exercise the halo path
        (1, 4, 8, 33, 2, 8),     # stride 2 + downsample conv, ragged last tile
        (2, 8, 8, 32, 1, 8),     # identity shortcut (no downsample weights)
    ]
    key = jax.random.PRNGKey(0)
    for (n, c_in, c_out, l, s, tlo) in configs:
        key, kx, kp = jax.random.split(key, 3)
        x = jax.random.normal(kx, (n, c_in, l), jnp.float32)   # PyTorch NCL layout
        params = make_params(kp, c_in, c_out, s)
        out = jax.block_until_ready(
            residual_block_forward(x, params, s, tile_out=tlo))
        ref = jax.block_until_ready(_ref_forward(x, params, s))
        # bf16 MXU operands (per perf review) -> looser tolerance than pure f32.
        np.testing.assert_allclose(np.asarray(out), np.asarray(ref),
                                   rtol=5e-2, atol=5e-2)
    print("KERNEL_OK")
</pallas_src>

<mosaic_0001>
module attributes {stable_mosaic.version = 11 : i64} {
  func.func @_residual_block_kernel(%arg0: i32, %arg1: i32, %arg2: memref<1x1x48x128xbf16, #tpu.memory_space<vmem>>, %arg3: memref<896x128xbf16, #tpu.memory_space<vmem>>, %arg4: memref<1x128xf32, #tpu.memory_space<vmem>>, %arg5: memref<1408x128xbf16, #tpu.memory_space<vmem>>, %arg6: memref<1x128xf32, #tpu.memory_space<vmem>>, %arg7: memref<896x128xbf16, #tpu.memory_space<vmem>>, %arg8: memref<1x128xf32, #tpu.memory_space<vmem>>, %arg9: memref<128x128xbf16, #tpu.memory_space<vmem>>, %arg10: memref<1x128xf32, #tpu.memory_space<vmem>>, %arg11: memref<1x16x128xf32, #tpu.memory_space<vmem>>, %arg12: memref<40x128xbf16, #tpu.memory_space<vmem>>, %arg13: memref<24x128xbf16, #tpu.memory_space<vmem>>) attributes {dimension_semantics = [#tpu.dimension_semantics<parallel>, #tpu.dimension_semantics<parallel>], iteration_bounds = array<i64: 2, 1>, scalar_prefetch = 0 : i64, scratch_operands = 2 : i64, tpu.core_type = #tpu.core_type<tc>, window_params = [{transform_indices = @transform_0, window_bounds = array<i64: 1, 1, 48, 128>}, {pipeline_mode = #tpu.pipeline_mode<synchronous>, transform_indices = @transform_1, window_bounds = array<i64: 896, 128>}, {pipeline_mode = #tpu.pipeline_mode<synchronous>, transform_indices = @transform_2, window_bounds = array<i64: 1, 128>}, {pipeline_mode = #tpu.pipeline_mode<synchronous>, transform_indices = @transform_3, window_bounds = array<i64: 1408, 128>}, {pipeline_mode = #tpu.pipeline_mode<synchronous>, transform_indices = @transform_4, window_bounds = array<i64: 1, 128>}, {pipeline_mode = #tpu.pipeline_mode<synchronous>, transform_indices = @transform_5, window_bounds = array<i64: 896, 128>}, {pipeline_mode = #tpu.pipeline_mode<synchronous>, transform_indices = @transform_6, window_bounds = array<i64: 1, 128>}, {pipeline_mode = #tpu.pipeline_mode<synchronous>, transform_indices = @transform_7, window_bounds = array<i64: 128, 128>}, {pipeline_mode = #tpu.pipeline_mode<synchronous>, transform_indices = @transform_8, window_bounds = array<i64: 1, 128>}, {transform_indices = @transform_9, window_bounds = array<i64: 1, 16, 128>}]} {
    %c16_i32 = arith.constant 16 : i32
    %0 = arith.muli %arg1, %c16_i32 : i32
    %c0 = arith.constant 0 : index
    %c0_0 = arith.constant 0 : index
    %c0_1 = arith.constant 0 : index
    %c0_2 = arith.constant 0 : index
    %1 = vector.load %arg2[%c0, %c0_0, %c0_1, %c0_2] : memref<1x1x48x128xbf16, #tpu.memory_space<vmem>>, vector<1x1x40x128xbf16>
    %2 = vector.shape_cast %1 : vector<1x1x40x128xbf16> to vector<40x128xbf16>
    %c0_3 = arith.constant 0 : index
    %c0_4 = arith.constant 0 : index
    %c1 = arith.constant 1 : index
    %c0_5 = arith.constant 0 : index
    %3 = vector.load %arg2[%c0_3, %c0_4, %c1, %c0_5] : memref<1x1x48x128xbf16, #tpu.memory_space<vmem>>, vector<1x1x40x128xbf16>
    %4 = vector.shape_cast %3 : vector<1x1x40x128xbf16> to vector<40x128xbf16>
    %c0_6 = arith.constant 0 : index
    %c0_7 = arith.constant 0 : index
    %c2 = arith.constant 2 : index
    %c0_8 = arith.constant 0 : index
    %5 = vector.load %arg2[%c0_6, %c0_7, %c2, %c0_8] : memref<1x1x48x128xbf16, #tpu.memory_space<vmem>>, vector<1x1x40x128xbf16>
    %6 = vector.shape_cast %5 : vector<1x1x40x128xbf16> to vector<40x128xbf16>
    %c0_9 = arith.constant 0 : index
    %c0_10 = arith.constant 0 : index
    %c3 = arith.constant 3 : index
    %c0_11 = arith.constant 0 : index
    %7 = vector.load %arg2[%c0_9, %c0_10, %c3, %c0_11] : memref<1x1x48x128xbf16, #tpu.memory_space<vmem>>, vector<1x1x40x128xbf16>
    %8 = vector.shape_cast %7 : vector<1x1x40x128xbf16> to vector<40x128xbf16>
    %c0_12 = arith.constant 0 : index
    %c0_13 = arith.constant 0 : index
    %c4 = arith.constant 4 : index
    %c0_14 = arith.constant 0 : index
    %9 = vector.load %arg2[%c0_12, %c0_13, %c4, %c0_14] : memref<1x1x48x128xbf16, #tpu.memory_space<vmem>>, vector<1x1x40x128xbf16>
    %10 = vector.shape_cast %9 : vector<1x1x40x128xbf16> to vector<40x128xbf16>
    %c0_15 = arith.constant 0 : index
    %c0_16 = arith.constant 0 : index
    %c5 = arith.constant 5 : index
    %c0_17 = arith.constant 0 : index
    %11 = vector.load %arg2[%c0_15, %c0_16, %c5, %c0_17] : memref<1x1x48x128xbf16, #tpu.memory_space<vmem>>, vector<1x1x40x128xbf16>
    %12 = vector.shape_cast %11 : vector<1x1x40x128xbf16> to vector<40x128xbf16>
    %c0_18 = arith.constant 0 : index
    %c0_19 = arith.constant 0 : index
    %c6 = arith.constant 6 : index
    %c0_20 = arith.constant 0 : index
    %13 = vector.load %arg2[%c0_18, %c0_19, %c6, %c0_20] : memref<1x1x48x128xbf16, #tpu.memory_space<vmem>>, vector<1x1x40x128xbf16>
    %14 = vector.shape_cast %13 : vector<1x1x40x128xbf16> to vector<40x128xbf16>
    %15 = tpu.concatenate %2, %4, %6, %8, %10, %12, %14 in 1 : vector<40x128xbf16>, vector<40x128xbf16>, vector<40x128xbf16>, vector<40x128xbf16>, vector<40x128xbf16>, vector<40x128xbf16>, vector<40x128xbf16> -> vector<40x896xbf16>
    %c0_21 = arith.constant 0 : index
    %c0_22 = arith.constant 0 : index
    %16 = vector.load %arg3[%c0_21, %c0_22] : memref<896x128xbf16, #tpu.memory_space<vmem>>, vector<896x128xbf16>
    %cst = arith.constant dense<0.000000e+00> : vector<40x128xf32>
    %17 = tpu.matmul %15, %16, %cst {dimension_numbers = #tpu.dot_dimension_numbers<[1], [0], [0], [1], [0, 0, 1, 1], [], []>} : vector<40x896xbf16>, vector<896x128xbf16>, vector<40x128xf32> -> vector<40x128xf32>
    %c0_23 = arith.constant 0 : index
    %c0_24 = arith.constant 0 : index
    %18 = vector.load %arg4[%c0_23, %c0_24] : memref<1x128xf32, #tpu.memory_space<vmem>>, vector<1x128xf32>
    %19 = vector.broadcast %18 : vector<1x128xf32> to vector<40x128xf32>
    %20 = arith.addf %17, %19 : vector<40x128xf32>
    %cst_25 = arith.constant 0.000000e+00 : f32
    %21 = vector.broadcast %cst_25 : f32 to vector<40x128xf32>
    %22 = arith.maximumf %20, %21 : vector<40x128xf32>
    %c3_i32 = arith.constant 3 : i32
    %23 = arith.subi %0, %c3_i32 : i32
    %c1_i32 = arith.constant 1 : i32
    %24 = arith.muli %23, %c1_i32 : i32
    %c5_i32 = arith.constant 5 : i32
    %25 = arith.subi %24, %c5_i32 : i32
    %26 = tpu.iota {dimensions = array<i32: 0>} : vector<40x1xi32>
    %27 = vector.broadcast %25 : i32 to vector<40x1xi32>
    %28 = arith.addi %26, %27 : vector<40x1xi32>
    %c0_i32 = arith.constant 0 : i32
    %29 = vector.broadcast %c0_i32 : i32 to vector<40x1xi32>
    %30 = arith.cmpi sge, %28, %29 : vector<40x1xi32>
    %c16_i32_26 = arith.constant 16 : i32
    %31 = vector.broadcast %c16_i32_26 : i32 to vector<40x1xi32>
    %32 = arith.cmpi slt, %28, %31 : vector<40x1xi32>
    %33 = arith.andi %30, %32 : vector<40x1xi1>
    %cst_27 = arith.constant 0.000000e+00 : f32
    %34 = vector.shape_cast %33 : vector<40x1xi1> to vector<40x1xi1>
    %35 = vector.broadcast %34 : vector<40x1xi1> to vector<40x128xi1>
    %36 = vector.broadcast %cst_27 : f32 to vector<40x128xf32>
    %37 = arith.select %35, %22, %36 : vector<40x128xi1>, vector<40x128xf32>
    %38 = arith.truncf %37 : vector<40x128xf32> to vector<40x128xbf16>
    %c0_28 = arith.constant 0 : index
    %c0_29 = arith.constant 0 : index
    %39 = vector.load %arg12[%c0_28, %c0_29] : memref<40x128xbf16, #tpu.memory_space<vmem>>, vector<40x128xbf16>
    tpu.vector_store %arg12[%c0_28, %c0_29], %38 {strides = array<i32>} : memref<40x128xbf16, #tpu.memory_space<vmem>>, vector<40x128xbf16>,
    %c0_30 = arith.constant 0 : index
    %c0_31 = arith.constant 0 : index
    %40 = vector.load %arg12[%c0_30, %c0_31] : memref<40x128xbf16, #tpu.memory_space<vmem>>, vector<24x128xbf16>
    %c1_32 = arith.constant 1 : index
    %c0_33 = arith.constant 0 : index
    %41 = vector.load %arg12[%c1_32, %c0_33] : memref<40x128xbf16, #tpu.memory_space<vmem>>, vector<24x128xbf16>
    %c2_34 = arith.constant 2 : index
    %c0_35 = arith.constant 0 : index
    %42 = vector.load %arg12[%c2_34, %c0_35] : memref<40x128xbf16, #tpu.memory_space<vmem>>, vector<24x128xbf16>
    %c3_36 = arith.constant 3 : index
    %c0_37 = arith.constant 0 : index
    %43 = vector.load %arg12[%c3_36, %c0_37] : memref<40x128xbf16, #tpu.memory_space<vmem>>, vector<24x128xbf16>
    %c4_38 = arith.constant 4 : index
    %c0_39 = arith.constant 0 : index
    %44 = vector.load %arg12[%c4_38, %c0_39] : memref<40x128xbf16, #tpu.memory_space<vmem>>, vector<24x128xbf16>
    %c5_40 = arith.constant 5 : index
    %c0_41 = arith.constant 0 : index
    %45 = vector.load %arg12[%c5_40, %c0_41] : memref<40x128xbf16, #tpu.memory_space<vmem>>, vector<24x128xbf16>
    %c6_42 = arith.constant 6 : index
    %c0_43 = arith.constant 0 : index
    %46 = vector.load %arg12[%c6_42, %c0_43] : memref<40x128xbf16, #tpu.memory_space<vmem>>, vector<24x128xbf16>
    %c7 = arith.constant 7 : index
    %c0_44 = arith.constant 0 : index
    %47 = vector.load %arg12[%c7, %c0_44] : memref<40x128xbf16, #tpu.memory_space<vmem>>, vector<24x128xbf16>
    %c8 = arith.constant 8 : index
    %c0_45 = arith.constant 0 : index
    %48 = vector.load %arg12[%c8, %c0_45] : memref<40x128xbf16, #tpu.memory_space<vmem>>, vector<24x128xbf16>
    %c9 = arith.constant 9 : index
    %c0_46 = arith.constant 0 : index
    %49 = vector.load %arg12[%c9, %c0_46] : memref<40x128xbf16, #tpu.memory_space<vmem>>, vector<24x128xbf16>
    %c10 = arith.constant 10 : index
    %c0_47 = arith.constant 0 : index
    %50 = vector.load %arg12[%c10, %c0_47] : memref<40x128xbf16, #tpu.memory_space<vmem>>, vector<24x128xbf16>
    %51 = tpu.concatenate %40, %41, %42, %43, %44, %45, %46, %47, %48, %49, %50 in 1 : vector<24x128xbf16>, vector<24x128xbf16>, vector<24x128xbf16>, vector<24x128xbf16>, vector<24x128xbf16>, vector<24x128xbf16>, vector<24x128xbf16>, vector<24x128xbf16>, vector<24x128xbf16>, vector<24x128xbf16>, vector<24x128xbf16> -> vector<24x1408xbf16>
    %c0_48 = arith.constant 0 : index
    %c0_49 = arith.constant 0 : index
    %52 = vector.load %arg5[%c0_48, %c0_49] : memref<1408x128xbf16, #tpu.memory_space<vmem>>, vector<1408x128xbf16>
    %cst_50 = arith.constant dense<0.000000e+00> : vector<24x128xf32>
    %53 = tpu.matmul %51, %52, %cst_50 {dimension_numbers = #tpu.dot_dimension_numbers<[1], [0], [0], [1], [0, 0, 1, 1], [], []>} : vector<24x1408xbf16>, vector<1408x128xbf16>, vector<24x128xf32> -> vector<24x128xf32>
    %c0_51 = arith.constant 0 : index
    %c0_52 = arith.constant 0 : index
    %54 = vector.load %arg6[%c0_51, %c0_52] : memref<1x128xf32, #tpu.memory_space<vmem>>, vector<1x128xf32>
    %55 = vector.broadcast %54 : vector<1x128xf32> to vector<24x128xf32>
    %56 = arith.addf %53, %55 : vector<24x128xf32>
    %cst_53 = arith.constant 0.000000e+00 : f32
    %57 = vector.broadcast %cst_53 : f32 to vector<24x128xf32>
    %58 = arith.maximumf %56, %57 : vector<24x128xf32>
    %c3_i32_54 = arith.constant 3 : i32
    %59 = arith.subi %0, %c3_i32_54 : i32
    %60 = tpu.iota {dimensions = array<i32: 0>} : vector<24x1xi32>
    %61 = vector.broadcast %59 : i32 to vector<24x1xi32>
    %62 = arith.addi %60, %61 : vector<24x1xi32>
    %c0_i32_55 = arith.constant 0 : i32
    %63 = vector.broadcast %c0_i32_55 : i32 to vector<24x1xi32>
    %64 = arith.cmpi sge, %62, %63 : vector<24x1xi32>
    %c16_i32_56 = arith.constant 16 : i32
    %65 = vector.broadcast %c16_i32_56 : i32 to vector<24x1xi32>
    %66 = arith.cmpi slt, %62, %65 : vector<24x1xi32>
    %67 = arith.andi %64, %66 : vector<24x1xi1>
    %cst_57 = arith.constant 0.000000e+00 : f32
    %68 = vector.shape_cast %67 : vector<24x1xi1> to vector<24x1xi1>
    %69 = vector.broadcast %68 : vector<24x1xi1> to vector<24x128xi1>
    %70 = vector.broadcast %cst_57 : f32 to vector<24x128xf32>
    %71 = arith.select %69, %58, %70 : vector<24x128xi1>, vector<24x128xf32>
    %72 = arith.truncf %71 : vector<24x128xf32> to vector<24x128xbf16>
    %c0_58 = arith.constant 0 : index
    %c0_59 = arith.constant 0 : index
    %73 = vector.load %arg13[%c0_58, %c0_59] : memref<24x128xbf16, #tpu.memory_space<vmem>>, vector<24x128xbf16>
    tpu.vector_store %arg13[%c0_58, %c0_59], %72 {strides = array<i32>} : memref<24x128xbf16, #tpu.memory_space<vmem>>, vector<24x128xbf16>,
    %c0_60 = arith.constant 0 : index
    %c0_61 = arith.constant 0 : index
    %74 = vector.load %arg13[%c0_60, %c0_61] : memref<24x128xbf16, #tpu.memory_space<vmem>>, vector<16x128xbf16>
    %c1_62 = arith.constant 1 : index
    %c0_63 = arith.constant 0 : index
    %75 = vector.load %arg13[%c1_62, %c0_63] : memref<24x128xbf16, #tpu.memory_space<vmem>>, vector<16x128xbf16>
    %c2_64 = arith.constant 2 : index
    %c0_65 = arith.constant 0 : index
    %76 = vector.load %arg13[%c2_64, %c0_65] : memref<24x128xbf16, #tpu.memory_space<vmem>>, vector<16x128xbf16>
    %c3_66 = arith.constant 3 : index
    %c0_67 = arith.constant 0 : index
    %77 = vector.load %arg13[%c3_66, %c0_67] : memref<24x128xbf16, #tpu.memory_space<vmem>>, vector<16x128xbf16>
    %c4_68 = arith.constant 4 : index
    %c0_69 = arith.constant 0 : index
    %78 = vector.load %arg13[%c4_68, %c0_69] : memref<24x128xbf16, #tpu.memory_space<vmem>>, vector<16x128xbf16>
    %c5_70 = arith.constant 5 : index
    %c0_71 = arith.constant 0 : index
    %79 = vector.load %arg13[%c5_70, %c0_71] : memref<24x128xbf16, #tpu.memory_space<vmem>>, vector<16x128xbf16>
    %c6_72 = arith.constant 6 : index
    %c0_73 = arith.constant 0 : index
    %80 = vector.load %arg13[%c6_72, %c0_73] : memref<24x128xbf16, #tpu.memory_space<vmem>>, vector<16x128xbf16>
    %81 = tpu.concatenate %74, %75, %76, %77, %78, %79, %80 in 1 : vector<16x128xbf16>, vector<16x128xbf16>, vector<16x128xbf16>, vector<16x128xbf16>, vector<16x128xbf16>, vector<16x128xbf16>, vector<16x128xbf16> -> vector<16x896xbf16>
    %c0_74 = arith.constant 0 : index
    %c0_75 = arith.constant 0 : index
    %82 = vector.load %arg7[%c0_74, %c0_75] : memref<896x128xbf16, #tpu.memory_space<vmem>>, vector<896x128xbf16>
    %cst_76 = arith.constant dense<0.000000e+00> : vector<16x128xf32>
    %83 = tpu.matmul %81, %82, %cst_76 {dimension_numbers = #tpu.dot_dimension_numbers<[1], [0], [0], [1], [0, 0, 1, 1], [], []>} : vector<16x896xbf16>, vector<896x128xbf16>, vector<16x128xf32> -> vector<16x128xf32>
    %c0_77 = arith.constant 0 : index
    %c0_78 = arith.constant 0 : index
    %84 = vector.load %arg8[%c0_77, %c0_78] : memref<1x128xf32, #tpu.memory_space<vmem>>, vector<1x128xf32>
    %85 = vector.broadcast %84 : vector<1x128xf32> to vector<16x128xf32>
    %86 = arith.addf %83, %85 : vector<16x128xf32>
    %c0_79 = arith.constant 0 : index
    %c0_80 = arith.constant 0 : index
    %c11 = arith.constant 11 : index
    %c0_81 = arith.constant 0 : index
    %87 = vector.load %arg2[%c0_79, %c0_80, %c11, %c0_81] : memref<1x1x48x128xbf16, #tpu.memory_space<vmem>>, vector<1x1x16x128xbf16>
    %88 = vector.shape_cast %87 : vector<1x1x16x128xbf16> to vector<16x128xbf16>
    %c0_82 = arith.constant 0 : index
    %c0_83 = arith.constant 0 : index
    %89 = vector.load %arg9[%c0_82, %c0_83] : memref<128x128xbf16, #tpu.memory_space<vmem>>, vector<128x128xbf16>
    %cst_84 = arith.constant dense<0.000000e+00> : vector<16x128xf32>
    %90 = tpu.matmul %88, %89, %cst_84 {dimension_numbers = #tpu.dot_dimension_numbers<[1], [0], [0], [1], [0, 0, 1, 1], [], []>} : vector<16x128xbf16>, vector<128x128xbf16>, vector<16x128xf32> -> vector<16x128xf32>
    %c0_85 = arith.constant 0 : index
    %c0_86 = arith.constant 0 : index
    %91 = vector.load %arg10[%c0_85, %c0_86] : memref<1x128xf32, #tpu.memory_space<vmem>>, vector<1x128xf32>
    %92 = vector.broadcast %91 : vector<1x128xf32> to vector<16x128xf32>
    %93 = arith.addf %90, %92 : vector<16x128xf32>
    %94 = arith.addf %86, %93 : vector<16x128xf32>
    %cst_87 = arith.constant 0.000000e+00 : f32
    %95 = vector.broadcast %cst_87 : f32 to vector<16x128xf32>
    %96 = arith.maximumf %94, %95 : vector<16x128xf32>
    %c0_88 = arith.constant 0 : index
    %c0_89 = arith.constant 0 : index
    %c0_90 = arith.constant 0 : index
    %97 = vector.load %arg11[%c0_88, %c0_89, %c0_90] : memref<1x16x128xf32, #tpu.memory_space<vmem>>, vector<1x16x128xf32>
    %98 = vector.shape_cast %97 : vector<1x16x128xf32> to vector<16x128xf32>
    %99 = vector.shape_cast %96 : vector<16x128xf32> to vector<1x16x128xf32>
    tpu.vector_store %arg11[%c0_88, %c0_89, %c0_90], %99 {strides = array<i32>} : memref<1x16x128xf32, #tpu.memory_space<vmem>>, vector<1x16x128xf32>,
    return
  }
  func.func @transform_0(%arg0: i32, %arg1: i32) -> (i32, i32, i32, i32) {
    %c0_i32 = arith.constant 0 : i32
    %c0_i32_0 = arith.constant 0 : i32
    %c0_i32_1 = arith.constant 0 : i32
    return %arg0, %arg1, %c0_i32, %c0_i32_0 : i32, i32, i32, i32
  }
  func.func @transform_1(%arg0: i32, %arg1: i32) -> (i32, i32) {
    %c0_i32 = arith.constant 0 : i32
    %c0_i32_0 = arith.constant 0 : i32
    %c0_i32_1 = arith.constant 0 : i32
    return %c0_i32, %c0_i32_0 : i32, i32
  }
  func.func @transform_2(%arg0: i32, %arg1: i32) -> (i32, i32) {
    %c0_i32 = arith.constant 0 : i32
    %c0_i32_0 = arith.constant 0 : i32
    %c0_i32_1 = arith.constant 0 : i32
    return %c0_i32, %c0_i32_0 : i32, i32
  }
  func.func @transform_3(%arg0: i32, %arg1: i32) -> (i32, i32) {
    %c0_i32 = arith.constant 0 : i32
    %c0_i32_0 = arith.constant 0 : i32
    %c0_i32_1 = arith.constant 0 : i32
    return %c0_i32, %c0_i32_0 : i32, i32
  }
  func.func @transform_4(%arg0: i32, %arg1: i32) -> (i32, i32) {
    %c0_i32 = arith.constant 0 : i32
    %c0_i32_0 = arith.constant 0 : i32
    %c0_i32_1 = arith.constant 0 : i32
    return %c0_i32, %c0_i32_0 : i32, i32
  }
  func.func @transform_5(%arg0: i32, %arg1: i32) -> (i32, i32) {
    %c0_i32 = arith.constant 0 : i32
    %c0_i32_0 = arith.constant 0 : i32
    %c0_i32_1 = arith.constant 0 : i32
    return %c0_i32, %c0_i32_0 : i32, i32
  }
  func.func @transform_6(%arg0: i32, %arg1: i32) -> (i32, i32) {
    %c0_i32 = arith.constant 0 : i32
    %c0_i32_0 = arith.constant 0 : i32
    %c0_i32_1 = arith.constant 0 : i32
    return %c0_i32, %c0_i32_0 : i32, i32
  }
  func.func @transform_7(%arg0: i32, %arg1: i32) -> (i32, i32) {
    %c0_i32 = arith.constant 0 : i32
    %c0_i32_0 = arith.constant 0 : i32
    %c0_i32_1 = arith.constant 0 : i32
    return %c0_i32, %c0_i32_0 : i32, i32
  }
  func.func @transform_8(%arg0: i32, %arg1: i32) -> (i32, i32) {
    %c0_i32 = arith.constant 0 : i32
    %c0_i32_0 = arith.constant 0 : i32
    %c0_i32_1 = arith.constant 0 : i32
    return %c0_i32, %c0_i32_0 : i32, i32
  }
  func.func @transform_9(%arg0: i32, %arg1: i32) -> (i32, i32, i32) {
    %c0_i32 = arith.constant 0 : i32
    %c0_i32_0 = arith.constant 0 : i32
    return %arg0, %arg1, %c0_i32 : i32, i32, i32
  }
}

</mosaic_0001>

<llo_original>
// kernel: tpu_custom_call.1
$region0: #{tpu_custom_call.1}
  #allocation0 [shape = 'u32[]', space=smem, size = 0x4, offset = 0x4, fixed_abs, tag = 'smem constant byte address 0x4 - core index']
  #allocation1 [shape = 'u32[144,128]{1,0:T(1,128)}', space=vmem, size = 0x12000, scoped, tag = 'internal scratch']
  #allocation2 [shape = 'bf16[40,128]{1,0:T(8,128)(2,1)}', space=vmem, size = 0x2800, scoped, tag = 'scratch operand']
  #allocation3 [shape = 'bf16[24,128]{1,0:T(8,128)(2,1)}', space=vmem, size = 0x1800, scoped, tag = 'scratch operand']
  %s0 = inlined_call_operand.hbm [shape: bf16[2,1,48,128], index: 0, kind: input, shape index: {}]
  %s1 = inlined_call_operand.hbm [shape: bf16[896,128], index: 1, kind: input, shape index: {}]
  %s2 = inlined_call_operand.vmem [shape: f32[1,128], index: 2, kind: input, shape index: {}]
  %s3 = inlined_call_operand.hbm [shape: bf16[1408,128], index: 3, kind: input, shape index: {}]
  %s4 = inlined_call_operand.vmem [shape: f32[1,128], index: 4, kind: input, shape index: {}]
  %s5 = inlined_call_operand.hbm [shape: bf16[896,128], index: 5, kind: input, shape index: {}]
  %s6 = inlined_call_operand.vmem [shape: f32[1,128], index: 6, kind: input, shape index: {}]
  %s7 = inlined_call_operand.hbm [shape: bf16[128,128], index: 7, kind: input, shape index: {}]
  %s8 = inlined_call_operand.vmem [shape: f32[1,128], index: 8, kind: input, shape index: {}]
  %s9 = inlined_call_operand.hbm [shape: f32[2,16,128], index: 9, kind: output, shape index: {}]
  %s10 = sld [smem:[#allocation0]]
  $region89: #{tpu_custom_call.1} parent=0
    _
  %s12 = ssub.s32 1, %s10
  %s13 = scalar_select 0, %s12, %s10
  $region1: #{tpu_custom_call.1} parent=0
    #allocation4 [shape = 'u8[24576]{0}', space=vmem, size = 0x6000, scoped, tag = 'input window, operand 0']
    #allocation5 [shape = 's32[2]{0}', space=sflag, size = 0x8, scoped, tag = 'scoped memory for tpu_custom_call.1']
    #allocation6 [shape = 's32[2]{0}', space=sflag, size = 0x8, scoped, tag = 'scoped memory for tpu_custom_call.1']
    #allocation7 [shape = 'u8[229376]{0}', space=vmem, size = 0x38000, scoped, tag = 'input window, operand 1, single buffered']
    #allocation8 [shape = 's32[1]{0}', space=sflag, size = 0x4, scoped, tag = 'scoped memory for tpu_custom_call.1']
    #allocation9 [shape = 'u8[360448]{0}', space=vmem, size = 0x58000, scoped, tag = 'input window, operand 3, single buffered']
    #allocation10 [shape = 'u8[229376]{0}', space=vmem, size = 0x38000, scoped, tag = 'input window, operand 5, single buffered']
    #allocation11 [shape = 's32[1]{0}', space=sflag, size = 0x4, scoped, tag = 'scoped memory for tpu_custom_call.1']
    #allocation12 [shape = 'u8[32768]{0}', space=vmem, size = 0x8000, scoped, tag = 'input window, operand 7, single buffered']
    #allocation13 [shape = 'u8[16384]{0}', space=vmem, size = 0x4000, scoped, tag = 'output window, operand 0']
    %14 = vsyncpa [#allocation5], 0
    %s15 = scalar_lea.sflag [#allocation5], 1
    %16 = vsyncpa %s15, 0
    %17 = vsyncpa [#allocation8], 0
    %18 = vsyncpa [#allocation11], 0
    %19 = vsyncpa [#allocation6], 0
    %s20 = scalar_lea.sflag [#allocation6], 1
    %21 = vsyncpa %s20, 0
    loop: start=0, step=1, limit=4
    $region2: #{tpu_custom_call.1} parent=1 // loop_pre_header
      _
    $region3: #{tpu_custom_call.1} parent=1 // loop_header
      %s23 = sphi 0, %s27
      %p24 = scmp.ge.s32.totalorder %s23, 4
      %s30 = sphi 0, %s42
      %s31 = sphi 0, %s38
      %s32 = sphi 0, %s30
      %s33 = sphi 0, %s31
      %s34 = sphi 0, %s32
      %s35 = sphi 0, %s33
      %s47 = sphi 0, %s49
      %s50 = sphi 0, %s47
      %s51 = sphi 0, %s50
      %s67 = sphi 0, %s51
      %s71 = sphi 0, %s71
      %s73 = sphi 0, %s71
      %s74 = sphi 0, %s73
      %s88 = sphi 0, %s74
      %s92 = sphi 0, %s92
      %s94 = sphi 0, %s92
      %s95 = sphi 0, %s94
      %s109 = sphi 0, %s95
      %s113 = sphi 0, %s113
      %s115 = sphi 0, %s113
      %s116 = sphi 0, %s115
      %s130 = sphi 0, %s116
      %s134 = sphi 0, %s134
      %s136 = sphi 0, %s134
      %s137 = sphi 0, %s136
      %s151 = sphi 0, %s137
      %s155 = sphi 0, %s155
      %s157 = sphi 0, %s155
      %s158 = sphi 0, %s157
      %s172 = sphi 0, %s158
      %s176 = sphi 0, %s176
      %s178 = sphi 0, %s176
      %s179 = sphi 0, %s178
      %s193 = sphi 0, %s179
      %s197 = sphi 0, %s197
      %s199 = sphi 0, %s197
      %s200 = sphi 0, %s199
      %s214 = sphi 0, %s200
      %s218 = sphi 0, %s218
      %s220 = sphi 0, %s218
      %s221 = sphi 0, %s220
      %s235 = sphi 0, %s221
      %s243 = sphi 0, %s245
      %s246 = sphi 0, %s243
      %s247 = sphi 0, %s246
      %s263 = sphi 0, %s247
    $region4: #{tpu_custom_call.1} parent=1 // loop_header_branch
      %26 = sbr.rel (%p24) target = $region8
    $region5: #{tpu_custom_call.1} parent=1 // loop_body
      %s28 = ssub.s32 %s23, 1
      %s29 = ssub.s32 %s23, 2
      %s36 = sadd.s32 1, %s31
      %p37 = scmp.ge.s32.totalorder %s36, 1
      %s38 = scalar_select %p37, 0, %s36
      %s39 = sadd.s32 1, %s30
      %s40 = scalar_select %p37, %s39, %s30
      %p41 = scmp.ge.s32.totalorder %s40, 2
      %s42 = scalar_select %p41, 0, %s40
      %s43 = ssub.s32 %s30, %s42
      %s44 = ssub.s32 %s31, %s38
      %s45 = sor.u32 %s43, %s44
      %p46 = scmp.eq.s32.totalorder %s45, 0
      %s48 = sadd.s32 %s47, 1
      %s49 = scalar_select %p46, %s47, %s48
      %p52 = pneg %p46
      %p53 = scmp.eq.s32.totalorder %s23, 1
      %p54 = por %p52, %p53
      %p55 = scmp.ne.s32.totalorder %s47, %s50
      %p56 = scmp.eq.s32.totalorder %s23, 0
      %p57 = por %p55, %p56
      %p58 = scmp.ne.s32.totalorder %s47, %s50
      %p59 = scmp.eq.s32.totalorder %s28, 1
      %p60 = por %p58, %p59
      %p61 = scmp.ne.s32.totalorder %s50, %s51
      %p62 = scmp.eq.s32.totalorder %s28, 0
      %p63 = por %p61, %p62
      %p64 = scmp.ne.s32.totalorder %s50, %s51
      %p65 = scmp.eq.s32.totalorder %s29, 1
      %p66 = por %p64, %p65
      %p68 = scmp.ne.s32.totalorder %s51, %s67
      %p69 = scmp.eq.s32.totalorder %s29, 0
      %p70 = por %p68, %p69
      %s72 = sadd.s32 %s71, 1
      %p75 = scmp.eq.s32.totalorder %s23, 1
      %p76 = scmp.ne.s32.totalorder %s71, %s73
      %p77 = scmp.eq.s32.totalorder %s23, 0
      %p78 = por %p76, %p77
      %p79 = scmp.ne.s32.totalorder %s71, %s73
      %p80 = scmp.eq.s32.totalorder %s28, 1
      %p81 = por %p79, %p80
      %p82 = scmp.ne.s32.totalorder %s73, %s74
      %p83 = scmp.eq.s32.totalorder %s28, 0
      %p84 = por %p82, %p83
      %p85 = scmp.ne.s32.totalorder %s73, %s74
      %p86 = scmp.eq.s32.totalorder %s29, 1
      %p87 = por %p85, %p86
      %p89 = scmp.ne.s32.totalorder %s74, %s88
      %p90 = scmp.eq.s32.totalorder %s29, 0
      %p91 = por %p89, %p90
      %s93 = sadd.s32 %s92, 1
      %p96 = scmp.eq.s32.totalorder %s23, 1
      %p97 = scmp.ne.s32.totalorder %s92, %s94
      %p98 = scmp.eq.s32.totalorder %s23, 0
      %p99 = por %p97, %p98
      %p100 = scmp.ne.s32.totalorder %s92, %s94
      %p101 = scmp.eq.s32.totalorder %s28, 1
      %p102 = por %p100, %p101
      %p103 = scmp.ne.s32.totalorder %s94, %s95
      %p104 = scmp.eq.s32.totalorder %s28, 0
      %p105 = por %p103, %p104
      %p106 = scmp.ne.s32.totalorder %s94, %s95
      %p107 = scmp.eq.s32.totalorder %s29, 1
      %p108 = por %p106, %p107
      %p110 = scmp.ne.s32.totalorder %s95, %s109
      %p111 = scmp.eq.s32.totalorder %s29, 0
      %p112 = por %p110, %p111
      %s114 = sadd.s32 %s113, 1
      %p117 = scmp.eq.s32.totalorder %s23, 1
      %p118 = scmp.ne.s32.totalorder %s113, %s115
      %p119 = scmp.eq.s32.totalorder %s23, 0
      %p120 = por %p118, %p119
      %p121 = scmp.ne.s32.totalorder %s113, %s115
      %p122 = scmp.eq.s32.totalorder %s28, 1
      %p123 = por %p121, %p122
      %p124 = scmp.ne.s32.totalorder %s115, %s116
      %p125 = scmp.eq.s32.totalorder %s28, 0
      %p126 = por %p124, %p125
      %p127 = scmp.ne.s32.totalorder %s115, %s116
      %p128 = scmp.eq.s32.totalorder %s29, 1
      %p129 = por %p127, %p128
      %p131 = scmp.ne.s32.totalorder %s116, %s130
      %p132 = scmp.eq.s32.totalorder %s29, 0
      %p133 = por %p131, %p132
      %s135 = sadd.s32 %s134, 1
      %p138 = scmp.eq.s32.totalorder %s23, 1
      %p139 = scmp.ne.s32.totalorder %s134, %s136
      %p140 = scmp.eq.s32.totalorder %s23, 0
      %p141 = por %p139, %p140
      %p142 = scmp.ne.s32.totalorder %s134, %s136
      %p143 = scmp.eq.s32.totalorder %s28, 1
      %p144 = por %p142, %p143
      %p145 = scmp.ne.s32.totalorder %s136, %s137
      %p146 = scmp.eq.s32.totalorder %s28, 0
      %p147 = por %p145, %p146
      %p148 = scmp.ne.s32.totalorder %s136, %s137
      %p149 = scmp.eq.s32.totalorder %s29, 1
      %p150 = por %p148, %p149
      %p152 = scmp.ne.s32.totalorder %s137, %s151
      %p153 = scmp.eq.s32.totalorder %s29, 0
      %p154 = por %p152, %p153
      %s156 = sadd.s32 %s155, 1
      %p159 = scmp.eq.s32.totalorder %s23, 1
      %p160 = scmp.ne.s32.totalorder %s155, %s157
      %p161 = scmp.eq.s32.totalorder %s23, 0
      %p162 = por %p160, %p161
      %p163 = scmp.ne.s32.totalorder %s155, %s157
      %p164 = scmp.eq.s32.totalorder %s28, 1
      %p165 = por %p163, %p164
      %p166 = scmp.ne.s32.totalorder %s157, %s158
      %p167 = scmp.eq.s32.totalorder %s28, 0
      %p168 = por %p166, %p167
      %p169 = scmp.ne.s32.totalorder %s157, %s158
      %p170 = scmp.eq.s32.totalorder %s29, 1
      %p171 = por %p169, %p170
      %p173 = scmp.ne.s32.totalorder %s158, %s172
      %p174 = scmp.eq.s32.totalorder %s29, 0
      %p175 = por %p173, %p174
      %s177 = sadd.s32 %s176, 1
      %p180 = scmp.eq.s32.totalorder %s23, 1
      %p181 = scmp.ne.s32.totalorder %s176, %s178
      %p182 = scmp.eq.s32.totalorder %s23, 0
      %p183 = por %p181, %p182
      %p184 = scmp.ne.s32.totalorder %s176, %s178
      %p185 = scmp.eq.s32.totalorder %s28, 1
      %p186 = por %p184, %p185
      %p187 = scmp.ne.s32.totalorder %s178, %s179
      %p188 = scmp.eq.s32.totalorder %s28, 0
      %p189 = por %p187, %p188
      %p190 = scmp.ne.s32.totalorder %s178, %s179
      %p191 = scmp.eq.s32.totalorder %s29, 1
      %p192 = por %p190, %p191
      %p194 = scmp.ne.s32.totalorder %s179, %s193
      %p195 = scmp.eq.s32.totalorder %s29, 0
      %p196 = por %p194, %p195
      %s198 = sadd.s32 %s197, 1
      %p201 = scmp.eq.s32.totalorder %s23, 1
      %p202 = scmp.ne.s32.totalorder %s197, %s199
      %p203 = scmp.eq.s32.totalorder %s23, 0
      %p204 = por %p202, %p203
      %p205 = scmp.ne.s32.totalorder %s197, %s199
      %p206 = scmp.eq.s32.totalorder %s28, 1
      %p207 = por %p205, %p206
      %p208 = scmp.ne.s32.totalorder %s199, %s200
      %p209 = scmp.eq.s32.totalorder %s28, 0
      %p210 = por %p208, %p209
      %p211 = scmp.ne.s32.totalorder %s199, %s200
      %p212 = scmp.eq.s32.totalorder %s29, 1
      %p213 = por %p211, %p212
      %p215 = scmp.ne.s32.totalorder %s200, %s214
      %p216 = scmp.eq.s32.totalorder %s29, 0
      %p217 = por %p215, %p216
      %s219 = sadd.s32 %s218, 1
      %p222 = scmp.eq.s32.totalorder %s23, 1
      %p223 = scmp.ne.s32.totalorder %s218, %s220
      %p224 = scmp.eq.s32.totalorder %s23, 0
      %p225 = por %p223, %p224
      %p226 = scmp.ne.s32.totalorder %s218, %s220
      %p227 = scmp.eq.s32.totalorder %s28, 1
      %p228 = por %p226, %p227
      %p229 = scmp.ne.s32.totalorder %s220, %s221
      %p230 = scmp.eq.s32.totalorder %s28, 0
      %p231 = por %p229, %p230
      %p232 = scmp.ne.s32.totalorder %s220, %s221
      %p233 = scmp.eq.s32.totalorder %s29, 1
      %p234 = por %p232, %p233
      %p236 = scmp.ne.s32.totalorder %s221, %s235
      %p237 = scmp.eq.s32.totalorder %s29, 0
      %p238 = por %p236, %p237
      %s239 = ssub.s32 %s30, %s42
      %s240 = ssub.s32 %s31, %s38
      %s241 = sor.u32 %s239, %s240
      %p242 = scmp.eq.s32.totalorder %s241, 0
      %s244 = sadd.s32 %s243, 1
      %s245 = scalar_select %p242, %s243, %s244
      %p248 = pneg %p242
      %p249 = scmp.eq.s32.totalorder %s23, 1
      %p250 = por %p248, %p249
      %p251 = scmp.ne.s32.totalorder %s243, %s246
      %p252 = scmp.eq.s32.totalorder %s23, 0
      %p253 = por %p251, %p252
      %p254 = scmp.ne.s32.totalorder %s243, %s246
      %p255 = scmp.eq.s32.totalorder %s28, 1
      %p256 = por %p254, %p255
      %p257 = scmp.ne.s32.totalorder %s246, %s247
      %p258 = scmp.eq.s32.totalorder %s28, 0
      %p259 = por %p257, %p258
      %p260 = scmp.ne.s32.totalorder %s246, %s247
      %p261 = scmp.eq.s32.totalorder %s29, 1
      %p262 = por %p260, %p261
      %p264 = scmp.ne.s32.totalorder %s247, %s263
      %p265 = scmp.eq.s32.totalorder %s29, 0
      %p266 = por %p264, %p265
      %p267 = scmp.le.s32.totalorder 1, %s23
      %p268 = scmp.lt.s32.totalorder %s23, 3
      %p269 = pnand %p267, %p268
      %p270 = pneg %p269
      // Predicated region
      $region9: #{tpu_custom_call.1} parent=5 // pred_check
        _
      $region10: #{tpu_custom_call.1} parent=5 // pred_check_branch
        %272 = sbr.rel (%p269) target = $region12
      $region11: #{tpu_custom_call.1} parent=5 // pred_region
        %s273 = ssub.s32 %s23, 1
        // Predicated region
        $region13: #{tpu_custom_call.1} parent=11 // pred_check
          %p274 = pneg %p84
        $region14: #{tpu_custom_call.1} parent=11 // pred_check_branch
          %276 = sbr.rel (%p274) target = $region16
        $region15: #{tpu_custom_call.1} parent=11 // pred_region
          %s278 = ssub.s32 7168, 7168
          %279 = vsyncadd [#allocation8], %s278
          %s280 = sshll.u32 [#allocation7], 4
          %s281 = int_to_ptr.vmem [resolvable:$true] %s280
          %286 = dma.hbm_to_vmem [thread:$0]  %s1, 7168, %s281, [#allocation8], 64, 64, 4
        $region16: #{tpu_custom_call.1} parent=11 // pred_fallthru
          _
        // Predicated region
        $region17: #{tpu_custom_call.1} parent=11 // pred_check
          %p287 = pneg %p105
        $region18: #{tpu_custom_call.1} parent=11 // pred_check_branch
          %289 = sbr.rel (%p287) target = $region20
        $region19: #{tpu_custom_call.1} parent=11 // pred_region
          _
        $region20: #{tpu_custom_call.1} parent=11 // pred_fallthru
          _
        // Predicated region
        $region21: #{tpu_custom_call.1} parent=11 // pred_check
          %p290 = pneg %p126
        $region22: #{tpu_custom_call.1} parent=11 // pred_check_branch
          %292 = sbr.rel (%p290) target = $region24
        $region23: #{tpu_custom_call.1} parent=11 // pred_region
          %s294 = ssub.s32 11264, 11264
          %295 = vsyncadd [#allocation8], %s294
          %s296 = sshll.u32 [#allocation9], 4
          %s297 = int_to_ptr.vmem [resolvable:$true] %s296
          %302 = dma.hbm_to_vmem [thread:$0]  %s3, 11264, %s297, [#allocation8], 64, 64, 4
        $region24: #{tpu_custom_call.1} parent=11 // pred_fallthru
          _
        // Predicated region
        $region25: #{tpu_custom_call.1} parent=11 // pred_check
          %p303 = pneg %p147
        $region26: #{tpu_custom_call.1} parent=11 // pred_check_branch
          %305 = sbr.rel (%p303) target = $region28
        $region27: #{tpu_custom_call.1} parent=11 // pred_region
          _
        $region28: #{tpu_custom_call.1} parent=11 // pred_fallthru
          _
        // Predicated region
        $region29: #{tpu_custom_call.1} parent=11 // pred_check
          %p306 = pneg %p168
        $region30: #{tpu_custom_call.1} parent=11 // pred_check_branch
          %308 = sbr.rel (%p306) target = $region32
        $region31: #{tpu_custom_call.1} parent=11 // pred_region
          %s310 = ssub.s32 7168, 7168
          %311 = vsyncadd [#allocation11], %s310
          %s312 = sshll.u32 [#allocation10], 4
          %s313 = int_to_ptr.vmem [resolvable:$true] %s312
          %318 = dma.hbm_to_vmem [thread:$0]  %s5, 7168, %s313, [#allocation11], 64, 64, 4
        $region32: #{tpu_custom_call.1} parent=11 // pred_fallthru
          _
        // Predicated region
        $region33: #{tpu_custom_call.1} parent=11 // pred_check
          %p319 = pneg %p189
        $region34: #{tpu_custom_call.1} parent=11 // pred_check_branch
          %321 = sbr.rel (%p319) target = $region36
        $region35: #{tpu_custom_call.1} parent=11 // pred_region
          _
        $region36: #{tpu_custom_call.1} parent=11 // pred_fallthru
          _
        // Predicated region
        $region37: #{tpu_custom_call.1} parent=11 // pred_check
          %p322 = pneg %p210
        $region38: #{tpu_custom_call.1} parent=11 // pred_check_branch
          %324 = sbr.rel (%p322) target = $region40
        $region39: #{tpu_custom_call.1} parent=11 // pred_region
          %s326 = ssub.s32 1024, 1024
          %327 = vsyncadd [#allocation11], %s326
          %s328 = sshll.u32 [#allocation12], 4
          %s329 = int_to_ptr.vmem [resolvable:$true] %s328
          %334 = dma.hbm_to_vmem [thread:$0]  %s7, 1024, %s329, [#allocation11], 64, 64, 4
        $region40: #{tpu_custom_call.1} parent=11 // pred_fallthru
          _
        // Predicated region
        $region41: #{tpu_custom_call.1} parent=11 // pred_check
          %p335 = pneg %p231
        $region42: #{tpu_custom_call.1} parent=11 // pred_check_branch
          %337 = sbr.rel (%p335) target = $region44
        $region43: #{tpu_custom_call.1} parent=11 // pred_region
          _
        $region44: #{tpu_custom_call.1} parent=11 // pred_fallthru
          _
      $region12: #{tpu_custom_call.1} parent=5 // pred_fallthru
        _
      %p338 = scmp.lt.s32.totalorder %s23, 2
      // Predicated region
      $region45: #{tpu_custom_call.1} parent=5 // pred_check
        %p339 = pneg %p338
      $region46: #{tpu_custom_call.1} parent=5 // pred_check_branch
        %341 = sbr.rel (%p339) target = $region48
      $region47: #{tpu_custom_call.1} parent=5 // pred_region
        // Predicated region
        $region49: #{tpu_custom_call.1} parent=47 // pred_check
          %p342 = pneg %p57
        $region50: #{tpu_custom_call.1} parent=47 // pred_check_branch
          %344 = sbr.rel (%p342) target = $region52
        $region51: #{tpu_custom_call.1} parent=47 // pred_region
          %s345 = sand.u32 %s47, 1
          %s346 = scalar_lea.sflag [#allocation5], %s345
          %s347 = sand.u32 %s47, 1
          %s348 = smul.addr %s347, 24
          %s349 = scalar_lea.vmem [#allocation4], %s348
          %s351 = ssub.s32 384, 384
          %352 = vsyncadd %s346, %s351
          %s353 = smul.addr %s31, 6
          %s354 = smul.addr %s30, 6
          %s355 = sadd.s32 %s353, %s354
          %s356 = smul.addr %s355, 64
          %s357 = scalar_lea.hbm %s0, %s356
          %s358 = sshll.u32 %s349, 4
          %s359 = int_to_ptr.vmem [resolvable:$true] %s358
          %364 = dma.hbm_to_vmem [thread:$0]  %s357, 384, %s359, %s346, 64, 64, 4
        $region52: #{tpu_custom_call.1} parent=47 // pred_fallthru
          _
      $region48: #{tpu_custom_call.1} parent=5 // pred_fallthru
        _
      %p365 = scmp.le.s32.totalorder 1, %s23
      %p366 = scmp.lt.s32.totalorder %s23, 3
      %p367 = pnand %p365, %p366
      %p368 = pneg %p367
      // Predicated region
      $region53: #{tpu_custom_call.1} parent=5 // pred_check
        _
      $region54: #{tpu_custom_call.1} parent=5 // pred_check_branch
        %370 = sbr.rel (%p367) target = $region56
      $region55: #{tpu_custom_call.1} parent=5 // pred_region
        %s371 = ssub.s32 %s23, 1
        %s372 = sand.u32 %s50, 1
        %s373 = scalar_lea.sflag [#allocation5], %s372
        %s374 = sand.u32 %s50, 1
        %s375 = smul.addr %s374, 24
        %s376 = scalar_lea.vmem [#allocation4], %s375
        // Predicated region
        $region57: #{tpu_custom_call.1} parent=55 // pred_check
          %p377 = pneg %p63
        $region58: #{tpu_custom_call.1} parent=55 // pred_check_branch
          %379 = sbr.rel (%p377) target = $region60
        $region59: #{tpu_custom_call.1} parent=55 // pred_region
          %380 = dma.done %s373, 384
        $region60: #{tpu_custom_call.1} parent=55 // pred_fallthru
          _
        // Predicated region
        $region61: #{tpu_custom_call.1} parent=55 // pred_check
          %p381 = pneg %p84
        $region62: #{tpu_custom_call.1} parent=55 // pred_check_branch
          %383 = sbr.rel (%p381) target = $region64
        $region63: #{tpu_custom_call.1} parent=55 // pred_region
          %384 = dma.done [#allocation8], 7168
        $region64: #{tpu_custom_call.1} parent=55 // pred_fallthru
          _
        // Predicated region
        $region65: #{tpu_custom_call.1} parent=55 // pred_check
          %p385 = pneg %p126
        $region66: #{tpu_custom_call.1} parent=55 // pred_check_branch
          %387 = sbr.rel (%p385) target = $region68
        $region67: #{tpu_custom_call.1} parent=55 // pred_region
          %388 = dma.done [#allocation8], 11264
        $region68: #{tpu_custom_call.1} parent=55 // pred_fallthru
          _
        // Predicated region
        $region69: #{tpu_custom_call.1} parent=55 // pred_check
          %p389 = pneg %p168
        $region70: #{tpu_custom_call.1} parent=55 // pred_check_branch
          %391 = sbr.rel (%p389) target = $region72
        $region71: #{tpu_custom_call.1} parent=55 // pred_region
          %392 = dma.done [#allocation11], 7168
        $region72: #{tpu_custom_call.1} parent=55 // pred_fallthru
          _
        // Predicated region
        $region73: #{tpu_custom_call.1} parent=55 // pred_check
          %p393 = pneg %p210
        $region74: #{tpu_custom_call.1} parent=55 // pred_check_branch
          %395 = sbr.rel (%p393) target = $region76
        $region75: #{tpu_custom_call.1} parent=55 // pred_region
          %396 = dma.done [#allocation11], 1024
        $region76: #{tpu_custom_call.1} parent=55 // pred_fallthru
          _
        %s397 = sand.u32 %s50, 1
        %s398 = scalar_lea.sflag [#allocation5], %s397
        %s399 = sand.u32 %s50, 1
        %s400 = smul.addr %s399, 24
        %s401 = scalar_lea.vmem [#allocation4], %s400
        %p402 = pneg %p63
        %p403 = pneg %p60
        %p404 = pneg %p84
        %p405 = pneg %p81
        %p406 = pneg %p105
        %p407 = pneg %p102
        %p408 = pneg %p126
        %p409 = pneg %p123
        %p410 = pneg %p147
        %p411 = pneg %p144
        %p412 = pneg %p168
        %p413 = pneg %p165
        %p414 = pneg %p189
        %p415 = pneg %p186
        %p416 = pneg %p210
        %p417 = pneg %p207
        %p418 = pneg %p231
        %p419 = pneg %p228
        %p420 = pneg %p259
        %p421 = pneg %p256
        %s422 = sand.u32 %s246, 1
        %s423 = scalar_lea.sflag [#allocation6], %s422
        %s424 = sand.u32 %s246, 1
        %s425 = smul.addr %s424, 16
        %s426 = scalar_lea.vmem [#allocation13], %s425
        %s427 = smul.u32 2, %s33
        %s429 = smul.u32 %s33, 16
        %v430 = vld [vmem:[%s376] sm:$0xf]
        %v431 = vld [vmem:[%s376 + $0x4] sm:$0xf]
        %v432 = vld [vmem:[%s376 + $0x8] sm:$0xf]
        %v433 = vld [vmem:[%s376 + $0xc] sm:$0xf]
        %v434 = vld [vmem:[%s376 + $0x10] sm:$0xf]
        %v435 = vld [vmem:[%s376] sm:$0xf]
        %v436 = vld [vmem:[%s376 + $0x4] sm:$0xf]
        %v437 = vld [vmem:[%s376 + $0x8] sm:$0xf]
        %v438 = vld [vmem:[%s376 + $0xc] sm:$0xf]
        %v439 = vld [vmem:[%s376 + $0x10] sm:$0xf]
        %v440 = vld [vmem:[%s376 + $0x14] sm:$0x1]
        %v441 = vld [vmem:[%s376] sm:$0xe]
        %v442 = vld [vmem:[%s376 + $0x14] sm:$0x3]
        %v443 = vld [vmem:[%s376] sm:$0xc]
        %v444 = vld [vmem:[%s376 + $0x14] sm:$0x7]
        %v445 = vld [vmem:[%s376] sm:$0x8]
        %v451 = vunpack.c.l.b16 %v430
        %v452 = vunpack.c.l.b16 %v431
        %v453 = vunpack.c.l.b16 %v432
        %v454 = vunpack.c.l.b16 %v433
        %v455 = vunpack.c.l.b16 %v434
        %v456 = vpack.c.b16 %v452, %v451
        %v457 = vpack.c.b16 %v454, %v453
        %v458 = vpack.c.b16 %v455, %v455
        %v468 = vunpack.c.l.b16 %v435
        %v469 = vunpack.c.l.b16 %v436
        %v470 = vunpack.c.l.b16 %v437
        %v471 = vunpack.c.l.b16 %v438
        %v472 = vunpack.c.l.b16 %v439
        %v473 = vunpack.c.l.b16 %v440
        %v474 = vpack.c.b16 %v469, %v468
        %v475 = vpack.c.b16 %v471, %v470
        %v476 = vpack.c.b16 %v473, %v472
        %vm477 = vsmask.f32 7424
        %v479 = vshrl.u32 %v474, 16
        %v481 = vshll.u32 %v474, 16
        %v483 = vrot.slane %v481, 1
        %v484 = vor.u32 %v479, %v483
        %v486 = vshll.u32 %v475, 16
        %v488 = vrot.slane %v486, 1
        %v489 = vsel %vm477, %v484, %v488
        %v490 = vshrl.u32 %v475, 16
        %v492 = vor.u32 %v490, %v488
        %v494 = vshll.u32 %v476, 16
        %v496 = vrot.slane %v494, 1
        %v497 = vsel %vm477, %v492, %v496
        %v498 = vshrl.u32 %v476, 16
        %v500 = vor.u32 %v498, %v496
        %v505 = vunpack.c.l.b16 %v441
        %v506 = vpack.c.b16 %v469, %v505
        %vm507 = vcmask 1046528
        %v508 = vrot.slane %v506, 1
        %v509 = vrot.slane %v475, 1
        %v510 = vsel %vm507, %v508, %v509
        %v511 = vrot.slane %v476, 1
        %v512 = vsel %vm507, %v509, %v511
        %v517 = vunpack.c.l.b16 %v442
        %v518 = vpack.c.b16 %v517, %v472
        %vm519 = vsmask.f32 6400
        %v521 = vshrl.u32 %v506, 16
        %v523 = vrot.slane %v521, 1
        %v524 = vshll.u32 %v506, 16
        %v526 = vrot.slane %v524, 2
        %v527 = vor.u32 %v523, %v526
        %v528 = vrot.slane %v490, 1
        %v529 = vrot.slane %v486, 2
        %v530 = vor.u32 %v528, %v529
        %v531 = vsel %vm519, %v527, %v530
        %v533 = vshrl.u32 %v518, 16
        %v535 = vrot.slane %v533, 1
        %v536 = vshll.u32 %v518, 16
        %v538 = vrot.slane %v536, 2
        %v539 = vor.u32 %v535, %v538
        %v540 = vsel %vm519, %v530, %v539
        %v545 = vunpack.c.l.b16 %v443
        %v546 = vpack.c.b16 %v469, %v545
        %vm547 = vcmask 1045504
        %v548 = vrot.slane %v546, 2
        %v549 = vrot.slane %v475, 2
        %v550 = vsel %vm547, %v548, %v549
        %v551 = vrot.slane %v518, 2
        %v552 = vsel %vm547, %v549, %v551
        %v557 = vunpack.c.l.b16 %v444
        %v558 = vpack.c.b16 %v557, %v472
        %vm559 = vsmask.f32 5376
        %v561 = vshrl.u32 %v546, 16
        %v563 = vrot.slane %v561, 2
        %v564 = vshll.u32 %v546, 16
        %v566 = vrot.slane %v564, 3
        %v567 = vor.u32 %v563, %v566
        %v568 = vrot.slane %v490, 2
        %v569 = vrot.slane %v486, 3
        %v570 = vor.u32 %v568, %v569
        %v571 = vsel %vm559, %v567, %v570
        %v573 = vshrl.u32 %v558, 16
        %v575 = vrot.slane %v573, 2
        %v576 = vshll.u32 %v558, 16
        %v578 = vrot.slane %v576, 3
        %v579 = vor.u32 %v575, %v578
        %v580 = vsel %vm559, %v570, %v579
        %v585 = vunpack.c.l.b16 %v445
        %v586 = vpack.c.b16 %v469, %v585
        %vm587 = vcmask 1044480
        %v588 = vrot.slane %v586, 3
        %v589 = vrot.slane %v475, 3
        %v590 = vsel %vm587, %v588, %v589
        %v591 = vrot.slane %v558, 3
        %v592 = vsel %vm587, %v589, %v591
        %v596 = vld [vmem:[#allocation7] sm:$0xf]
        %v597 = vld [vmem:[#allocation7 + $0x4] sm:$0xf]
        %v598 = vld [vmem:[#allocation7 + $0x8] sm:$0xf]
        %v599 = vld [vmem:[#allocation7 + $0xc] sm:$0xf]
        %v600 = vld [vmem:[#allocation7 + $0x10] sm:$0xf]
        %v601 = vld [vmem:[#allocation7 + $0x14] sm:$0xf]
        %v602 = vld [vmem:[#allocation7 + $0x18] sm:$0xf]
        %v603 = vld [vmem:[#allocation7 + $0x1c] sm:$0xf]
        %v604 = vld [vmem:[#allocation7 + $0x20] sm:$0xf]
        %v605 = vld [vmem:[#allocation7 + $0x24] sm:$0xf]
        %v606 = vld [vmem:[#allocation7 + $0x28] sm:$0xf]
        %v607 = vld [vmem:[#allocation7 + $0x2c] sm:$0xf]
        %v608 = vld [vmem:[#allocation7 + $0x30] sm:$0xf]
        %v609 = vld [vmem:[#allocation7 + $0x34] sm:$0xf]
        %v610 = vld [vmem:[#allocation7 + $0x38] sm:$0xf]
        %v611 = vld [vmem:[#allocation7 + $0x3c] sm:$0xf]
        %v612 = vld [vmem:[#allocation7 + $0x40] sm:$0xf]
        %v613 = vld [vmem:[#allocation7 + $0x44] sm:$0xf]
        %v614 = vld [vmem:[#allocation7 + $0x48] sm:$0xf]
        %v615 = vld [vmem:[#allocation7 + $0x4c] sm:$0xf]
        %v616 = vld [vmem:[#allocation7 + $0x50] sm:$0xf]
        %v617 = vld [vmem:[#allocation7 + $0x54] sm:$0xf]
        %v618 = vld [vmem:[#allocation7 + $0x58] sm:$0xf]
        %v619 = vld [vmem:[#allocation7 + $0x5c] sm:$0xf]
        %v620 = vld [vmem:[#allocation7 + $0x60] sm:$0xf]
        %v621 = vld [vmem:[#allocation7 + $0x64] sm:$0xf]
        %v622 = vld [vmem:[#allocation7 + $0x68] sm:$0xf]
        %v623 = vld [vmem:[#allocation7 + $0x6c] sm:$0xf]
        %v624 = vld [vmem:[#allocation7 + $0x70] sm:$0xf]
        %v625 = vld [vmem:[#allocation7 + $0x74] sm:$0xf]
        %v626 = vld [vmem:[#allocation7 + $0x78] sm:$0xf]
        %v627 = vld [vmem:[#allocation7 + $0x7c] sm:$0xf]
        %v628 = vld [vmem:[#allocation7 + $0x80] sm:$0xf]
        %v629 = vld [vmem:[#allocation7 + $0x84] sm:$0xf]
        %v630 = vld [vmem:[#allocation7 + $0x88] sm:$0xf]
        %v631 = vld [vmem:[#allocation7 + $0x8c] sm:$0xf]
        %v632 = vld [vmem:[#allocation7 + $0x90] sm:$0xf]
        %v633 = vld [vmem:[#allocation7 + $0x94] sm:$0xf]
        %v634 = vld [vmem:[#allocation7 + $0x98] sm:$0xf]
        %v635 = vld [vmem:[#allocation7 + $0x9c] sm:$0xf]
        %v636 = vld [vmem:[#allocation7 + $0xa0] sm:$0xf]
        %v637 = vld [vmem:[#allocation7 + $0xa4] sm:$0xf]
        %v638 = vld [vmem:[#allocation7 + $0xa8] sm:$0xf]
        %v639 = vld [vmem:[#allocation7 + $0xac] sm:$0xf]
        %v640 = vld [vmem:[#allocation7 + $0xb0] sm:$0xf]
        %v641 = vld [vmem:[#allocation7 + $0xb4] sm:$0xf]
        %v642 = vld [vmem:[#allocation7 + $0xb8] sm:$0xf]
        %v643 = vld [vmem:[#allocation7 + $0xbc] sm:$0xf]
        %v644 = vld [vmem:[#allocation7 + $0xc0] sm:$0xf]
        %v645 = vld [vmem:[#allocation7 + $0xc4] sm:$0xf]
        %v646 = vld [vmem:[#allocation7 + $0xc8] sm:$0xf]
        %v647 = vld [vmem:[#allocation7 + $0xcc] sm:$0xf]
        %v648 = vld [vmem:[#allocation7 + $0xd0] sm:$0xf]
        %v649 = vld [vmem:[#allocation7 + $0xd4] sm:$0xf]
        %v650 = vld [vmem:[#allocation7 + $0xd8] sm:$0xf]
        %v651 = vld [vmem:[#allocation7 + $0xdc] sm:$0xf]
        %v652 = vld [vmem:[#allocation7 + $0xe0] sm:$0xf]
        %v653 = vld [vmem:[#allocation7 + $0xe4] sm:$0xf]
        %v654 = vld [vmem:[#allocation7 + $0xe8] sm:$0xf]
        %v655 = vld [vmem:[#allocation7 + $0xec] sm:$0xf]
        %v656 = vld [vmem:[#allocation7 + $0xf0] sm:$0xf]
        %v657 = vld [vmem:[#allocation7 + $0xf4] sm:$0xf]
        %v658 = vld [vmem:[#allocation7 + $0xf8] sm:$0xf]
        %v659 = vld [vmem:[#allocation7 + $0xfc] sm:$0xf]
        %v660 = vld [vmem:[#allocation7 + $0x100] sm:$0xf]
        %v661 = vld [vmem:[#allocation7 + $0x104] sm:$0xf]
        %v662 = vld [vmem:[#allocation7 + $0x108] sm:$0xf]
        %v663 = vld [vmem:[#allocation7 + $0x10c] sm:$0xf]
        %v664 = vld [vmem:[#allocation7 + $0x110] sm:$0xf]
        %v665 = vld [vmem:[#allocation7 + $0x114] sm:$0xf]
        %v666 = vld [vmem:[#allocation7 + $0x118] sm:$0xf]
        %v667 = vld [vmem:[#allocation7 + $0x11c] sm:$0xf]
        %v668 = vld [vmem:[#allocation7 + $0x120] sm:$0xf]
        %v669 = vld [vmem:[#allocation7 + $0x124] sm:$0xf]
        %v670 = vld [vmem:[#allocation7 + $0x128] sm:$0xf]
        %v671 = vld [vmem:[#allocation7 + $0x12c] sm:$0xf]
        %v672 = vld [vmem:[#allocation7 + $0x130] sm:$0xf]
        %v673 = vld [vmem:[#allocation7 + $0x134] sm:$0xf]
        %v674 = vld [vmem:[#allocation7 + $0x138] sm:$0xf]
        %v675 = vld [vmem:[#allocation7 + $0x13c] sm:$0xf]
        %v676 = vld [vmem:[#allocation7 + $0x140] sm:$0xf]
        %v677 = vld [vmem:[#allocation7 + $0x144] sm:$0xf]
        %v678 = vld [vmem:[#allocation7 + $0x148] sm:$0xf]
        %v679 = vld [vmem:[#allocation7 + $0x14c] sm:$0xf]
        %v680 = vld [vmem:[#allocation7 + $0x150] sm:$0xf]
        %v681 = vld [vmem:[#allocation7 + $0x154] sm:$0xf]
        %v682 = vld [vmem:[#allocation7 + $0x158] sm:$0xf]
        %v683 = vld [vmem:[#allocation7 + $0x15c] sm:$0xf]
        %v684 = vld [vmem:[#allocation7 + $0x160] sm:$0xf]
        %v685 = vld [vmem:[#allocation7 + $0x164] sm:$0xf]
        %v686 = vld [vmem:[#allocation7 + $0x168] sm:$0xf]
        %v687 = vld [vmem:[#allocation7 + $0x16c] sm:$0xf]
        %v688 = vld [vmem:[#allocation7 + $0x170] sm:$0xf]
        %v689 = vld [vmem:[#allocation7 + $0x174] sm:$0xf]
        %v690 = vld [vmem:[#allocation7 + $0x178] sm:$0xf]
        %v691 = vld [vmem:[#allocation7 + $0x17c] sm:$0xf]
        %v692 = vld [vmem:[#allocation7 + $0x180] sm:$0xf]
        %v693 = vld [vmem:[#allocation7 + $0x184] sm:$0xf]
        %v694 = vld [vmem:[#allocation7 + $0x188] sm:$0xf]
        %v695 = vld [vmem:[#allocation7 + $0x18c] sm:$0xf]
        %v696 = vld [vmem:[#allocation7 + $0x190] sm:$0xf]
        %v697 = vld [vmem:[#allocation7 + $0x194] sm:$0xf]
        %v698 = vld [vmem:[#allocation7 + $0x198] sm:$0xf]
        %v699 = vld [vmem:[#allocation7 + $0x19c] sm:$0xf]
        %v700 = vld [vmem:[#allocation7 + $0x1a0] sm:$0xf]
        %v701 = vld [vmem:[#allocation7 + $0x1a4] sm:$0xf]
        %v702 = vld [vmem:[#allocation7 + $0x1a8] sm:$0xf]
        %v703 = vld [vmem:[#allocation7 + $0x1ac] sm:$0xf]
        %v704 = vld [vmem:[#allocation7 + $0x1b0] sm:$0xf]
        %v705 = vld [vmem:[#allocation7 + $0x1b4] sm:$0xf]
        %v706 = vld [vmem:[#allocation7 + $0x1b8] sm:$0xf]
        %v707 = vld [vmem:[#allocation7 + $0x1bc] sm:$0xf]
        %v708 = vld [vmem:[%s2] sm:$0x1]
        %v710 = vlaneseq
        %v711 = vshrl.u32 %v710, 7
        %v712 = vsub.s32 0, %v711
        %v713 = vrot.slane %v708, %v712
        %v827 = vunpack.c.l.b16 %v596
        %v828 = vunpack.c.l.b16 %v597
        %v829 = vunpack.c.l.b16 %v598
        %v830 = vunpack.c.l.b16 %v599
        %v831 = vunpack.c.l.b16 %v600
        %v832 = vunpack.c.l.b16 %v601
        %v833 = vunpack.c.l.b16 %v602
        %v834 = vunpack.c.l.b16 %v603
        %v835 = vunpack.c.l.b16 %v604
        %v836 = vunpack.c.l.b16 %v605
        %v837 = vunpack.c.l.b16 %v606
        %v838 = vunpack.c.l.b16 %v607
        %v839 = vunpack.c.l.b16 %v608
        %v840 = vunpack.c.l.b16 %v609
        %v841 = vunpack.c.l.b16 %v610
        %v842 = vunpack.c.l.b16 %v611
        %v843 = vunpack.c.l.b16 %v612
        %v844 = vunpack.c.l.b16 %v613
        %v845 = vunpack.c.l.b16 %v614
        %v846 = vunpack.c.l.b16 %v615
        %v847 = vunpack.c.l.b16 %v616
        %v848 = vunpack.c.l.b16 %v617
        %v849 = vunpack.c.l.b16 %v618
        %v850 = vunpack.c.l.b16 %v619
        %v851 = vunpack.c.l.b16 %v620
        %v852 = vunpack.c.l.b16 %v621
        %v853 = vunpack.c.l.b16 %v622
        %v854 = vunpack.c.l.b16 %v623
        %v855 = vunpack.c.l.b16 %v624
        %v856 = vunpack.c.l.b16 %v625
        %v857 = vunpack.c.l.b16 %v626
        %v858 = vunpack.c.l.b16 %v627
        %v859 = vunpack.c.l.b16 %v628
        %v860 = vunpack.c.l.b16 %v629
        %v861 = vunpack.c.l.b16 %v630
        %v862 = vunpack.c.l.b16 %v631
        %v863 = vunpack.c.l.b16 %v632
        %v864 = vunpack.c.l.b16 %v633
        %v865 = vunpack.c.l.b16 %v634
        %v866 = vunpack.c.l.b16 %v635
        %v867 = vunpack.c.l.b16 %v636
        %v868 = vunpack.c.l.b16 %v637
        %v869 = vunpack.c.l.b16 %v638
        %v870 = vunpack.c.l.b16 %v639
        %v871 = vunpack.c.l.b16 %v640
        %v872 = vunpack.c.l.b16 %v641
        %v873 = vunpack.c.l.b16 %v642
        %v874 = vunpack.c.l.b16 %v643
        %v875 = vunpack.c.l.b16 %v644
        %v876 = vunpack.c.l.b16 %v645
        %v877 = vunpack.c.l.b16 %v646
        %v878 = vunpack.c.l.b16 %v647
        %v879 = vunpack.c.l.b16 %v648
        %v880 = vunpack.c.l.b16 %v649
        %v881 = vunpack.c.l.b16 %v650
        %v882 = vunpack.c.l.b16 %v651
        %v883 = vunpack.c.l.b16 %v652
        %v884 = vunpack.c.l.b16 %v653
        %v885 = vunpack.c.l.b16 %v654
        %v886 = vunpack.c.l.b16 %v655
        %v887 = vunpack.c.l.b16 %v656
        %v888 = vunpack.c.l.b16 %v657
        %v889 = vunpack.c.l.b16 %v658
        %v890 = vunpack.c.l.b16 %v659
        %v891 = vunpack.c.l.b16 %v660
        %v892 = vunpack.c.l.b16 %v661
        %v893 = vunpack.c.l.b16 %v662
        %v894 = vunpack.c.l.b16 %v663
        %v895 = vunpack.c.l.b16 %v664
        %v896 = vunpack.c.l.b16 %v665
        %v897 = vunpack.c.l.b16 %v666
        %v898 = vunpack.c.l.b16 %v667
        %v899 = vunpack.c.l.b16 %v668
        %v900 = vunpack.c.l.b16 %v669
        %v901 = vunpack.c.l.b16 %v670
        %v902 = vunpack.c.l.b16 %v671
        %v903 = vunpack.c.l.b16 %v672
        %v904 = vunpack.c.l.b16 %v673
        %v905 = vunpack.c.l.b16 %v674
        %v906 = vunpack.c.l.b16 %v675
        %v907 = vunpack.c.l.b16 %v676
        %v908 = vunpack.c.l.b16 %v677
        %v909 = vunpack.c.l.b16 %v678
        %v910 = vunpack.c.l.b16 %v679
        %v911 = vunpack.c.l.b16 %v680
        %v912 = vunpack.c.l.b16 %v681
        %v913 = vunpack.c.l.b16 %v682
        %v914 = vunpack.c.l.b16 %v683
        %v915 = vunpack.c.l.b16 %v684
        %v916 = vunpack.c.l.b16 %v685
        %v917 = vunpack.c.l.b16 %v686
        %v918 = vunpack.c.l.b16 %v687
        %v919 = vunpack.c.l.b16 %v688
        %v920 = vunpack.c.l.b16 %v689
        %v921 = vunpack.c.l.b16 %v690
        %v922 = vunpack.c.l.b16 %v691
        %v923 = vunpack.c.l.b16 %v692
        %v924 = vunpack.c.l.b16 %v693
        %v925 = vunpack.c.l.b16 %v694
        %v926 = vunpack.c.l.b16 %v695
        %v927 = vunpack.c.l.b16 %v696
        %v928 = vunpack.c.l.b16 %v697
        %v929 = vunpack.c.l.b16 %v698
        %v930 = vunpack.c.l.b16 %v699
        %v931 = vunpack.c.l.b16 %v700
        %v932 = vunpack.c.l.b16 %v701
        %v933 = vunpack.c.l.b16 %v702
        %v934 = vunpack.c.l.b16 %v703
        %v935 = vunpack.c.l.b16 %v704
        %v936 = vunpack.c.l.b16 %v705
        %v937 = vunpack.c.l.b16 %v706
        %v938 = vunpack.c.l.b16 %v707
        %v939 = vpack.c.b16 %v828, %v827
        %v940 = vpack.c.b16 %v830, %v829
        %v941 = vpack.c.b16 %v832, %v831
        %v942 = vpack.c.b16 %v834, %v833
        %v943 = vpack.c.b16 %v836, %v835
        %v944 = vpack.c.b16 %v838, %v837
        %v945 = vpack.c.b16 %v840, %v839
        %v946 = vpack.c.b16 %v842, %v841
        %v947 = vpack.c.b16 %v844, %v843
        %v948 = vpack.c.b16 %v846, %v845
        %v949 = vpack.c.b16 %v848, %v847
        %v950 = vpack.c.b16 %v850, %v849
        %v951 = vpack.c.b16 %v852, %v851
        %v952 = vpack.c.b16 %v854, %v853
        %v953 = vpack.c.b16 %v856, %v855
        %v954 = vpack.c.b16 %v858, %v857
        %v955 = vpack.c.b16 %v860, %v859
        %v956 = vpack.c.b16 %v862, %v861
        %v957 = vpack.c.b16 %v864, %v863
        %v958 = vpack.c.b16 %v866, %v865
        %v959 = vpack.c.b16 %v868, %v867
        %v960 = vpack.c.b16 %v870, %v869
        %v961 = vpack.c.b16 %v872, %v871
        %v962 = vpack.c.b16 %v874, %v873
        %v963 = vpack.c.b16 %v876, %v875
        %v964 = vpack.c.b16 %v878, %v877
        %v965 = vpack.c.b16 %v880, %v879
        %v966 = vpack.c.b16 %v882, %v881
        %v967 = vpack.c.b16 %v884, %v883
        %v968 = vpack.c.b16 %v886, %v885
        %v969 = vpack.c.b16 %v888, %v887
        %v970 = vpack.c.b16 %v890, %v889
        %v971 = vpack.c.b16 %v892, %v891
        %v972 = vpack.c.b16 %v894, %v893
        %v973 = vpack.c.b16 %v896, %v895
        %v974 = vpack.c.b16 %v898, %v897
        %v975 = vpack.c.b16 %v900, %v899
        %v976 = vpack.c.b16 %v902, %v901
        %v977 = vpack.c.b16 %v904, %v903
        %v978 = vpack.c.b16 %v906, %v905
        %v979 = vpack.c.b16 %v908, %v907
        %v980 = vpack.c.b16 %v910, %v909
        %v981 = vpack.c.b16 %v912, %v911
        %v982 = vpack.c.b16 %v914, %v913
        %v983 = vpack.c.b16 %v916, %v915
        %v984 = vpack.c.b16 %v918, %v917
        %v985 = vpack.c.b16 %v920, %v919
        %v986 = vpack.c.b16 %v922, %v921
        %v987 = vpack.c.b16 %v924, %v923
        %v988 = vpack.c.b16 %v926, %v925
        %v989 = vpack.c.b16 %v928, %v927
        %v990 = vpack.c.b16 %v930, %v929
        %v991 = vpack.c.b16 %v932, %v931
        %v992 = vpack.c.b16 %v934, %v933
        %v993 = vpack.c.b16 %v936, %v935
        %v994 = vpack.c.b16 %v938, %v937
        %1051 = vmatprep.subr.bf16.mxu0 0
        %1052 = vmatpush1.bf16.msra.mxu0 %v946
        %1053 = vmatprep.subr.bf16.mxu0 0
        %1054 = vmatpush1.bf16.msra.mxu0 %v945
        %1055 = vmatprep.subr.bf16.mxu0 0
        %1056 = vmatpush1.bf16.msra.mxu0 %v944
        %1057 = vmatprep.subr.bf16.mxu0 0
        %1058 = vmatpush1.bf16.msra.mxu0 %v943
        %1059 = vmatprep.subr.bf16.mxu0 0
        %1060 = vmatpush1.bf16.msra.mxu0 %v942
        %1061 = vmatprep.subr.bf16.mxu0 0
        %1062 = vmatpush1.bf16.msra.mxu0 %v941
        %1063 = vmatprep.subr.bf16.mxu0 0
        %1064 = vmatpush1.bf16.msra.mxu0 %v940
        %1065 = vmatprep.subr.bf16.mxu0 0
        %1066 = vmatpush1.bf16.msra.mxu0 %v939
        %1067 = vmatprep.subr.bf16.mxu0 0
        %1068 = vmatpush2.bf16.msra.mxu0 %v954
        %1069 = vmatprep.subr.bf16.mxu0 0
        %1070 = vmatpush2.bf16.msra.mxu0 %v953
        %1071 = vmatprep.subr.bf16.mxu0 0
        %1072 = vmatpush2.bf16.msra.mxu0 %v952
        %1073 = vmatprep.subr.bf16.mxu0 0
        %1074 = vmatpush2.bf16.msra.mxu0 %v951
        %1075 = vmatprep.subr.bf16.mxu0 0
        %1076 = vmatpush2.bf16.msra.mxu0 %v950
        %1077 = vmatprep.subr.bf16.mxu0 0
        %1078 = vmatpush2.bf16.msra.mxu0 %v949
        %1079 = vmatprep.subr.bf16.mxu0 0
        %1080 = vmatpush2.bf16.msra.mxu0 %v948
        %1081 = vmatprep.subr.bf16.mxu0 0
        %1082 = vmatpush2.bf16.msra.mxu0 %v947
        %1083 = vmatprep.mubr.bf16.mxu0 %v489
        %1084 = vmatmul.mubr.bf16.gmra.mxu0 %v456
        %v1085 = vpop.f32.mrf.mxu0
        %v1086 = vadd.f32 %v713, %v1085
        %v1087 = vpop.f32.mrf.mxu0
        %v1088 = vpop.f32.mrf.mxu0
        %v1089 = vadd.f32 %v713, %v1088
        %v1090 = vpop.f32.mrf.mxu0
        %1091 = vmatprep.mubr.bf16.mxu0 %v497
        %1092 = vmatmul.mubr.bf16.gmra.mxu0 %v457
        %v1093 = vpop.f32.mrf.mxu0
        %v1094 = vadd.f32 %v713, %v1093
        %v1095 = vpop.f32.mrf.mxu0
        %v1096 = vpop.f32.mrf.mxu0
        %v1097 = vadd.f32 %v713, %v1096
        %v1098 = vpop.f32.mrf.mxu0
        %1099 = vmatprep.mubr.bf16.mxu0 %v500
        %1100 = vmatmul.mubr.bf16.gmra.mxu0 %v458
        %v1101 = vpop.f32.mrf.mxu0
        %v1102 = vadd.f32 %v713, %v1101
        %v1103 = vpop.f32.mrf.mxu0
        %v1104 = vpop.f32.mrf.mxu0
        %v1105 = vpop.f32.mrf.mxu0
        %1106 = vdwg.mxu0
        %1107 = vmatprep.subr.bf16.mxu0 0
        %1108 = vmatpush1.bf16.msra.mxu0 %v962
        %1109 = vmatprep.subr.bf16.mxu0 0
        %1110 = vmatpush1.bf16.msra.mxu0 %v961
        %1111 = vmatprep.subr.bf16.mxu0 0
        %1112 = vmatpush1.bf16.msra.mxu0 %v960
        %1113 = vmatprep.subr.bf16.mxu0 0
        %1114 = vmatpush1.bf16.msra.mxu0 %v959
        %1115 = vmatprep.subr.bf16.mxu0 0
        %1116 = vmatpush1.bf16.msra.mxu0 %v958
        %1117 = vmatprep.subr.bf16.mxu0 0
        %1118 = vmatpush1.bf16.msra.mxu0 %v957
        %1119 = vmatprep.subr.bf16.mxu0 0
        %1120 = vmatpush1.bf16.msra.mxu0 %v956
        %1121 = vmatprep.subr.bf16.mxu0 0
        %1122 = vmatpush1.bf16.msra.mxu0 %v955
        %1123 = vmatprep.subr.bf16.mxu0 0
        %1124 = vmatpush2.bf16.msra.mxu0 %v970
        %1125 = vmatprep.subr.bf16.mxu0 0
        %1126 = vmatpush2.bf16.msra.mxu0 %v969
        %1127 = vmatprep.subr.bf16.mxu0 0
        %1128 = vmatpush2.bf16.msra.mxu0 %v968
        %1129 = vmatprep.subr.bf16.mxu0 0
        %1130 = vmatpush2.bf16.msra.mxu0 %v967
        %1131 = vmatprep.subr.bf16.mxu0 0
        %1132 = vmatpush2.bf16.msra.mxu0 %v966
        %1133 = vmatprep.subr.bf16.mxu0 0
        %1134 = vmatpush2.bf16.msra.mxu0 %v965
        %1135 = vmatprep.subr.bf16.mxu0 0
        %1136 = vmatpush2.bf16.msra.mxu0 %v964
        %1137 = vmatprep.subr.bf16.mxu0 0
        %1138 = vmatpush2.bf16.msra.mxu0 %v963
        %1139 = vmatprep.mubr.bf16.mxu0 %v531
        %1140 = vmatmul.mubr.bf16.gmra.mxu0 %v510
        %v1141 = vpop.f32.mrf.mxu0
        %v1142 = vadd.f32 %v1086, %v1141
        %v1143 = vpop.f32.mrf.mxu0
        %v1144 = vpop.f32.mrf.mxu0
        %v1145 = vadd.f32 %v1089, %v1144
        %v1146 = vpop.f32.mrf.mxu0
        %1147 = vmatprep.mubr.bf16.mxu0 %v540
        %1148 = vmatmul.mubr.bf16.gmra.mxu0 %v512
        %v1149 = vpop.f32.mrf.mxu0
        %v1150 = vadd.f32 %v1094, %v1149
        %v1151 = vpop.f32.mrf.mxu0
        %v1152 = vpop.f32.mrf.mxu0
        %v1153 = vadd.f32 %v1097, %v1152
        %v1154 = vpop.f32.mrf.mxu0
        %1155 = vmatprep.mubr.bf16.mxu0 %v539
        %1156 = vmatmul.mubr.bf16.gmra.mxu0 %v511
        %v1157 = vpop.f32.mrf.mxu0
        %v1158 = vadd.f32 %v1102, %v1157
        %v1159 = vpop.f32.mrf.mxu0
        %v1160 = vpop.f32.mrf.mxu0
        %v1161 = vpop.f32.mrf.mxu0
        %1162 = vdwg.mxu0
        %1163 = vmatprep.subr.bf16.mxu0 0
        %1164 = vmatpush1.bf16.msra.mxu0 %v978
        %1165 = vmatprep.subr.bf16.mxu0 0
        %1166 = vmatpush1.bf16.msra.mxu0 %v977
        %1167 = vmatprep.subr.bf16.mxu0 0
        %1168 = vmatpush1.bf16.msra.mxu0 %v976
        %1169 = vmatprep.subr.bf16.mxu0 0
        %1170 = vmatpush1.bf16.msra.mxu0 %v975
        %1171 = vmatprep.subr.bf16.mxu0 0
        %1172 = vmatpush1.bf16.msra.mxu0 %v974
        %1173 = vmatprep.subr.bf16.mxu0 0
        %1174 = vmatpush1.bf16.msra.mxu0 %v973
        %1175 = vmatprep.subr.bf16.mxu0 0
        %1176 = vmatpush1.bf16.msra.mxu0 %v972
        %1177 = vmatprep.subr.bf16.mxu0 0
        %1178 = vmatpush1.bf16.msra.mxu0 %v971
        %1179 = vmatprep.subr.bf16.mxu0 0
        %1180 = vmatpush2.bf16.msra.mxu0 %v986
        %1181 = vmatprep.subr.bf16.mxu0 0
        %1182 = vmatpush2.bf16.msra.mxu0 %v985
        %1183 = vmatprep.subr.bf16.mxu0 0
        %1184 = vmatpush2.bf16.msra.mxu0 %v984
        %1185 = vmatprep.subr.bf16.mxu0 0
        %1186 = vmatpush2.bf16.msra.mxu0 %v983
        %1187 = vmatprep.subr.bf16.mxu0 0
        %1188 = vmatpush2.bf16.msra.mxu0 %v982
        %1189 = vmatprep.subr.bf16.mxu0 0
        %1190 = vmatpush2.bf16.msra.mxu0 %v981
        %1191 = vmatprep.subr.bf16.mxu0 0
        %1192 = vmatpush2.bf16.msra.mxu0 %v980
        %1193 = vmatprep.subr.bf16.mxu0 0
        %1194 = vmatpush2.bf16.msra.mxu0 %v979
        %1195 = vmatprep.mubr.bf16.mxu0 %v571
        %1196 = vmatmul.mubr.bf16.gmra.mxu0 %v550
        %v1197 = vpop.f32.mrf.mxu0
        %v1198 = vadd.f32 %v1142, %v1197
        %v1199 = vpop.f32.mrf.mxu0
        %v1200 = vpop.f32.mrf.mxu0
        %v1201 = vadd.f32 %v1145, %v1200
        %v1202 = vpop.f32.mrf.mxu0
        %1203 = vmatprep.mubr.bf16.mxu0 %v580
        %1204 = vmatmul.mubr.bf16.gmra.mxu0 %v552
        %v1205 = vpop.f32.mrf.mxu0
        %v1206 = vadd.f32 %v1150, %v1205
        %v1207 = vpop.f32.mrf.mxu0
        %v1208 = vpop.f32.mrf.mxu0
        %v1209 = vadd.f32 %v1153, %v1208
        %v1210 = vpop.f32.mrf.mxu0
        %1211 = vmatprep.mubr.bf16.mxu0 %v579
        %1212 = vmatmul.mubr.bf16.gmra.mxu0 %v551
        %v1213 = vpop.f32.mrf.mxu0
        %v1214 = vadd.f32 %v1158, %v1213
        %v1215 = vpop.f32.mrf.mxu0
        %v1216 = vpop.f32.mrf.mxu0
        %v1217 = vpop.f32.mrf.mxu0
        %1218 = vdwg.mxu0
        %1219 = vmatprep.subr.bf16.mxu0 0
        %1220 = vmatpush1.bf16.msra.mxu0 %v994
        %1221 = vmatprep.subr.bf16.mxu0 0
        %1222 = vmatpush1.bf16.msra.mxu0 %v993
        %1223 = vmatprep.subr.bf16.mxu0 0
        %1224 = vmatpush1.bf16.msra.mxu0 %v992
        %1225 = vmatprep.subr.bf16.mxu0 0
        %1226 = vmatpush1.bf16.msra.mxu0 %v991
        %1227 = vmatprep.subr.bf16.mxu0 0
        %1228 = vmatpush1.bf16.msra.mxu0 %v990
        %1229 = vmatprep.subr.bf16.mxu0 0
        %1230 = vmatpush1.bf16.msra.mxu0 %v989
        %1231 = vmatprep.subr.bf16.mxu0 0
        %1232 = vmatpush1.bf16.msra.mxu0 %v988
        %1233 = vmatprep.subr.bf16.mxu0 0
        %1234 = vmatpush1.bf16.msra.mxu0 %v987
        %1235 = vmatprep.subr.bf16.mxu0 0
        %1236 = vmatpush2.bf16.msra.mxu0 0
        %1237 = vmatprep.subr.bf16.mxu0 0
        %1238 = vmatpush2.bf16.msra.mxu0 0
        %1239 = vmatprep.subr.bf16.mxu0 0
        %1240 = vmatpush2.bf16.msra.mxu0 0
        %1241 = vmatprep.subr.bf16.mxu0 0
        %1242 = vmatpush2.bf16.msra.mxu0 0
        %1243 = vmatprep.subr.bf16.mxu0 0
        %1244 = vmatpush2.bf16.msra.mxu0 0
        %1245 = vmatprep.subr.bf16.mxu0 0
        %1246 = vmatpush2.bf16.msra.mxu0 0
        %1247 = vmatprep.subr.bf16.mxu0 0
        %1248 = vmatpush2.bf16.msra.mxu0 0
        %1249 = vmatprep.subr.bf16.mxu0 0
        %1250 = vmatpush2.bf16.msra.mxu0 0
        %1251 = vmatprep.mubr.bf16.mxu0 0
        %1252 = vmatmul.mubr.bf16.gmra.mxu0 %v590
        %v1253 = vpop.f32.mrf.mxu0
        %v1254 = vadd.f32 %v1198, %v1253
        %v1255 = vpop.f32.mrf.mxu0
        %v1256 = vpop.f32.mrf.mxu0
        %v1257 = vadd.f32 %v1201, %v1256
        %v1258 = vpop.f32.mrf.mxu0
        %1259 = vmatprep.mubr.bf16.mxu0 0
        %1260 = vmatmul.mubr.bf16.gmra.mxu0 %v592
        %v1261 = vpop.f32.mrf.mxu0
        %v1262 = vadd.f32 %v1206, %v1261
        %v1263 = vpop.f32.mrf.mxu0
        %v1264 = vpop.f32.mrf.mxu0
        %v1265 = vadd.f32 %v1209, %v1264
        %v1266 = vpop.f32.mrf.mxu0
        %1267 = vmatprep.mubr.bf16.mxu0 0
        %1268 = vmatmul.mubr.bf16.gmra.mxu0 %v591
        %v1269 = vpop.f32.mrf.mxu0
        %v1270 = vadd.f32 %v1214, %v1269
        %v1271 = vpop.f32.mrf.mxu0
        %v1272 = vpop.f32.mrf.mxu0
        %v1273 = vpop.f32.mrf.mxu0
        %1274 = vdwg.mxu0
        %v1275 = vmax.f32 %v1254, 0.0
        %v1276 = vmax.f32 %v1257, 0.0
        %v1277 = vmax.f32 %v1262, 0.0
        %v1278 = vmax.f32 %v1265, 0.0
        %v1279 = vmax.f32 %v1270, 0.0
        %s1280 = ssub.s32 %s429, 8
        %v1281 = vlaneseq
        %v1282 = vshrl.u32 %v1281, 7
        %v1283 = vadd.s32 %v1282, 8
        %v1284 = vadd.s32 %v1282, 16
        %v1285 = vadd.s32 %v1282, 24
        %v1286 = vadd.s32 %v1282, 32
        %v1287 = vstv %s1280
        %v1288 = vadd.s32 %v1282, %v1287
        %v1289 = vadd.s32 %v1283, %v1287
        %v1290 = vadd.s32 %v1284, %v1287
        %v1291 = vadd.s32 %v1285, %v1287
        %v1292 = vadd.s32 %v1286, %v1287
        %vm1293 = vcmp.ge.s32.totalorder %v1288, 0
        %vm1294 = vcmp.ge.s32.totalorder %v1289, 0
        %vm1295 = vcmp.ge.s32.totalorder %v1290, 0
        %vm1296 = vcmp.ge.s32.totalorder %v1291, 0
        %vm1297 = vcmp.ge.s32.totalorder %v1292, 0
        %vm1298 = vcmp.lt.s32.totalorder %v1288, 16
        %vm1299 = vcmp.lt.s32.totalorder %v1289, 16
        %vm1300 = vcmp.lt.s32.totalorder %v1290, 16
        %vm1301 = vcmp.lt.s32.totalorder %v1291, 16
        %vm1302 = vcmp.lt.s32.totalorder %v1292, 16
        %vm1303 = vmand %vm1293, %vm1298
        %vm1304 = vmand %vm1294, %vm1299
        %vm1305 = vmand %vm1295, %vm1300
        %vm1306 = vmand %vm1296, %vm1301
        %vm1307 = vmand %vm1297, %vm1302
        %v1308 = vsel %vm1303, 1, 0
        %v1309 = vsel %vm1304, 1, 0
        %v1310 = vsel %vm1305, 1, 0
        %v1311 = vsel %vm1306, 1, 0
        %v1312 = vsel %vm1307, 1, 0
        %vm1313 = vcmp.eq.s32.totalorder %v1308, 1
        %vm1314 = vcmp.eq.s32.totalorder %v1309, 1
        %vm1315 = vcmp.eq.s32.totalorder %v1310, 1
        %vm1316 = vcmp.eq.s32.totalorder %v1311, 1
        %vm1317 = vcmp.eq.s32.totalorder %v1312, 1
        %v1318 = vsel %vm1313, %v1275, 0.0
        %v1319 = vsel %vm1314, %v1276, 0.0
        %v1320 = vsel %vm1315, %v1277, 0.0
        %v1321 = vsel %vm1316, %v1278, 0.0
        %v1322 = vsel %vm1317, %v1279, 0.0
        %v1323 = vpack.c.bf16 %v1319, %v1318
        %v1324 = vpack.c.bf16 %v1321, %v1320
        %v1325 = vpack.c.bf16 %v1322, %v1322
        %v1329 = vunpack.c.l.b16 %v1323
        %v1330 = vunpack.c.h.b16 %v1323
        %v1331 = vunpack.c.l.b16 %v1324
        %v1332 = vunpack.c.h.b16 %v1324
        %v1333 = vunpack.c.l.b16 %v1325
        %v1334 = vpack.c.b16 %v1329, %v1329
        %v1335 = vpack.c.b16 %v1330, %v1330
        %v1336 = vpack.c.b16 %v1331, %v1331
        %v1337 = vpack.c.b16 %v1332, %v1332
        %v1338 = vpack.c.b16 %v1333, %v1333
        %1344 = vst [vmem:[#allocation2] sm:$0xf] %v1334
        %1345 = vst [vmem:[#allocation2 + $0x4] sm:$0xf] %v1335
        %1346 = vst [vmem:[#allocation2 + $0x8] sm:$0xf] %v1336
        %1347 = vst [vmem:[#allocation2 + $0xc] sm:$0xf] %v1337
        %1348 = vst [vmem:[#allocation2 + $0x10] sm:$0xf] %v1338
        %v1349 = vld [vmem:[#allocation2] sm:$0xf]
        %v1350 = vld [vmem:[#allocation2 + $0x4] sm:$0xf]
        %v1351 = vld [vmem:[#allocation2 + $0x8] sm:$0xf]
        %v1352 = vld [vmem:[#allocation2 + $0xc] sm:$0x1]
        %v1353 = vld [vmem:[#allocation2] sm:$0xe]
        %v1354 = vld [vmem:[#allocation2 + $0xc] sm:$0x3]
        %v1355 = vld [vmem:[#allocation2] sm:$0xc]
        %v1356 = vld [vmem:[#allocation2 + $0xc] sm:$0x7]
        %v1357 = vld [vmem:[#allocation2] sm:$0x8]
        %v1358 = vld [vmem:[#allocation2 + $0xc] sm:$0xf]
        %v1359 = vld [vmem:[#allocation2 + $0x4] sm:$0xf]
        %v1360 = vld [vmem:[#allocation2 + $0x8] sm:$0xf]
        %v1361 = vld [vmem:[#allocation2 + $0xc] sm:$0xf]
        %v1362 = vld [vmem:[#allocation2 + $0x10] sm:$0x1]
        %v1363 = vld [vmem:[#allocation2 + $0x4] sm:$0xe]
        %v1367 = vunpack.c.l.b16 %v1349
        %v1368 = vunpack.c.l.b16 %v1350
        %v1369 = vunpack.c.l.b16 %v1351
        %v1370 = vpack.c.b16 %v1368, %v1367
        %v1371 = vpack.c.b16 %v1369, %v1369
        %v1375 = vunpack.c.l.b16 %v1352
        %v1376 = vpack.c.b16 %v1375, %v1369
        %v1378 = vshrl.u32 %v1370, 16
        %v1380 = vshll.u32 %v1370, 16
        %v1382 = vrot.slane %v1380, 1
        %v1383 = vor.u32 %v1378, %v1382
        %v1385 = vshll.u32 %v1376, 16
        %v1387 = vrot.slane %v1385, 1
        %v1388 = vsel %vm477, %v1383, %v1387
        %v1389 = vshrl.u32 %v1376, 16
        %v1391 = vor.u32 %v1389, %v1387
        %v1395 = vunpack.c.l.b16 %v1353
        %v1396 = vpack.c.b16 %v1368, %v1395
        %v1397 = vrot.slane %v1396, 1
        %v1398 = vrot.slane %v1376, 1
        %v1399 = vsel %vm507, %v1397, %v1398
        %v1403 = vunpack.c.l.b16 %v1354
        %v1404 = vpack.c.b16 %v1403, %v1369
        %v1406 = vshrl.u32 %v1396, 16
        %v1408 = vrot.slane %v1406, 1
        %v1409 = vshll.u32 %v1396, 16
        %v1411 = vrot.slane %v1409, 2
        %v1412 = vor.u32 %v1408, %v1411
        %v1414 = vshrl.u32 %v1404, 16
        %v1416 = vrot.slane %v1414, 1
        %v1417 = vshll.u32 %v1404, 16
        %v1419 = vrot.slane %v1417, 2
        %v1420 = vor.u32 %v1416, %v1419
        %v1421 = vsel %vm519, %v1412, %v1420
        %v1425 = vunpack.c.l.b16 %v1355
        %v1426 = vpack.c.b16 %v1368, %v1425
        %v1427 = vrot.slane %v1426, 2
        %v1428 = vrot.slane %v1404, 2
        %v1429 = vsel %vm547, %v1427, %v1428
        %v1433 = vunpack.c.l.b16 %v1356
        %v1434 = vpack.c.b16 %v1433, %v1369
        %v1436 = vshrl.u32 %v1426, 16
        %v1438 = vrot.slane %v1436, 2
        %v1439 = vshll.u32 %v1426, 16
        %v1441 = vrot.slane %v1439, 3
        %v1442 = vor.u32 %v1438, %v1441
        %v1444 = vshrl.u32 %v1434, 16
        %v1446 = vrot.slane %v1444, 2
        %v1447 = vshll.u32 %v1434, 16
        %v1449 = vrot.slane %v1447, 3
        %v1450 = vor.u32 %v1446, %v1449
        %v1451 = vsel %vm559, %v1442, %v1450
        %v1455 = vunpack.c.l.b16 %v1357
        %v1456 = vpack.c.b16 %v1368, %v1455
        %v1457 = vrot.slane %v1456, 3
        %v1458 = vrot.slane %v1434, 3
        %v1459 = vsel %vm587, %v1457, %v1458
        %v1463 = vunpack.c.l.b16 %v1358
        %v1464 = vpack.c.b16 %v1463, %v1369
        %vm1465 = vsmask.f32 4352
        %v1467 = vshrl.u32 %v1456, 16
        %v1469 = vrot.slane %v1467, 3
        %v1470 = vshll.u32 %v1456, 16
        %v1472 = vrot.slane %v1470, 4
        %v1473 = vor.u32 %v1469, %v1472
        %v1475 = vshrl.u32 %v1464, 16
        %v1477 = vrot.slane %v1475, 3
        %v1478 = vshll.u32 %v1464, 16
        %v1480 = vrot.slane %v1478, 4
        %v1481 = vor.u32 %v1477, %v1480
        %v1482 = vsel %vm1465, %v1473, %v1481
        %v1485 = vpack.c.b16 %v1369, %v1368
        %v1486 = vpack.c.b16 %v1463, %v1463
        %v1493 = vunpack.c.l.b16 %v1359
        %v1494 = vunpack.c.l.b16 %v1360
        %v1495 = vunpack.c.l.b16 %v1361
        %v1496 = vunpack.c.l.b16 %v1362
        %v1497 = vpack.c.b16 %v1494, %v1493
        %v1498 = vpack.c.b16 %v1496, %v1495
        %v1500 = vshrl.u32 %v1497, 16
        %v1502 = vshll.u32 %v1497, 16
        %v1504 = vrot.slane %v1502, 1
        %v1505 = vor.u32 %v1500, %v1504
        %v1507 = vshll.u32 %v1498, 16
        %v1509 = vrot.slane %v1507, 1
        %v1510 = vsel %vm477, %v1505, %v1509
        %v1511 = vshrl.u32 %v1498, 16
        %v1513 = vor.u32 %v1511, %v1509
        %v1517 = vunpack.c.l.b16 %v1363
        %v1518 = vpack.c.b16 %v1494, %v1517
        %v1519 = vrot.slane %v1518, 1
        %v1520 = vrot.slane %v1498, 1
        %v1521 = vsel %vm507, %v1519, %v1520
        %v1524 = vld [vmem:[#allocation9] sm:$0xf]
        %v1525 = vld [vmem:[#allocation9 + $0x4] sm:$0xf]
        %v1526 = vld [vmem:[#allocation9 + $0x8] sm:$0xf]
        %v1527 = vld [vmem:[#allocation9 + $0xc] sm:$0xf]
        %v1528 = vld [vmem:[#allocation9 + $0x10] sm:$0xf]
        %v1529 = vld [vmem:[#allocation9 + $0x14] sm:$0xf]
        %v1530 = vld [vmem:[#allocation9 + $0x18] sm:$0xf]
        %v1531 = vld [vmem:[#allocation9 + $0x1c] sm:$0xf]
        %v1532 = vld [vmem:[#allocation9 + $0x20] sm:$0xf]
        %v1533 = vld [vmem:[#allocation9 + $0x24] sm:$0xf]
        %v1534 = vld [vmem:[#allocation9 + $0x28] sm:$0xf]
        %v1535 = vld [vmem:[#allocation9 + $0x2c] sm:$0xf]
        %v1536 = vld [vmem:[#allocation9 + $0x30] sm:$0xf]
        %v1537 = vld [vmem:[#allocation9 + $0x34] sm:$0xf]
        %v1538 = vld [vmem:[#allocation9 + $0x38] sm:$0xf]
        %v1539 = vld [vmem:[#allocation9 + $0x3c] sm:$0xf]
        %v1540 = vld [vmem:[#allocation9 + $0x40] sm:$0xf]
        %v1541 = vld [vmem:[#allocation9 + $0x44] sm:$0xf]
        %v1542 = vld [vmem:[#allocation9 + $0x48] sm:$0xf]
        %v1543 = vld [vmem:[#allocation9 + $0x4c] sm:$0xf]
        %v1544 = vld [vmem:[#allocation9 + $0x50] sm:$0xf]
        %v1545 = vld [vmem:[#allocation9 + $0x54] sm:$0xf]
        %v1546 = vld [vmem:[#allocation9 + $0x58] sm:$0xf]
        %v1547 = vld [vmem:[#allocation9 + $0x5c] sm:$0xf]
        %v1548 = vld [vmem:[#allocation9 + $0x60] sm:$0xf]
        %v1549 = vld [vmem:[#allocation9 + $0x64] sm:$0xf]
        %v1550 = vld [vmem:[#allocation9 + $0x68] sm:$0xf]
        %v1551 = vld [vmem:[#allocation9 + $0x6c] sm:$0xf]
        %v1552 = vld [vmem:[#allocation9 + $0x70] sm:$0xf]
        %v1553 = vld [vmem:[#allocation9 + $0x74] sm:$0xf]
        %v1554 = vld [vmem:[#allocation9 + $0x78] sm:$0xf]
        %v1555 = vld [vmem:[#allocation9 + $0x7c] sm:$0xf]
        %v1556 = vld [vmem:[#allocation9 + $0x80] sm:$0xf]
        %v1557 = vld [vmem:[#allocation9 + $0x84] sm:$0xf]
        %v1558 = vld [vmem:[#allocation9 + $0x88] sm:$0xf]
        %v1559 = vld [vmem:[#allocation9 + $0x8c] sm:$0xf]
        %v1560 = vld [vmem:[#allocation9 + $0x90] sm:$0xf]
        %v1561 = vld [vmem:[#allocation9 + $0x94] sm:$0xf]
        %v1562 = vld [vmem:[#allocation9 + $0x98] sm:$0xf]
        %v1563 = vld [vmem:[#allocation9 + $0x9c] sm:$0xf]
        %v1564 = vld [vmem:[#allocation9 + $0xa0] sm:$0xf]
        %v1565 = vld [vmem:[#allocation9 + $0xa4] sm:$0xf]
        %v1566 = vld [vmem:[#allocation9 + $0xa8] sm:$0xf]
        %v1567 = vld [vmem:[#allocation9 + $0xac] sm:$0xf]
        %v1568 = vld [vmem:[#allocation9 + $0xb0] sm:$0xf]
        %v1569 = vld [vmem:[#allocation9 + $0xb4] sm:$0xf]
        %v1570 = vld [vmem:[#allocation9 + $0xb8] sm:$0xf]
        %v1571 = vld [vmem:[#allocation9 + $0xbc] sm:$0xf]
        %v1572 = vld [vmem:[#allocation9 + $0xc0] sm:$0xf]
        %v1573 = vld [vmem:[#allocation9 + $0xc4] sm:$0xf]
        %v1574 = vld [vmem:[#allocation9 + $0xc8] sm:$0xf]
        %v1575 = vld [vmem:[#allocation9 + $0xcc] sm:$0xf]
        %v1576 = vld [vmem:[#allocation9 + $0xd0] sm:$0xf]
        %v1577 = vld [vmem:[#allocation9 + $0xd4] sm:$0xf]
        %v1578 = vld [vmem:[#allocation9 + $0xd8] sm:$0xf]
        %v1579 = vld [vmem:[#allocation9 + $0xdc] sm:$0xf]
        %v1580 = vld [vmem:[#allocation9 + $0xe0] sm:$0xf]
        %v1581 = vld [vmem:[#allocation9 + $0xe4] sm:$0xf]
        %v1582 = vld [vmem:[#allocation9 + $0xe8] sm:$0xf]
        %v1583 = vld [vmem:[#allocation9 + $0xec] sm:$0xf]
        %v1584 = vld [vmem:[#allocation9 + $0xf0] sm:$0xf]
        %v1585 = vld [vmem:[#allocation9 + $0xf4] sm:$0xf]
        %v1586 = vld [vmem:[#allocation9 + $0xf8] sm:$0xf]
        %v1587 = vld [vmem:[#allocation9 + $0xfc] sm:$0xf]
        %v1588 = vld [vmem:[#allocation9 + $0x100] sm:$0xf]
        %v1589 = vld [vmem:[#allocation9 + $0x104] sm:$0xf]
        %v1590 = vld [vmem:[#allocation9 + $0x108] sm:$0xf]
        %v1591 = vld [vmem:[#allocation9 + $0x10c] sm:$0xf]
        %v1592 = vld [vmem:[#allocation9 + $0x110] sm:$0xf]
        %v1593 = vld [vmem:[#allocation9 + $0x114] sm:$0xf]
        %v1594 = vld [vmem:[#allocation9 + $0x118] sm:$0xf]
        %v1595 = vld [vmem:[#allocation9 + $0x11c] sm:$0xf]
        %v1596 = vld [vmem:[#allocation9 + $0x120] sm:$0xf]
        %v1597 = vld [vmem:[#allocation9 + $0x124] sm:$0xf]
        %v1598 = vld [vmem:[#allocation9 + $0x128] sm:$0xf]
        %v1599 = vld [vmem:[#allocation9 + $0x12c] sm:$0xf]
        %v1600 = vld [vmem:[#allocation9 + $0x130] sm:$0xf]
        %v1601 = vld [vmem:[#allocation9 + $0x134] sm:$0xf]
        %v1602 = vld [vmem:[#allocation9 + $0x138] sm:$0xf]
        %v1603 = vld [vmem:[#allocation9 + $0x13c] sm:$0xf]
        %v1604 = vld [vmem:[#allocation9 + $0x140] sm:$0xf]
        %v1605 = vld [vmem:[#allocation9 + $0x144] sm:$0xf]
        %v1606 = vld [vmem:[#allocation9 + $0x148] sm:$0xf]
        %v1607 = vld [vmem:[#allocation9 + $0x14c] sm:$0xf]
        %v1608 = vld [vmem:[#allocation9 + $0x150] sm:$0xf]
        %v1609 = vld [vmem:[#allocation9 + $0x154] sm:$0xf]
        %v1610 = vld [vmem:[#allocation9 + $0x158] sm:$0xf]
        %v1611 = vld [vmem:[#allocation9 + $0x15c] sm:$0xf]
        %v1612 = vld [vmem:[#allocation9 + $0x160] sm:$0xf]
        %v1613 = vld [vmem:[#allocation9 + $0x164] sm:$0xf]
        %v1614 = vld [vmem:[#allocation9 + $0x168] sm:$0xf]
        %v1615 = vld [vmem:[#allocation9 + $0x16c] sm:$0xf]
        %v1616 = vld [vmem:[#allocation9 + $0x170] sm:$0xf]
        %v1617 = vld [vmem:[#allocation9 + $0x174] sm:$0xf]
        %v1618 = vld [vmem:[#allocation9 + $0x178] sm:$0xf]
        %v1619 = vld [vmem:[#allocation9 + $0x17c] sm:$0xf]
        %v1620 = vld [vmem:[#allocation9 + $0x180] sm:$0xf]
        %v1621 = vld [vmem:[#allocation9 + $0x184] sm:$0xf]
        %v1622 = vld [vmem:[#allocation9 + $0x188] sm:$0xf]
        %v1623 = vld [vmem:[#allocation9 + $0x18c] sm:$0xf]
        %v1624 = vld [vmem:[#allocation9 + $0x190] sm:$0xf]
        %v1625 = vld [vmem:[#allocation9 + $0x194] sm:$0xf]
        %v1626 = vld [vmem:[#allocation9 + $0x198] sm:$0xf]
        %v1627 = vld [vmem:[#allocation9 + $0x19c] sm:$0xf]
        %v1628 = vld [vmem:[#allocation9 + $0x1a0] sm:$0xf]
        %v1629 = vld [vmem:[#allocation9 + $0x1a4] sm:$0xf]
        %v1630 = vld [vmem:[#allocation9 + $0x1a8] sm:$0xf]
        %v1631 = vld [vmem:[#allocation9 + $0x1ac] sm:$0xf]
        %v1632 = vld [vmem:[#allocation9 + $0x1b0] sm:$0xf]
        %v1633 = vld [vmem:[#allocation9 + $0x1b4] sm:$0xf]
        %v1634 = vld [vmem:[#allocation9 + $0x1b8] sm:$0xf]
        %v1635 = vld [vmem:[#allocation9 + $0x1bc] sm:$0xf]
        %v1636 = vld [vmem:[#allocation9 + $0x1c0] sm:$0xf]
        %v1637 = vld [vmem:[#allocation9 + $0x1c4] sm:$0xf]
        %v1638 = vld [vmem:[#allocation9 + $0x1c8] sm:$0xf]
        %v1639 = vld [vmem:[#allocation9 + $0x1cc] sm:$0xf]
        %v1640 = vld [vmem:[#allocation9 + $0x1d0] sm:$0xf]
        %v1641 = vld [vmem:[#allocation9 + $0x1d4] sm:$0xf]
        %v1642 = vld [vmem:[#allocation9 + $0x1d8] sm:$0xf]
        %v1643 = vld [vmem:[#allocation9 + $0x1dc] sm:$0xf]
        %v1644 = vld [vmem:[#allocation9 + $0x1e0] sm:$0xf]
        %v1645 = vld [vmem:[#allocation9 + $0x1e4] sm:$0xf]
        %v1646 = vld [vmem:[#allocation9 + $0x1e8] sm:$0xf]
        %v1647 = vld [vmem:[#allocation9 + $0x1ec] sm:$0xf]
        %v1648 = vld [vmem:[#allocation9 + $0x1f0] sm:$0xf]
        %v1649 = vld [vmem:[#allocation9 + $0x1f4] sm:$0xf]
        %v1650 = vld [vmem:[#allocation9 + $0x1f8] sm:$0xf]
        %v1651 = vld [vmem:[#allocation9 + $0x1fc] sm:$0xf]
        %v1652 = vld [vmem:[#allocation9 + $0x200] sm:$0xf]
        %v1653 = vld [vmem:[#allocation9 + $0x204] sm:$0xf]
        %v1654 = vld [vmem:[#allocation9 + $0x208] sm:$0xf]
        %v1655 = vld [vmem:[#allocation9 + $0x20c] sm:$0xf]
        %v1656 = vld [vmem:[#allocation9 + $0x210] sm:$0xf]
        %v1657 = vld [vmem:[#allocation9 + $0x214] sm:$0xf]
        %v1658 = vld [vmem:[#allocation9 + $0x218] sm:$0xf]
        %v1659 = vld [vmem:[#allocation9 + $0x21c] sm:$0xf]
        %v1660 = vld [vmem:[#allocation9 + $0x220] sm:$0xf]
        %v1661 = vld [vmem:[#allocation9 + $0x224] sm:$0xf]
        %v1662 = vld [vmem:[#allocation9 + $0x228] sm:$0xf]
        %v1663 = vld [vmem:[#allocation9 + $0x22c] sm:$0xf]
        %v1664 = vld [vmem:[#allocation9 + $0x230] sm:$0xf]
        %v1665 = vld [vmem:[#allocation9 + $0x234] sm:$0xf]
        %v1666 = vld [vmem:[#allocation9 + $0x238] sm:$0xf]
        %v1667 = vld [vmem:[#allocation9 + $0x23c] sm:$0xf]
        %v1668 = vld [vmem:[#allocation9 + $0x240] sm:$0xf]
        %v1669 = vld [vmem:[#allocation9 + $0x244] sm:$0xf]
        %v1670 = vld [vmem:[#allocation9 + $0x248] sm:$0xf]
        %v1671 = vld [vmem:[#allocation9 + $0x24c] sm:$0xf]
        %v1672 = vld [vmem:[#allocation9 + $0x250] sm:$0xf]
        %v1673 = vld [vmem:[#allocation9 + $0x254] sm:$0xf]
        %v1674 = vld [vmem:[#allocation9 + $0x258] sm:$0xf]
        %v1675 = vld [vmem:[#allocation9 + $0x25c] sm:$0xf]
        %v1676 = vld [vmem:[#allocation9 + $0x260] sm:$0xf]
        %v1677 = vld [vmem:[#allocation9 + $0x264] sm:$0xf]
        %v1678 = vld [vmem:[#allocation9 + $0x268] sm:$0xf]
        %v1679 = vld [vmem:[#allocation9 + $0x26c] sm:$0xf]
        %v1680 = vld [vmem:[#allocation9 + $0x270] sm:$0xf]
        %v1681 = vld [vmem:[#allocation9 + $0x274] sm:$0xf]
        %v1682 = vld [vmem:[#allocation9 + $0x278] sm:$0xf]
        %v1683 = vld [vmem:[#allocation9 + $0x27c] sm:$0xf]
        %v1684 = vld [vmem:[#allocation9 + $0x280] sm:$0xf]
        %v1685 = vld [vmem:[#allocation9 + $0x284] sm:$0xf]
        %v1686 = vld [vmem:[#allocation9 + $0x288] sm:$0xf]
        %v1687 = vld [vmem:[#allocation9 + $0x28c] sm:$0xf]
        %v1688 = vld [vmem:[#allocation9 + $0x290] sm:$0xf]
        %v1689 = vld [vmem:[#allocation9 + $0x294] sm:$0xf]
        %v1690 = vld [vmem:[#allocation9 + $0x298] sm:$0xf]
        %v1691 = vld [vmem:[#allocation9 + $0x29c] sm:$0xf]
        %v1692 = vld [vmem:[#allocation9 + $0x2a0] sm:$0xf]
        %v1693 = vld [vmem:[#allocation9 + $0x2a4] sm:$0xf]
        %v1694 = vld [vmem:[#allocation9 + $0x2a8] sm:$0xf]
        %v1695 = vld [vmem:[#allocation9 + $0x2ac] sm:$0xf]
        %v1696 = vld [vmem:[#allocation9 + $0x2b0] sm:$0xf]
        %v1697 = vld [vmem:[#allocation9 + $0x2b4] sm:$0xf]
        %v1698 = vld [vmem:[#allocation9 + $0x2b8] sm:$0xf]
        %v1699 = vld [vmem:[#allocation9 + $0x2bc] sm:$0xf]
        %v1700 = vld [vmem:[%s4] sm:$0x1]
        %v1702 = vlaneseq
        %v1703 = vshrl.u32 %v1702, 7
        %v1704 = vsub.s32 0, %v1703
        %v1705 = vrot.slane %v1700, %v1704
        %v1883 = vunpack.c.l.b16 %v1524
        %v1884 = vunpack.c.l.b16 %v1525
        %v1885 = vunpack.c.l.b16 %v1526
        %v1886 = vunpack.c.l.b16 %v1527
        %v1887 = vunpack.c.l.b16 %v1528
        %v1888 = vunpack.c.l.b16 %v1529
        %v1889 = vunpack.c.l.b16 %v1530
        %v1890 = vunpack.c.l.b16 %v1531
        %v1891 = vunpack.c.l.b16 %v1532
        %v1892 = vunpack.c.l.b16 %v1533
        %v1893 = vunpack.c.l.b16 %v1534
        %v1894 = vunpack.c.l.b16 %v1535
        %v1895 = vunpack.c.l.b16 %v1536
        %v1896 = vunpack.c.l.b16 %v1537
        %v1897 = vunpack.c.l.b16 %v1538
        %v1898 = vunpack.c.l.b16 %v1539
        %v1899 = vunpack.c.l.b16 %v1540
        %v1900 = vunpack.c.l.b16 %v1541
        %v1901 = vunpack.c.l.b16 %v1542
        %v1902 = vunpack.c.l.b16 %v1543
        %v1903 = vunpack.c.l.b16 %v1544
        %v1904 = vunpack.c.l.b16 %v1545
        %v1905 = vunpack.c.l.b16 %v1546
        %v1906 = vunpack.c.l.b16 %v1547
        %v1907 = vunpack.c.l.b16 %v1548
        %v1908 = vunpack.c.l.b16 %v1549
        %v1909 = vunpack.c.l.b16 %v1550
        %v1910 = vunpack.c.l.b16 %v1551
        %v1911 = vunpack.c.l.b16 %v1552
        %v1912 = vunpack.c.l.b16 %v1553
        %v1913 = vunpack.c.l.b16 %v1554
        %v1914 = vunpack.c.l.b16 %v1555
        %v1915 = vunpack.c.l.b16 %v1556
        %v1916 = vunpack.c.l.b16 %v1557
        %v1917 = vunpack.c.l.b16 %v1558
        %v1918 = vunpack.c.l.b16 %v1559
        %v1919 = vunpack.c.l.b16 %v1560
        %v1920 = vunpack.c.l.b16 %v1561
        %v1921 = vunpack.c.l.b16 %v1562
        %v1922 = vunpack.c.l.b16 %v1563
        %v1923 = vunpack.c.l.b16 %v1564
        %v1924 = vunpack.c.l.b16 %v1565
        %v1925 = vunpack.c.l.b16 %v1566
        %v1926 = vunpack.c.l.b16 %v1567
        %v1927 = vunpack.c.l.b16 %v1568
        %v1928 = vunpack.c.l.b16 %v1569
        %v1929 = vunpack.c.l.b16 %v1570
        %v1930 = vunpack.c.l.b16 %v1571
        %v1931 = vunpack.c.l.b16 %v1572
        %v1932 = vunpack.c.l.b16 %v1573
        %v1933 = vunpack.c.l.b16 %v1574
        %v1934 = vunpack.c.l.b16 %v1575
        %v1935 = vunpack.c.l.b16 %v1576
        %v1936 = vunpack.c.l.b16 %v1577
        %v1937 = vunpack.c.l.b16 %v1578
        %v1938 = vunpack.c.l.b16 %v1579
        %v1939 = vunpack.c.l.b16 %v1580
        %v1940 = vunpack.c.l.b16 %v1581
        %v1941 = vunpack.c.l.b16 %v1582
        %v1942 = vunpack.c.l.b16 %v1583
        %v1943 = vunpack.c.l.b16 %v1584
        %v1944 = vunpack.c.l.b16 %v1585
        %v1945 = vunpack.c.l.b16 %v1586
        %v1946 = vunpack.c.l.b16 %v1587
        %v1947 = vunpack.c.l.b16 %v1588
        %v1948 = vunpack.c.l.b16 %v1589
        %v1949 = vunpack.c.l.b16 %v1590
        %v1950 = vunpack.c.l.b16 %v1591
        %v1951 = vunpack.c.l.b16 %v1592
        %v1952 = vunpack.c.l.b16 %v1593
        %v1953 = vunpack.c.l.b16 %v1594
        %v1954 = vunpack.c.l.b16 %v1595
        %v1955 = vunpack.c.l.b16 %v1596
        %v1956 = vunpack.c.l.b16 %v1597
        %v1957 = vunpack.c.l.b16 %v1598
        %v1958 = vunpack.c.l.b16 %v1599
        %v1959 = vunpack.c.l.b16 %v1600
        %v1960 = vunpack.c.l.b16 %v1601
        %v1961 = vunpack.c.l.b16 %v1602
        %v1962 = vunpack.c.l.b16 %v1603
        %v1963 = vunpack.c.l.b16 %v1604
        %v1964 = vunpack.c.l.b16 %v1605
        %v1965 = vunpack.c.l.b16 %v1606
        %v1966 = vunpack.c.l.b16 %v1607
        %v1967 = vunpack.c.l.b16 %v1608
        %v1968 = vunpack.c.l.b16 %v1609
        %v1969 = vunpack.c.l.b16 %v1610
        %v1970 = vunpack.c.l.b16 %v1611
        %v1971 = vunpack.c.l.b16 %v1612
        %v1972 = vunpack.c.l.b16 %v1613
        %v1973 = vunpack.c.l.b16 %v1614
        %v1974 = vunpack.c.l.b16 %v1615
        %v1975 = vunpack.c.l.b16 %v1616
        %v1976 = vunpack.c.l.b16 %v1617
        %v1977 = vunpack.c.l.b16 %v1618
        %v1978 = vunpack.c.l.b16 %v1619
        %v1979 = vunpack.c.l.b16 %v1620
        %v1980 = vunpack.c.l.b16 %v1621
        %v1981 = vunpack.c.l.b16 %v1622
        %v1982 = vunpack.c.l.b16 %v1623
        %v1983 = vunpack.c.l.b16 %v1624
        %v1984 = vunpack.c.l.b16 %v1625
        %v1985 = vunpack.c.l.b16 %v1626
        %v1986 = vunpack.c.l.b16 %v1627
        %v1987 = vunpack.c.l.b16 %v1628
        %v1988 = vunpack.c.l.b16 %v1629
        %v1989 = vunpack.c.l.b16 %v1630
        %v1990 = vunpack.c.l.b16 %v1631
        %v1991 = vunpack.c.l.b16 %v1632
        %v1992 = vunpack.c.l.b16 %v1633
        %v1993 = vunpack.c.l.b16 %v1634
        %v1994 = vunpack.c.l.b16 %v1635
        %v1995 = vunpack.c.l.b16 %v1636
        %v1996 = vunpack.c.l.b16 %v1637
        %v1997 = vunpack.c.l.b16 %v1638
        %v1998 = vunpack.c.l.b16 %v1639
        %v1999 = vunpack.c.l.b16 %v1640
        %v2000 = vunpack.c.l.b16 %v1641
        %v2001 = vunpack.c.l.b16 %v1642
        %v2002 = vunpack.c.l.b16 %v1643
        %v2003 = vunpack.c.l.b16 %v1644
        %v2004 = vunpack.c.l.b16 %v1645
        %v2005 = vunpack.c.l.b16 %v1646
        %v2006 = vunpack.c.l.b16 %v1647
        %v2007 = vunpack.c.l.b16 %v1648
        %v2008 = vunpack.c.l.b16 %v1649
        %v2009 = vunpack.c.l.b16 %v1650
        %v2010 = vunpack.c.l.b16 %v1651
        %v2011 = vunpack.c.l.b16 %v1652
        %v2012 = vunpack.c.l.b16 %v1653
        %v2013 = vunpack.c.l.b16 %v1654
        %v2014 = vunpack.c.l.b16 %v1655
        %v2015 = vunpack.c.l.b16 %v1656
        %v2016 = vunpack.c.l.b16 %v1657
        %v2017 = vunpack.c.l.b16 %v1658
        %v2018 = vunpack.c.l.b16 %v1659
        %v2019 = vunpack.c.l.b16 %v1660
        %v2020 = vunpack.c.l.b16 %v1661
        %v2021 = vunpack.c.l.b16 %v1662
        %v2022 = vunpack.c.l.b16 %v1663
        %v2023 = vunpack.c.l.b16 %v1664
        %v2024 = vunpack.c.l.b16 %v1665
        %v2025 = vunpack.c.l.b16 %v1666
        %v2026 = vunpack.c.l.b16 %v1667
        %v2027 = vunpack.c.l.b16 %v1668
        %v2028 = vunpack.c.l.b16 %v1669
        %v2029 = vunpack.c.l.b16 %v1670
        %v2030 = vunpack.c.l.b16 %v1671
        %v2031 = vunpack.c.l.b16 %v1672
        %v2032 = vunpack.c.l.b16 %v1673
        %v2033 = vunpack.c.l.b16 %v1674
        %v2034 = vunpack.c.l.b16 %v1675
        %v2035 = vunpack.c.l.b16 %v1676
        %v2036 = vunpack.c.l.b16 %v1677
        %v2037 = vunpack.c.l.b16 %v1678
        %v2038 = vunpack.c.l.b16 %v1679
        %v2039 = vunpack.c.l.b16 %v1680
        %v2040 = vunpack.c.l.b16 %v1681
        %v2041 = vunpack.c.l.b16 %v1682
        %v2042 = vunpack.c.l.b16 %v1683
        %v2043 = vunpack.c.l.b16 %v1684
        %v2044 = vunpack.c.l.b16 %v1685
        %v2045 = vunpack.c.l.b16 %v1686
        %v2046 = vunpack.c.l.b16 %v1687
        %v2047 = vunpack.c.l.b16 %v1688
        %v2048 = vunpack.c.l.b16 %v1689
        %v2049 = vunpack.c.l.b16 %v1690
        %v2050 = vunpack.c.l.b16 %v1691
        %v2051 = vunpack.c.l.b16 %v1692
        %v2052 = vunpack.c.l.b16 %v1693
        %v2053 = vunpack.c.l.b16 %v1694
        %v2054 = vunpack.c.l.b16 %v1695
        %v2055 = vunpack.c.l.b16 %v1696
        %v2056 = vunpack.c.l.b16 %v1697
        %v2057 = vunpack.c.l.b16 %v1698
        %v2058 = vunpack.c.l.b16 %v1699
        %v2059 = vpack.c.b16 %v1884, %v1883
        %v2060 = vpack.c.b16 %v1886, %v1885
        %v2061 = vpack.c.b16 %v1888, %v1887
        %v2062 = vpack.c.b16 %v1890, %v1889
        %v2063 = vpack.c.b16 %v1892, %v1891
        %v2064 = vpack.c.b16 %v1894, %v1893
        %v2065 = vpack.c.b16 %v1896, %v1895
        %v2066 = vpack.c.b16 %v1898, %v1897
        %v2067 = vpack.c.b16 %v1900, %v1899
        %v2068 = vpack.c.b16 %v1902, %v1901
        %v2069 = vpack.c.b16 %v1904, %v1903
        %v2070 = vpack.c.b16 %v1906, %v1905
        %v2071 = vpack.c.b16 %v1908, %v1907
        %v2072 = vpack.c.b16 %v1910, %v1909
        %v2073 = vpack.c.b16 %v1912, %v1911
        %v2074 = vpack.c.b16 %v1914, %v1913
        %v2075 = vpack.c.b16 %v1916, %v1915
        %v2076 = vpack.c.b16 %v1918, %v1917
        %v2077 = vpack.c.b16 %v1920, %v1919
        %v2078 = vpack.c.b16 %v1922, %v1921
        %v2079 = vpack.c.b16 %v1924, %v1923
        %v2080 = vpack.c.b16 %v1926, %v1925
        %v2081 = vpack.c.b16 %v1928, %v1927
        %v2082 = vpack.c.b16 %v1930, %v1929
        %v2083 = vpack.c.b16 %v1932, %v1931
        %v2084 = vpack.c.b16 %v1934, %v1933
        %v2085 = vpack.c.b16 %v1936, %v1935
        %v2086 = vpack.c.b16 %v1938, %v1937
        %v2087 = vpack.c.b16 %v1940, %v1939
        %v2088 = vpack.c.b16 %v1942, %v1941
        %v2089 = vpack.c.b16 %v1944, %v1943
        %v2090 = vpack.c.b16 %v1946, %v1945
        %v2091 = vpack.c.b16 %v1948, %v1947
        %v2092 = vpack.c.b16 %v1950, %v1949
        %v2093 = vpack.c.b16 %v1952, %v1951
        %v2094 = vpack.c.b16 %v1954, %v1953
        %v2095 = vpack.c.b16 %v1956, %v1955
        %v2096 = vpack.c.b16 %v1958, %v1957
        %v2097 = vpack.c.b16 %v1960, %v1959
        %v2098 = vpack.c.b16 %v1962, %v1961
        %v2099 = vpack.c.b16 %v1964, %v1963
        %v2100 = vpack.c.b16 %v1966, %v1965
        %v2101 = vpack.c.b16 %v1968, %v1967
        %v2102 = vpack.c.b16 %v1970, %v1969
        %v2103 = vpack.c.b16 %v1972, %v1971
        %v2104 = vpack.c.b16 %v1974, %v1973
        %v2105 = vpack.c.b16 %v1976, %v1975
        %v2106 = vpack.c.b16 %v1978, %v1977
        %v2107 = vpack.c.b16 %v1980, %v1979
        %v2108 = vpack.c.b16 %v1982, %v1981
        %v2109 = vpack.c.b16 %v1984, %v1983
        %v2110 = vpack.c.b16 %v1986, %v1985
        %v2111 = vpack.c.b16 %v1988, %v1987
        %v2112 = vpack.c.b16 %v1990, %v1989
        %v2113 = vpack.c.b16 %v1992, %v1991
        %v2114 = vpack.c.b16 %v1994, %v1993
        %v2115 = vpack.c.b16 %v1996, %v1995
        %v2116 = vpack.c.b16 %v1998, %v1997
        %v2117 = vpack.c.b16 %v2000, %v1999
        %v2118 = vpack.c.b16 %v2002, %v2001
        %v2119 = vpack.c.b16 %v2004, %v2003
        %v2120 = vpack.c.b16 %v2006, %v2005
        %v2121 = vpack.c.b16 %v2008, %v2007
        %v2122 = vpack.c.b16 %v2010, %v2009
        %v2123 = vpack.c.b16 %v2012, %v2011
        %v2124 = vpack.c.b16 %v2014, %v2013
        %v2125 = vpack.c.b16 %v2016, %v2015
        %v2126 = vpack.c.b16 %v2018, %v2017
        %v2127 = vpack.c.b16 %v2020, %v2019
        %v2128 = vpack.c.b16 %v2022, %v2021
        %v2129 = vpack.c.b16 %v2024, %v2023
        %v2130 = vpack.c.b16 %v2026, %v2025
        %v2131 = vpack.c.b16 %v2028, %v2027
        %v2132 = vpack.c.b16 %v2030, %v2029
        %v2133 = vpack.c.b16 %v2032, %v2031
        %v2134 = vpack.c.b16 %v2034, %v2033
        %v2135 = vpack.c.b16 %v2036, %v2035
        %v2136 = vpack.c.b16 %v2038, %v2037
        %v2137 = vpack.c.b16 %v2040, %v2039
        %v2138 = vpack.c.b16 %v2042, %v2041
        %v2139 = vpack.c.b16 %v2044, %v2043
        %v2140 = vpack.c.b16 %v2046, %v2045
        %v2141 = vpack.c.b16 %v2048, %v2047
        %v2142 = vpack.c.b16 %v2050, %v2049
        %v2143 = vpack.c.b16 %v2052, %v2051
        %v2144 = vpack.c.b16 %v2054, %v2053
        %v2145 = vpack.c.b16 %v2056, %v2055
        %v2146 = vpack.c.b16 %v2058, %v2057
        %2235 = vmatprep.subr.bf16.mxu0 0
        %2236 = vmatpush1.bf16.msra.mxu0 %v2066
        %2237 = vmatprep.subr.bf16.mxu0 0
        %2238 = vmatpush1.bf16.msra.mxu0 %v2065
        %2239 = vmatprep.subr.bf16.mxu0 0
        %2240 = vmatpush1.bf16.msra.mxu0 %v2064
        %2241 = vmatprep.subr.bf16.mxu0 0
        %2242 = vmatpush1.bf16.msra.mxu0 %v2063
        %2243 = vmatprep.subr.bf16.mxu0 0
        %2244 = vmatpush1.bf16.msra.mxu0 %v2062
        %2245 = vmatprep.subr.bf16.mxu0 0
        %2246 = vmatpush1.bf16.msra.mxu0 %v2061
        %2247 = vmatprep.subr.bf16.mxu0 0
        %2248 = vmatpush1.bf16.msra.mxu0 %v2060
        %2249 = vmatprep.subr.bf16.mxu0 0
        %2250 = vmatpush1.bf16.msra.mxu0 %v2059
        %2251 = vmatprep.subr.bf16.mxu0 0
        %2252 = vmatpush2.bf16.msra.mxu0 %v2074
        %2253 = vmatprep.subr.bf16.mxu0 0
        %2254 = vmatpush2.bf16.msra.mxu0 %v2073
        %2255 = vmatprep.subr.bf16.mxu0 0
        %2256 = vmatpush2.bf16.msra.mxu0 %v2072
        %2257 = vmatprep.subr.bf16.mxu0 0
        %2258 = vmatpush2.bf16.msra.mxu0 %v2071
        %2259 = vmatprep.subr.bf16.mxu0 0
        %2260 = vmatpush2.bf16.msra.mxu0 %v2070
        %2261 = vmatprep.subr.bf16.mxu0 0
        %2262 = vmatpush2.bf16.msra.mxu0 %v2069
        %2263 = vmatprep.subr.bf16.mxu0 0
        %2264 = vmatpush2.bf16.msra.mxu0 %v2068
        %2265 = vmatprep.subr.bf16.mxu0 0
        %2266 = vmatpush2.bf16.msra.mxu0 %v2067
        %2267 = vmatprep.mubr.bf16.mxu0 %v1388
        %2268 = vmatmul.mubr.bf16.gmra.mxu0 %v1370
        %v2269 = vpop.f32.mrf.mxu0
        %v2270 = vadd.f32 %v1705, %v2269
        %v2271 = vpop.f32.mrf.mxu0
        %v2272 = vpop.f32.mrf.mxu0
        %v2273 = vadd.f32 %v1705, %v2272
        %v2274 = vpop.f32.mrf.mxu0
        %2275 = vmatprep.mubr.bf16.mxu0 %v1391
        %2276 = vmatmul.mubr.bf16.gmra.mxu0 %v1371
        %v2277 = vpop.f32.mrf.mxu0
        %v2278 = vadd.f32 %v1705, %v2277
        %v2279 = vpop.f32.mrf.mxu0
        %v2280 = vpop.f32.mrf.mxu0
        %v2281 = vpop.f32.mrf.mxu0
        %2282 = vdwg.mxu0
        %2283 = vmatprep.subr.bf16.mxu0 0
        %2284 = vmatpush1.bf16.msra.mxu0 %v2082
        %2285 = vmatprep.subr.bf16.mxu0 0
        %2286 = vmatpush1.bf16.msra.mxu0 %v2081
        %2287 = vmatprep.subr.bf16.mxu0 0
        %2288 = vmatpush1.bf16.msra.mxu0 %v2080
        %2289 = vmatprep.subr.bf16.mxu0 0
        %2290 = vmatpush1.bf16.msra.mxu0 %v2079
        %2291 = vmatprep.subr.bf16.mxu0 0
        %2292 = vmatpush1.bf16.msra.mxu0 %v2078
        %2293 = vmatprep.subr.bf16.mxu0 0
        %2294 = vmatpush1.bf16.msra.mxu0 %v2077
        %2295 = vmatprep.subr.bf16.mxu0 0
        %2296 = vmatpush1.bf16.msra.mxu0 %v2076
        %2297 = vmatprep.subr.bf16.mxu0 0
        %2298 = vmatpush1.bf16.msra.mxu0 %v2075
        %2299 = vmatprep.subr.bf16.mxu0 0
        %2300 = vmatpush2.bf16.msra.mxu0 %v2090
        %2301 = vmatprep.subr.bf16.mxu0 0
        %2302 = vmatpush2.bf16.msra.mxu0 %v2089
        %2303 = vmatprep.subr.bf16.mxu0 0
        %2304 = vmatpush2.bf16.msra.mxu0 %v2088
        %2305 = vmatprep.subr.bf16.mxu0 0
        %2306 = vmatpush2.bf16.msra.mxu0 %v2087
        %2307 = vmatprep.subr.bf16.mxu0 0
        %2308 = vmatpush2.bf16.msra.mxu0 %v2086
        %2309 = vmatprep.subr.bf16.mxu0 0
        %2310 = vmatpush2.bf16.msra.mxu0 %v2085
        %2311 = vmatprep.subr.bf16.mxu0 0
        %2312 = vmatpush2.bf16.msra.mxu0 %v2084
        %2313 = vmatprep.subr.bf16.mxu0 0
        %2314 = vmatpush2.bf16.msra.mxu0 %v2083
        %2315 = vmatprep.mubr.bf16.mxu0 %v1421
        %2316 = vmatmul.mubr.bf16.gmra.mxu0 %v1399
        %v2317 = vpop.f32.mrf.mxu0
        %v2318 = vadd.f32 %v2270, %v2317
        %v2319 = vpop.f32.mrf.mxu0
        %v2320 = vpop.f32.mrf.mxu0
        %v2321 = vadd.f32 %v2273, %v2320
        %v2322 = vpop.f32.mrf.mxu0
        %2323 = vmatprep.mubr.bf16.mxu0 %v1420
        %2324 = vmatmul.mubr.bf16.gmra.mxu0 %v1398
        %v2325 = vpop.f32.mrf.mxu0
        %v2326 = vadd.f32 %v2278, %v2325
        %v2327 = vpop.f32.mrf.mxu0
        %v2328 = vpop.f32.mrf.mxu0
        %v2329 = vpop.f32.mrf.mxu0
        %2330 = vdwg.mxu0
        %2331 = vmatprep.subr.bf16.mxu0 0
        %2332 = vmatpush1.bf16.msra.mxu0 %v2098
        %2333 = vmatprep.subr.bf16.mxu0 0
        %2334 = vmatpush1.bf16.msra.mxu0 %v2097
        %2335 = vmatprep.subr.bf16.mxu0 0
        %2336 = vmatpush1.bf16.msra.mxu0 %v2096
        %2337 = vmatprep.subr.bf16.mxu0 0
        %2338 = vmatpush1.bf16.msra.mxu0 %v2095
        %2339 = vmatprep.subr.bf16.mxu0 0
        %2340 = vmatpush1.bf16.msra.mxu0 %v2094
        %2341 = vmatprep.subr.bf16.mxu0 0
        %2342 = vmatpush1.bf16.msra.mxu0 %v2093
        %2343 = vmatprep.subr.bf16.mxu0 0
        %2344 = vmatpush1.bf16.msra.mxu0 %v2092
        %2345 = vmatprep.subr.bf16.mxu0 0
        %2346 = vmatpush1.bf16.msra.mxu0 %v2091
        %2347 = vmatprep.subr.bf16.mxu0 0
        %2348 = vmatpush2.bf16.msra.mxu0 %v2106
        %2349 = vmatprep.subr.bf16.mxu0 0
        %2350 = vmatpush2.bf16.msra.mxu0 %v2105
        %2351 = vmatprep.subr.bf16.mxu0 0
        %2352 = vmatpush2.bf16.msra.mxu0 %v2104
        %2353 = vmatprep.subr.bf16.mxu0 0
        %2354 = vmatpush2.bf16.msra.mxu0 %v2103
        %2355 = vmatprep.subr.bf16.mxu0 0
        %2356 = vmatpush2.bf16.msra.mxu0 %v2102
        %2357 = vmatprep.subr.bf16.mxu0 0
        %2358 = vmatpush2.bf16.msra.mxu0 %v2101
        %2359 = vmatprep.subr.bf16.mxu0 0
        %2360 = vmatpush2.bf16.msra.mxu0 %v2100
        %2361 = vmatprep.subr.bf16.mxu0 0
        %2362 = vmatpush2.bf16.msra.mxu0 %v2099
        %2363 = vmatprep.mubr.bf16.mxu0 %v1451
        %2364 = vmatmul.mubr.bf16.gmra.mxu0 %v1429
        %v2365 = vpop.f32.mrf.mxu0
        %v2366 = vadd.f32 %v2318, %v2365
        %v2367 = vpop.f32.mrf.mxu0
        %v2368 = vpop.f32.mrf.mxu0
        %v2369 = vadd.f32 %v2321, %v2368
        %v2370 = vpop.f32.mrf.mxu0
        %2371 = vmatprep.mubr.bf16.mxu0 %v1450
        %2372 = vmatmul.mubr.bf16.gmra.mxu0 %v1428
        %v2373 = vpop.f32.mrf.mxu0
        %v2374 = vadd.f32 %v2326, %v2373
        %v2375 = vpop.f32.mrf.mxu0
        %v2376 = vpop.f32.mrf.mxu0
        %v2377 = vpop.f32.mrf.mxu0
        %2378 = vdwg.mxu0
        %2379 = vmatprep.subr.bf16.mxu0 0
        %2380 = vmatpush1.bf16.msra.mxu0 %v2114
        %2381 = vmatprep.subr.bf16.mxu0 0
        %2382 = vmatpush1.bf16.msra.mxu0 %v2113
        %2383 = vmatprep.subr.bf16.mxu0 0
        %2384 = vmatpush1.bf16.msra.mxu0 %v2112
        %2385 = vmatprep.subr.bf16.mxu0 0
        %2386 = vmatpush1.bf16.msra.mxu0 %v2111
        %2387 = vmatprep.subr.bf16.mxu0 0
        %2388 = vmatpush1.bf16.msra.mxu0 %v2110
        %2389 = vmatprep.subr.bf16.mxu0 0
        %2390 = vmatpush1.bf16.msra.mxu0 %v2109
        %2391 = vmatprep.subr.bf16.mxu0 0
        %2392 = vmatpush1.bf16.msra.mxu0 %v2108
        %2393 = vmatprep.subr.bf16.mxu0 0
        %2394 = vmatpush1.bf16.msra.mxu0 %v2107
        %2395 = vmatprep.subr.bf16.mxu0 0
        %2396 = vmatpush2.bf16.msra.mxu0 %v2122
        %2397 = vmatprep.subr.bf16.mxu0 0
        %2398 = vmatpush2.bf16.msra.mxu0 %v2121
        %2399 = vmatprep.subr.bf16.mxu0 0
        %2400 = vmatpush2.bf16.msra.mxu0 %v2120
        %2401 = vmatprep.subr.bf16.mxu0 0
        %2402 = vmatpush2.bf16.msra.mxu0 %v2119
        %2403 = vmatprep.subr.bf16.mxu0 0
        %2404 = vmatpush2.bf16.msra.mxu0 %v2118
        %2405 = vmatprep.subr.bf16.mxu0 0
        %2406 = vmatpush2.bf16.msra.mxu0 %v2117
        %2407 = vmatprep.subr.bf16.mxu0 0
        %2408 = vmatpush2.bf16.msra.mxu0 %v2116
        %2409 = vmatprep.subr.bf16.mxu0 0
        %2410 = vmatpush2.bf16.msra.mxu0 %v2115
        %2411 = vmatprep.mubr.bf16.mxu0 %v1482
        %2412 = vmatmul.mubr.bf16.gmra.mxu0 %v1459
        %v2413 = vpop.f32.mrf.mxu0
        %v2414 = vadd.f32 %v2366, %v2413
        %v2415 = vpop.f32.mrf.mxu0
        %v2416 = vpop.f32.mrf.mxu0
        %v2417 = vadd.f32 %v2369, %v2416
        %v2418 = vpop.f32.mrf.mxu0
        %2419 = vmatprep.mubr.bf16.mxu0 %v1481
        %2420 = vmatmul.mubr.bf16.gmra.mxu0 %v1458
        %v2421 = vpop.f32.mrf.mxu0
        %v2422 = vadd.f32 %v2374, %v2421
        %v2423 = vpop.f32.mrf.mxu0
        %v2424 = vpop.f32.mrf.mxu0
        %v2425 = vpop.f32.mrf.mxu0
        %2426 = vdwg.mxu0
        %2427 = vmatprep.subr.bf16.mxu0 0
        %2428 = vmatpush1.bf16.msra.mxu0 %v2130
        %2429 = vmatprep.subr.bf16.mxu0 0
        %2430 = vmatpush1.bf16.msra.mxu0 %v2129
        %2431 = vmatprep.subr.bf16.mxu0 0
        %2432 = vmatpush1.bf16.msra.mxu0 %v2128
        %2433 = vmatprep.subr.bf16.mxu0 0
        %2434 = vmatpush1.bf16.msra.mxu0 %v2127
        %2435 = vmatprep.subr.bf16.mxu0 0
        %2436 = vmatpush1.bf16.msra.mxu0 %v2126
        %2437 = vmatprep.subr.bf16.mxu0 0
        %2438 = vmatpush1.bf16.msra.mxu0 %v2125
        %2439 = vmatprep.subr.bf16.mxu0 0
        %2440 = vmatpush1.bf16.msra.mxu0 %v2124
        %2441 = vmatprep.subr.bf16.mxu0 0
        %2442 = vmatpush1.bf16.msra.mxu0 %v2123
        %2443 = vmatprep.subr.bf16.mxu0 0
        %2444 = vmatpush2.bf16.msra.mxu0 %v2138
        %2445 = vmatprep.subr.bf16.mxu0 0
        %2446 = vmatpush2.bf16.msra.mxu0 %v2137
        %2447 = vmatprep.subr.bf16.mxu0 0
        %2448 = vmatpush2.bf16.msra.mxu0 %v2136
        %2449 = vmatprep.subr.bf16.mxu0 0
        %2450 = vmatpush2.bf16.msra.mxu0 %v2135
        %2451 = vmatprep.subr.bf16.mxu0 0
        %2452 = vmatpush2.bf16.msra.mxu0 %v2134
        %2453 = vmatprep.subr.bf16.mxu0 0
        %2454 = vmatpush2.bf16.msra.mxu0 %v2133
        %2455 = vmatprep.subr.bf16.mxu0 0
        %2456 = vmatpush2.bf16.msra.mxu0 %v2132
        %2457 = vmatprep.subr.bf16.mxu0 0
        %2458 = vmatpush2.bf16.msra.mxu0 %v2131
        %2459 = vmatprep.mubr.bf16.mxu0 %v1510
        %2460 = vmatmul.mubr.bf16.gmra.mxu0 %v1485
        %v2461 = vpop.f32.mrf.mxu0
        %v2462 = vadd.f32 %v2414, %v2461
        %v2463 = vpop.f32.mrf.mxu0
        %v2464 = vpop.f32.mrf.mxu0
        %v2465 = vadd.f32 %v2417, %v2464
        %v2466 = vpop.f32.mrf.mxu0
        %2467 = vmatprep.mubr.bf16.mxu0 %v1513
        %2468 = vmatmul.mubr.bf16.gmra.mxu0 %v1486
        %v2469 = vpop.f32.mrf.mxu0
        %v2470 = vadd.f32 %v2422, %v2469
        %v2471 = vpop.f32.mrf.mxu0
        %v2472 = vpop.f32.mrf.mxu0
        %v2473 = vpop.f32.mrf.mxu0
        %2474 = vdwg.mxu0
        %2475 = vmatprep.subr.bf16.mxu0 0
        %2476 = vmatpush1.bf16.msra.mxu0 %v2146
        %2477 = vmatprep.subr.bf16.mxu0 0
        %2478 = vmatpush1.bf16.msra.mxu0 %v2145
        %2479 = vmatprep.subr.bf16.mxu0 0
        %2480 = vmatpush1.bf16.msra.mxu0 %v2144
        %2481 = vmatprep.subr.bf16.mxu0 0
        %2482 = vmatpush1.bf16.msra.mxu0 %v2143
        %2483 = vmatprep.subr.bf16.mxu0 0
        %2484 = vmatpush1.bf16.msra.mxu0 %v2142
        %2485 = vmatprep.subr.bf16.mxu0 0
        %2486 = vmatpush1.bf16.msra.mxu0 %v2141
        %2487 = vmatprep.subr.bf16.mxu0 0
        %2488 = vmatpush1.bf16.msra.mxu0 %v2140
        %2489 = vmatprep.subr.bf16.mxu0 0
        %2490 = vmatpush1.bf16.msra.mxu0 %v2139
        %2491 = vmatprep.subr.bf16.mxu0 0
        %2492 = vmatpush2.bf16.msra.mxu0 0
        %2493 = vmatprep.subr.bf16.mxu0 0
        %2494 = vmatpush2.bf16.msra.mxu0 0
        %2495 = vmatprep.subr.bf16.mxu0 0
        %2496 = vmatpush2.bf16.msra.mxu0 0
        %2497 = vmatprep.subr.bf16.mxu0 0
        %2498 = vmatpush2.bf16.msra.mxu0 0
        %2499 = vmatprep.subr.bf16.mxu0 0
        %2500 = vmatpush2.bf16.msra.mxu0 0
        %2501 = vmatprep.subr.bf16.mxu0 0
        %2502 = vmatpush2.bf16.msra.mxu0 0
        %2503 = vmatprep.subr.bf16.mxu0 0
        %2504 = vmatpush2.bf16.msra.mxu0 0
        %2505 = vmatprep.subr.bf16.mxu0 0
        %2506 = vmatpush2.bf16.msra.mxu0 0
        %2507 = vmatprep.mubr.bf16.mxu0 0
        %2508 = vmatmul.mubr.bf16.gmra.mxu0 %v1521
        %v2509 = vpop.f32.mrf.mxu0
        %v2510 = vadd.f32 %v2462, %v2509
        %v2511 = vpop.f32.mrf.mxu0
        %v2512 = vpop.f32.mrf.mxu0
        %v2513 = vadd.f32 %v2465, %v2512
        %v2514 = vpop.f32.mrf.mxu0
        %2515 = vmatprep.mubr.bf16.mxu0 0
        %2516 = vmatmul.mubr.bf16.gmra.mxu0 %v1520
        %v2517 = vpop.f32.mrf.mxu0
        %v2518 = vadd.f32 %v2470, %v2517
        %v2519 = vpop.f32.mrf.mxu0
        %v2520 = vpop.f32.mrf.mxu0
        %v2521 = vpop.f32.mrf.mxu0
        %2522 = vdwg.mxu0
        %v2523 = vmax.f32 %v2510, 0.0
        %v2524 = vmax.f32 %v2513, 0.0
        %v2525 = vmax.f32 %v2518, 0.0
        %s2526 = ssub.s32 %s429, 3
        %v2527 = vstv %s2526
        %v2528 = vadd.s32 %v1282, %v2527
        %v2529 = vadd.s32 %v1283, %v2527
        %v2530 = vadd.s32 %v1284, %v2527
        %vm2531 = vcmp.ge.s32.totalorder %v2528, 0
        %vm2532 = vcmp.ge.s32.totalorder %v2529, 0
        %vm2533 = vcmp.ge.s32.totalorder %v2530, 0
        %vm2534 = vcmp.lt.s32.totalorder %v2528, 16
        %vm2535 = vcmp.lt.s32.totalorder %v2529, 16
        %vm2536 = vcmp.lt.s32.totalorder %v2530, 16
        %vm2537 = vmand %vm2531, %vm2534
        %vm2538 = vmand %vm2532, %vm2535
        %vm2539 = vmand %vm2533, %vm2536
        %v2540 = vsel %vm2537, 1, 0
        %v2541 = vsel %vm2538, 1, 0
        %v2542 = vsel %vm2539, 1, 0
        %vm2543 = vcmp.eq.s32.totalorder %v2540, 1
        %vm2544 = vcmp.eq.s32.totalorder %v2541, 1
        %vm2545 = vcmp.eq.s32.totalorder %v2542, 1
        %v2546 = vsel %vm2543, %v2523, 0.0
        %v2547 = vsel %vm2544, %v2524, 0.0
        %v2548 = vsel %vm2545, %v2525, 0.0
        %v2549 = vpack.c.bf16 %v2547, %v2546
        %v2550 = vpack.c.bf16 %v2548, %v2548
        %v2553 = vunpack.c.l.b16 %v2549
        %v2554 = vunpack.c.h.b16 %v2549
        %v2555 = vunpack.c.l.b16 %v2550
        %v2556 = vpack.c.b16 %v2553, %v2553
        %v2557 = vpack.c.b16 %v2554, %v2554
        %v2558 = vpack.c.b16 %v2555, %v2555
        %2562 = vst [vmem:[#allocation3] sm:$0xf] %v2556
        %2563 = vst [vmem:[#allocation3 + $0x4] sm:$0xf] %v2557
        %2564 = vst [vmem:[#allocation3 + $0x8] sm:$0xf] %v2558
        %v2565 = vld [vmem:[#allocation3] sm:$0xf]
        %v2566 = vld [vmem:[#allocation3 + $0x4] sm:$0xf]
        %v2567 = vld [vmem:[#allocation3] sm:$0xf]
        %v2568 = vld [vmem:[#allocation3 + $0x4] sm:$0xf]
        %v2569 = vld [vmem:[#allocation3 + $0x8] sm:$0x1]
        %v2570 = vld [vmem:[#allocation3] sm:$0xe]
        %v2571 = vld [vmem:[#allocation3 + $0x8] sm:$0x3]
        %v2572 = vld [vmem:[#allocation3] sm:$0xc]
        %v2573 = vld [vmem:[#allocation3 + $0x8] sm:$0x7]
        %v2574 = vld [vmem:[#allocation3] sm:$0x8]
        %v2577 = vunpack.c.l.b16 %v2565
        %v2578 = vunpack.c.l.b16 %v2566
        %v2579 = vpack.c.b16 %v2578, %v2577
        %v2584 = vunpack.c.l.b16 %v2567
        %v2585 = vunpack.c.l.b16 %v2568
        %v2586 = vunpack.c.l.b16 %v2569
        %v2587 = vpack.c.b16 %v2585, %v2584
        %v2588 = vpack.c.b16 %v2586, %v2586
        %v2590 = vshrl.u32 %v2587, 16
        %v2592 = vshll.u32 %v2587, 16
        %v2594 = vrot.slane %v2592, 1
        %v2595 = vor.u32 %v2590, %v2594
        %v2597 = vshll.u32 %v2588, 16
        %v2599 = vrot.slane %v2597, 1
        %v2600 = vsel %vm477, %v2595, %v2599
        %v2603 = vunpack.c.l.b16 %v2570
        %v2604 = vpack.c.b16 %v2585, %v2603
        %v2605 = vrot.slane %v2604, 1
        %v2606 = vrot.slane %v2588, 1
        %v2607 = vsel %vm507, %v2605, %v2606
        %v2610 = vunpack.c.l.b16 %v2571
        %v2611 = vpack.c.b16 %v2610, %v2610
        %v2613 = vshrl.u32 %v2604, 16
        %v2615 = vrot.slane %v2613, 1
        %v2616 = vshll.u32 %v2604, 16
        %v2618 = vrot.slane %v2616, 2
        %v2619 = vor.u32 %v2615, %v2618
        %v2621 = vshrl.u32 %v2611, 16
        %v2623 = vrot.slane %v2621, 1
        %v2624 = vshll.u32 %v2611, 16
        %v2626 = vrot.slane %v2624, 2
        %v2627 = vor.u32 %v2623, %v2626
        %v2628 = vsel %vm519, %v2619, %v2627
        %v2631 = vunpack.c.l.b16 %v2572
        %v2632 = vpack.c.b16 %v2585, %v2631
        %v2633 = vrot.slane %v2632, 2
        %v2634 = vrot.slane %v2611, 2
        %v2635 = vsel %vm547, %v2633, %v2634
        %v2638 = vunpack.c.l.b16 %v2573
        %v2639 = vpack.c.b16 %v2638, %v2638
        %v2641 = vshrl.u32 %v2632, 16
        %v2643 = vrot.slane %v2641, 2
        %v2644 = vshll.u32 %v2632, 16
        %v2646 = vrot.slane %v2644, 3
        %v2647 = vor.u32 %v2643, %v2646
        %v2649 = vshrl.u32 %v2639, 16
        %v2651 = vrot.slane %v2649, 2
        %v2652 = vshll.u32 %v2639, 16
        %v2654 = vrot.slane %v2652, 3
        %v2655 = vor.u32 %v2651, %v2654
        %v2656 = vsel %vm559, %v2647, %v2655
        %v2659 = vunpack.c.l.b16 %v2574
        %v2660 = vpack.c.b16 %v2585, %v2659
        %v2661 = vrot.slane %v2660, 3
        %v2662 = vrot.slane %v2639, 3
        %v2663 = vsel %vm587, %v2661, %v2662
        %v2665 = vld [vmem:[#allocation10] sm:$0xf]
        %v2666 = vld [vmem:[#allocation10 + $0x4] sm:$0xf]
        %v2667 = vld [vmem:[#allocation10 + $0x8] sm:$0xf]
        %v2668 = vld [vmem:[#allocation10 + $0xc] sm:$0xf]
        %v2669 = vld [vmem:[#allocation10 + $0x10] sm:$0xf]
        %v2670 = vld [vmem:[#allocation10 + $0x14] sm:$0xf]
        %v2671 = vld [vmem:[#allocation10 + $0x18] sm:$0xf]
        %v2672 = vld [vmem:[#allocation10 + $0x1c] sm:$0xf]
        %v2673 = vld [vmem:[#allocation10 + $0x20] sm:$0xf]
        %v2674 = vld [vmem:[#allocation10 + $0x24] sm:$0xf]
        %v2675 = vld [vmem:[#allocation10 + $0x28] sm:$0xf]
        %v2676 = vld [vmem:[#allocation10 + $0x2c] sm:$0xf]
        %v2677 = vld [vmem:[#allocation10 + $0x30] sm:$0xf]
        %v2678 = vld [vmem:[#allocation10 + $0x34] sm:$0xf]
        %v2679 = vld [vmem:[#allocation10 + $0x38] sm:$0xf]
        %v2680 = vld [vmem:[#allocation10 + $0x3c] sm:$0xf]
        %v2681 = vld [vmem:[#allocation10 + $0x40] sm:$0xf]
        %v2682 = vld [vmem:[#allocation10 + $0x44] sm:$0xf]
        %v2683 = vld [vmem:[#allocation10 + $0x48] sm:$0xf]
        %v2684 = vld [vmem:[#allocation10 + $0x4c] sm:$0xf]
        %v2685 = vld [vmem:[#allocation10 + $0x50] sm:$0xf]
        %v2686 = vld [vmem:[#allocation10 + $0x54] sm:$0xf]
        %v2687 = vld [vmem:[#allocation10 + $0x58] sm:$0xf]
        %v2688 = vld [vmem:[#allocation10 + $0x5c] sm:$0xf]
        %v2689 = vld [vmem:[#allocation10 + $0x60] sm:$0xf]
        %v2690 = vld [vmem:[#allocation10 + $0x64] sm:$0xf]
        %v2691 = vld [vmem:[#allocation10 + $0x68] sm:$0xf]
        %v2692 = vld [vmem:[#allocation10 + $0x6c] sm:$0xf]
        %v2693 = vld [vmem:[#allocation10 + $0x70] sm:$0xf]
        %v2694 = vld [vmem:[#allocation10 + $0x74] sm:$0xf]
        %v2695 = vld [vmem:[#allocation10 + $0x78] sm:$0xf]
        %v2696 = vld [vmem:[#allocation10 + $0x7c] sm:$0xf]
        %v2697 = vld [vmem:[#allocation10 + $0x80] sm:$0xf]
        %v2698 = vld [vmem:[#allocation10 + $0x84] sm:$0xf]
        %v2699 = vld [vmem:[#allocation10 + $0x88] sm:$0xf]
        %v2700 = vld [vmem:[#allocation10 + $0x8c] sm:$0xf]
        %v2701 = vld [vmem:[#allocation10 + $0x90] sm:$0xf]
        %v2702 = vld [vmem:[#allocation10 + $0x94] sm:$0xf]
        %v2703 = vld [vmem:[#allocation10 + $0x98] sm:$0xf]
        %v2704 = vld [vmem:[#allocation10 + $0x9c] sm:$0xf]
        %v2705 = vld [vmem:[#allocation10 + $0xa0] sm:$0xf]
        %v2706 = vld [vmem:[#allocation10 + $0xa4] sm:$0xf]
        %v2707 = vld [vmem:[#allocation10 + $0xa8] sm:$0xf]
        %v2708 = vld [vmem:[#allocation10 + $0xac] sm:$0xf]
        %v2709 = vld [vmem:[#allocation10 + $0xb0] sm:$0xf]
        %v2710 = vld [vmem:[#allocation10 + $0xb4] sm:$0xf]
        %v2711 = vld [vmem:[#allocation10 + $0xb8] sm:$0xf]
        %v2712 = vld [vmem:[#allocation10 + $0xbc] sm:$0xf]
        %v2713 = vld [vmem:[#allocation10 + $0xc0] sm:$0xf]
        %v2714 = vld [vmem:[#allocation10 + $0xc4] sm:$0xf]
        %v2715 = vld [vmem:[#allocation10 + $0xc8] sm:$0xf]
        %v2716 = vld [vmem:[#allocation10 + $0xcc] sm:$0xf]
        %v2717 = vld [vmem:[#allocation10 + $0xd0] sm:$0xf]
        %v2718 = vld [vmem:[#allocation10 + $0xd4] sm:$0xf]
        %v2719 = vld [vmem:[#allocation10 + $0xd8] sm:$0xf]
        %v2720 = vld [vmem:[#allocation10 + $0xdc] sm:$0xf]
        %v2721 = vld [vmem:[#allocation10 + $0xe0] sm:$0xf]
        %v2722 = vld [vmem:[#allocation10 + $0xe4] sm:$0xf]
        %v2723 = vld [vmem:[#allocation10 + $0xe8] sm:$0xf]
        %v2724 = vld [vmem:[#allocation10 + $0xec] sm:$0xf]
        %v2725 = vld [vmem:[#allocation10 + $0xf0] sm:$0xf]
        %v2726 = vld [vmem:[#allocation10 + $0xf4] sm:$0xf]
        %v2727 = vld [vmem:[#allocation10 + $0xf8] sm:$0xf]
        %v2728 = vld [vmem:[#allocation10 + $0xfc] sm:$0xf]
        %v2729 = vld [vmem:[#allocation10 + $0x100] sm:$0xf]
        %v2730 = vld [vmem:[#allocation10 + $0x104] sm:$0xf]
        %v2731 = vld [vmem:[#allocation10 + $0x108] sm:$0xf]
        %v2732 = vld [vmem:[#allocation10 + $0x10c] sm:$0xf]
        %v2733 = vld [vmem:[#allocation10 + $0x110] sm:$0xf]
        %v2734 = vld [vmem:[#allocation10 + $0x114] sm:$0xf]
        %v2735 = vld [vmem:[#allocation10 + $0x118] sm:$0xf]
        %v2736 = vld [vmem:[#allocation10 + $0x11c] sm:$0xf]
        %v2737 = vld [vmem:[#allocation10 + $0x120] sm:$0xf]
        %v2738 = vld [vmem:[#allocation10 + $0x124] sm:$0xf]
        %v2739 = vld [vmem:[#allocation10 + $0x128] sm:$0xf]
        %v2740 = vld [vmem:[#allocation10 + $0x12c] sm:$0xf]
        %v2741 = vld [vmem:[#allocation10 + $0x130] sm:$0xf]
        %v2742 = vld [vmem:[#allocation10 + $0x134] sm:$0xf]
        %v2743 = vld [vmem:[#allocation10 + $0x138] sm:$0xf]
        %v2744 = vld [vmem:[#allocation10 + $0x13c] sm:$0xf]
        %v2745 = vld [vmem:[#allocation10 + $0x140] sm:$0xf]
        %v2746 = vld [vmem:[#allocation10 + $0x144] sm:$0xf]
        %v2747 = vld [vmem:[#allocation10 + $0x148] sm:$0xf]
        %v2748 = vld [vmem:[#allocation10 + $0x14c] sm:$0xf]
        %v2749 = vld [vmem:[#allocation10 + $0x150] sm:$0xf]
        %v2750 = vld [vmem:[#allocation10 + $0x154] sm:$0xf]
        %v2751 = vld [vmem:[#allocation10 + $0x158] sm:$0xf]
        %v2752 = vld [vmem:[#allocation10 + $0x15c] sm:$0xf]
        %v2753 = vld [vmem:[#allocation10 + $0x160] sm:$0xf]
        %v2754 = vld [vmem:[#allocation10 + $0x164] sm:$0xf]
        %v2755 = vld [vmem:[#allocation10 + $0x168] sm:$0xf]
        %v2756 = vld [vmem:[#allocation10 + $0x16c] sm:$0xf]
        %v2757 = vld [vmem:[#allocation10 + $0x170] sm:$0xf]
        %v2758 = vld [vmem:[#allocation10 + $0x174] sm:$0xf]
        %v2759 = vld [vmem:[#allocation10 + $0x178] sm:$0xf]
        %v2760 = vld [vmem:[#allocation10 + $0x17c] sm:$0xf]
        %v2761 = vld [vmem:[#allocation10 + $0x180] sm:$0xf]
        %v2762 = vld [vmem:[#allocation10 + $0x184] sm:$0xf]
        %v2763 = vld [vmem:[#allocation10 + $0x188] sm:$0xf]
        %v2764 = vld [vmem:[#allocation10 + $0x18c] sm:$0xf]
        %v2765 = vld [vmem:[#allocation10 + $0x190] sm:$0xf]
        %v2766 = vld [vmem:[#allocation10 + $0x194] sm:$0xf]
        %v2767 = vld [vmem:[#allocation10 + $0x198] sm:$0xf]
        %v2768 = vld [vmem:[#allocation10 + $0x19c] sm:$0xf]
        %v2769 = vld [vmem:[#allocation10 + $0x1a0] sm:$0xf]
        %v2770 = vld [vmem:[#allocation10 + $0x1a4] sm:$0xf]
        %v2771 = vld [vmem:[#allocation10 + $0x1a8] sm:$0xf]
        %v2772 = vld [vmem:[#allocation10 + $0x1ac] sm:$0xf]
        %v2773 = vld [vmem:[#allocation10 + $0x1b0] sm:$0xf]
        %v2774 = vld [vmem:[#allocation10 + $0x1b4] sm:$0xf]
        %v2775 = vld [vmem:[#allocation10 + $0x1b8] sm:$0xf]
        %v2776 = vld [vmem:[#allocation10 + $0x1bc] sm:$0xf]
        %v2777 = vld [vmem:[%s6] sm:$0x1]
        %v2779 = vlaneseq
        %v2780 = vshrl.u32 %v2779, 7
        %v2781 = vsub.s32 0, %v2780
        %v2782 = vrot.slane %v2777, %v2781
        %v2896 = vunpack.c.l.b16 %v2665
        %v2897 = vunpack.c.l.b16 %v2666
        %v2898 = vunpack.c.l.b16 %v2667
        %v2899 = vunpack.c.l.b16 %v2668
        %v2900 = vunpack.c.l.b16 %v2669
        %v2901 = vunpack.c.l.b16 %v2670
        %v2902 = vunpack.c.l.b16 %v2671
        %v2903 = vunpack.c.l.b16 %v2672
        %v2904 = vunpack.c.l.b16 %v2673
        %v2905 = vunpack.c.l.b16 %v2674
        %v2906 = vunpack.c.l.b16 %v2675
        %v2907 = vunpack.c.l.b16 %v2676
        %v2908 = vunpack.c.l.b16 %v2677
        %v2909 = vunpack.c.l.b16 %v2678
        %v2910 = vunpack.c.l.b16 %v2679
        %v2911 = vunpack.c.l.b16 %v2680
        %v2912 = vunpack.c.l.b16 %v2681
        %v2913 = vunpack.c.l.b16 %v2682
        %v2914 = vunpack.c.l.b16 %v2683
        %v2915 = vunpack.c.l.b16 %v2684
        %v2916 = vunpack.c.l.b16 %v2685
        %v2917 = vunpack.c.l.b16 %v2686
        %v2918 = vunpack.c.l.b16 %v2687
        %v2919 = vunpack.c.l.b16 %v2688
        %v2920 = vunpack.c.l.b16 %v2689
        %v2921 = vunpack.c.l.b16 %v2690
        %v2922 = vunpack.c.l.b16 %v2691
        %v2923 = vunpack.c.l.b16 %v2692
        %v2924 = vunpack.c.l.b16 %v2693
        %v2925 = vunpack.c.l.b16 %v2694
        %v2926 = vunpack.c.l.b16 %v2695
        %v2927 = vunpack.c.l.b16 %v2696
        %v2928 = vunpack.c.l.b16 %v2697
        %v2929 = vunpack.c.l.b16 %v2698
        %v2930 = vunpack.c.l.b16 %v2699
        %v2931 = vunpack.c.l.b16 %v2700
        %v2932 = vunpack.c.l.b16 %v2701
        %v2933 = vunpack.c.l.b16 %v2702
        %v2934 = vunpack.c.l.b16 %v2703
        %v2935 = vunpack.c.l.b16 %v2704
        %v2936 = vunpack.c.l.b16 %v2705
        %v2937 = vunpack.c.l.b16 %v2706
        %v2938 = vunpack.c.l.b16 %v2707
        %v2939 = vunpack.c.l.b16 %v2708
        %v2940 = vunpack.c.l.b16 %v2709
        %v2941 = vunpack.c.l.b16 %v2710
        %v2942 = vunpack.c.l.b16 %v2711
        %v2943 = vunpack.c.l.b16 %v2712
        %v2944 = vunpack.c.l.b16 %v2713
        %v2945 = vunpack.c.l.b16 %v2714
        %v2946 = vunpack.c.l.b16 %v2715
        %v2947 = vunpack.c.l.b16 %v2716
        %v2948 = vunpack.c.l.b16 %v2717
        %v2949 = vunpack.c.l.b16 %v2718
        %v2950 = vunpack.c.l.b16 %v2719
        %v2951 = vunpack.c.l.b16 %v2720
        %v2952 = vunpack.c.l.b16 %v2721
        %v2953 = vunpack.c.l.b16 %v2722
        %v2954 = vunpack.c.l.b16 %v2723
        %v2955 = vunpack.c.l.b16 %v2724
        %v2956 = vunpack.c.l.b16 %v2725
        %v2957 = vunpack.c.l.b16 %v2726
        %v2958 = vunpack.c.l.b16 %v2727
        %v2959 = vunpack.c.l.b16 %v2728
        %v2960 = vunpack.c.l.b16 %v2729
        %v2961 = vunpack.c.l.b16 %v2730
        %v2962 = vunpack.c.l.b16 %v2731
        %v2963 = vunpack.c.l.b16 %v2732
        %v2964 = vunpack.c.l.b16 %v2733
        %v2965 = vunpack.c.l.b16 %v2734
        %v2966 = vunpack.c.l.b16 %v2735
        %v2967 = vunpack.c.l.b16 %v2736
        %v2968 = vunpack.c.l.b16 %v2737
        %v2969 = vunpack.c.l.b16 %v2738
        %v2970 = vunpack.c.l.b16 %v2739
        %v2971 = vunpack.c.l.b16 %v2740
        %v2972 = vunpack.c.l.b16 %v2741
        %v2973 = vunpack.c.l.b16 %v2742
        %v2974 = vunpack.c.l.b16 %v2743
        %v2975 = vunpack.c.l.b16 %v2744
        %v2976 = vunpack.c.l.b16 %v2745
        %v2977 = vunpack.c.l.b16 %v2746
        %v2978 = vunpack.c.l.b16 %v2747
        %v2979 = vunpack.c.l.b16 %v2748
        %v2980 = vunpack.c.l.b16 %v2749
        %v2981 = vunpack.c.l.b16 %v2750
        %v2982 = vunpack.c.l.b16 %v2751
        %v2983 = vunpack.c.l.b16 %v2752
        %v2984 = vunpack.c.l.b16 %v2753
        %v2985 = vunpack.c.l.b16 %v2754
        %v2986 = vunpack.c.l.b16 %v2755
        %v2987 = vunpack.c.l.b16 %v2756
        %v2988 = vunpack.c.l.b16 %v2757
        %v2989 = vunpack.c.l.b16 %v2758
        %v2990 = vunpack.c.l.b16 %v2759
        %v2991 = vunpack.c.l.b16 %v2760
        %v2992 = vunpack.c.l.b16 %v2761
        %v2993 = vunpack.c.l.b16 %v2762
        %v2994 = vunpack.c.l.b16 %v2763
        %v2995 = vunpack.c.l.b16 %v2764
        %v2996 = vunpack.c.l.b16 %v2765
        %v2997 = vunpack.c.l.b16 %v2766
        %v2998 = vunpack.c.l.b16 %v2767
        %v2999 = vunpack.c.l.b16 %v2768
        %v3000 = vunpack.c.l.b16 %v2769
        %v3001 = vunpack.c.l.b16 %v2770
        %v3002 = vunpack.c.l.b16 %v2771
        %v3003 = vunpack.c.l.b16 %v2772
        %v3004 = vunpack.c.l.b16 %v2773
        %v3005 = vunpack.c.l.b16 %v2774
        %v3006 = vunpack.c.l.b16 %v2775
        %v3007 = vunpack.c.l.b16 %v2776
        %v3008 = vpack.c.b16 %v2897, %v2896
        %v3009 = vpack.c.b16 %v2899, %v2898
        %v3010 = vpack.c.b16 %v2901, %v2900
        %v3011 = vpack.c.b16 %v2903, %v2902
        %v3012 = vpack.c.b16 %v2905, %v2904
        %v3013 = vpack.c.b16 %v2907, %v2906
        %v3014 = vpack.c.b16 %v2909, %v2908
        %v3015 = vpack.c.b16 %v2911, %v2910
        %v3016 = vpack.c.b16 %v2913, %v2912
        %v3017 = vpack.c.b16 %v2915, %v2914
        %v3018 = vpack.c.b16 %v2917, %v2916
        %v3019 = vpack.c.b16 %v2919, %v2918
        %v3020 = vpack.c.b16 %v2921, %v2920
        %v3021 = vpack.c.b16 %v2923, %v2922
        %v3022 = vpack.c.b16 %v2925, %v2924
        %v3023 = vpack.c.b16 %v2927, %v2926
        %v3024 = vpack.c.b16 %v2929, %v2928
        %v3025 = vpack.c.b16 %v2931, %v2930
        %v3026 = vpack.c.b16 %v2933, %v2932
        %v3027 = vpack.c.b16 %v2935, %v2934
        %v3028 = vpack.c.b16 %v2937, %v2936
        %v3029 = vpack.c.b16 %v2939, %v2938
        %v3030 = vpack.c.b16 %v2941, %v2940
        %v3031 = vpack.c.b16 %v2943, %v2942
        %v3032 = vpack.c.b16 %v2945, %v2944
        %v3033 = vpack.c.b16 %v2947, %v2946
        %v3034 = vpack.c.b16 %v2949, %v2948
        %v3035 = vpack.c.b16 %v2951, %v2950
        %v3036 = vpack.c.b16 %v2953, %v2952
        %v3037 = vpack.c.b16 %v2955, %v2954
        %v3038 = vpack.c.b16 %v2957, %v2956
        %v3039 = vpack.c.b16 %v2959, %v2958
        %v3040 = vpack.c.b16 %v2961, %v2960
        %v3041 = vpack.c.b16 %v2963, %v2962
        %v3042 = vpack.c.b16 %v2965, %v2964
        %v3043 = vpack.c.b16 %v2967, %v2966
        %v3044 = vpack.c.b16 %v2969, %v2968
        %v3045 = vpack.c.b16 %v2971, %v2970
        %v3046 = vpack.c.b16 %v2973, %v2972
        %v3047 = vpack.c.b16 %v2975, %v2974
        %v3048 = vpack.c.b16 %v2977, %v2976
        %v3049 = vpack.c.b16 %v2979, %v2978
        %v3050 = vpack.c.b16 %v2981, %v2980
        %v3051 = vpack.c.b16 %v2983, %v2982
        %v3052 = vpack.c.b16 %v2985, %v2984
        %v3053 = vpack.c.b16 %v2987, %v2986
        %v3054 = vpack.c.b16 %v2989, %v2988
        %v3055 = vpack.c.b16 %v2991, %v2990
        %v3056 = vpack.c.b16 %v2993, %v2992
        %v3057 = vpack.c.b16 %v2995, %v2994
        %v3058 = vpack.c.b16 %v2997, %v2996
        %v3059 = vpack.c.b16 %v2999, %v2998
        %v3060 = vpack.c.b16 %v3001, %v3000
        %v3061 = vpack.c.b16 %v3003, %v3002
        %v3062 = vpack.c.b16 %v3005, %v3004
        %v3063 = vpack.c.b16 %v3007, %v3006
        %3120 = vmatprep.subr.bf16.mxu0 0
        %3121 = vmatpush1.bf16.msra.mxu0 %v3015
        %3122 = vmatprep.subr.bf16.mxu0 0
        %3123 = vmatpush1.bf16.msra.mxu0 %v3014
        %3124 = vmatprep.subr.bf16.mxu0 0
        %3125 = vmatpush1.bf16.msra.mxu0 %v3013
        %3126 = vmatprep.subr.bf16.mxu0 0
        %3127 = vmatpush1.bf16.msra.mxu0 %v3012
        %3128 = vmatprep.subr.bf16.mxu0 0
        %3129 = vmatpush1.bf16.msra.mxu0 %v3011
        %3130 = vmatprep.subr.bf16.mxu0 0
        %3131 = vmatpush1.bf16.msra.mxu0 %v3010
        %3132 = vmatprep.subr.bf16.mxu0 0
        %3133 = vmatpush1.bf16.msra.mxu0 %v3009
        %3134 = vmatprep.subr.bf16.mxu0 0
        %3135 = vmatpush1.bf16.msra.mxu0 %v3008
        %3136 = vmatprep.subr.bf16.mxu0 0
        %3137 = vmatpush2.bf16.msra.mxu0 %v3023
        %3138 = vmatprep.subr.bf16.mxu0 0
        %3139 = vmatpush2.bf16.msra.mxu0 %v3022
        %3140 = vmatprep.subr.bf16.mxu0 0
        %3141 = vmatpush2.bf16.msra.mxu0 %v3021
        %3142 = vmatprep.subr.bf16.mxu0 0
        %3143 = vmatpush2.bf16.msra.mxu0 %v3020
        %3144 = vmatprep.subr.bf16.mxu0 0
        %3145 = vmatpush2.bf16.msra.mxu0 %v3019
        %3146 = vmatprep.subr.bf16.mxu0 0
        %3147 = vmatpush2.bf16.msra.mxu0 %v3018
        %3148 = vmatprep.subr.bf16.mxu0 0
        %3149 = vmatpush2.bf16.msra.mxu0 %v3017
        %3150 = vmatprep.subr.bf16.mxu0 0
        %3151 = vmatpush2.bf16.msra.mxu0 %v3016
        %3152 = vmatprep.mubr.bf16.mxu0 %v2600
        %3153 = vmatmul.mubr.bf16.gmra.mxu0 %v2579
        %v3154 = vpop.f32.mrf.mxu0
        %v3155 = vadd.f32 %v2782, %v3154
        %v3156 = vpop.f32.mrf.mxu0
        %v3157 = vpop.f32.mrf.mxu0
        %v3158 = vadd.f32 %v2782, %v3157
        %v3159 = vpop.f32.mrf.mxu0
        %3160 = vdwg.mxu0
        %3161 = vmatprep.subr.bf16.mxu0 0
        %3162 = vmatpush1.bf16.msra.mxu0 %v3031
        %3163 = vmatprep.subr.bf16.mxu0 0
        %3164 = vmatpush1.bf16.msra.mxu0 %v3030
        %3165 = vmatprep.subr.bf16.mxu0 0
        %3166 = vmatpush1.bf16.msra.mxu0 %v3029
        %3167 = vmatprep.subr.bf16.mxu0 0
        %3168 = vmatpush1.bf16.msra.mxu0 %v3028
        %3169 = vmatprep.subr.bf16.mxu0 0
        %3170 = vmatpush1.bf16.msra.mxu0 %v3027
        %3171 = vmatprep.subr.bf16.mxu0 0
        %3172 = vmatpush1.bf16.msra.mxu0 %v3026
        %3173 = vmatprep.subr.bf16.mxu0 0
        %3174 = vmatpush1.bf16.msra.mxu0 %v3025
        %3175 = vmatprep.subr.bf16.mxu0 0
        %3176 = vmatpush1.bf16.msra.mxu0 %v3024
        %3177 = vmatprep.subr.bf16.mxu0 0
        %3178 = vmatpush2.bf16.msra.mxu0 %v3039
        %3179 = vmatprep.subr.bf16.mxu0 0
        %3180 = vmatpush2.bf16.msra.mxu0 %v3038
        %3181 = vmatprep.subr.bf16.mxu0 0
        %3182 = vmatpush2.bf16.msra.mxu0 %v3037
        %3183 = vmatprep.subr.bf16.mxu0 0
        %3184 = vmatpush2.bf16.msra.mxu0 %v3036
        %3185 = vmatprep.subr.bf16.mxu0 0
        %3186 = vmatpush2.bf16.msra.mxu0 %v3035
        %3187 = vmatprep.subr.bf16.mxu0 0
        %3188 = vmatpush2.bf16.msra.mxu0 %v3034
        %3189 = vmatprep.subr.bf16.mxu0 0
        %3190 = vmatpush2.bf16.msra.mxu0 %v3033
        %3191 = vmatprep.subr.bf16.mxu0 0
        %3192 = vmatpush2.bf16.msra.mxu0 %v3032
        %3193 = vmatprep.mubr.bf16.mxu0 %v2628
        %3194 = vmatmul.mubr.bf16.gmra.mxu0 %v2607
        %v3195 = vpop.f32.mrf.mxu0
        %v3196 = vadd.f32 %v3155, %v3195
        %v3197 = vpop.f32.mrf.mxu0
        %v3198 = vpop.f32.mrf.mxu0
        %v3199 = vadd.f32 %v3158, %v3198
        %v3200 = vpop.f32.mrf.mxu0
        %3201 = vdwg.mxu0
        %3202 = vmatprep.subr.bf16.mxu0 0
        %3203 = vmatpush1.bf16.msra.mxu0 %v3047
        %3204 = vmatprep.subr.bf16.mxu0 0
        %3205 = vmatpush1.bf16.msra.mxu0 %v3046
        %3206 = vmatprep.subr.bf16.mxu0 0
        %3207 = vmatpush1.bf16.msra.mxu0 %v3045
        %3208 = vmatprep.subr.bf16.mxu0 0
        %3209 = vmatpush1.bf16.msra.mxu0 %v3044
        %3210 = vmatprep.subr.bf16.mxu0 0
        %3211 = vmatpush1.bf16.msra.mxu0 %v3043
        %3212 = vmatprep.subr.bf16.mxu0 0
        %3213 = vmatpush1.bf16.msra.mxu0 %v3042
        %3214 = vmatprep.subr.bf16.mxu0 0
        %3215 = vmatpush1.bf16.msra.mxu0 %v3041
        %3216 = vmatprep.subr.bf16.mxu0 0
        %3217 = vmatpush1.bf16.msra.mxu0 %v3040
        %3218 = vmatprep.subr.bf16.mxu0 0
        %3219 = vmatpush2.bf16.msra.mxu0 %v3055
        %3220 = vmatprep.subr.bf16.mxu0 0
        %3221 = vmatpush2.bf16.msra.mxu0 %v3054
        %3222 = vmatprep.subr.bf16.mxu0 0
        %3223 = vmatpush2.bf16.msra.mxu0 %v3053
        %3224 = vmatprep.subr.bf16.mxu0 0
        %3225 = vmatpush2.bf16.msra.mxu0 %v3052
        %3226 = vmatprep.subr.bf16.mxu0 0
        %3227 = vmatpush2.bf16.msra.mxu0 %v3051
        %3228 = vmatprep.subr.bf16.mxu0 0
        %3229 = vmatpush2.bf16.msra.mxu0 %v3050
        %3230 = vmatprep.subr.bf16.mxu0 0
        %3231 = vmatpush2.bf16.msra.mxu0 %v3049
        %3232 = vmatprep.subr.bf16.mxu0 0
        %3233 = vmatpush2.bf16.msra.mxu0 %v3048
        %3234 = vmatprep.mubr.bf16.mxu0 %v2656
        %3235 = vmatmul.mubr.bf16.gmra.mxu0 %v2635
        %v3236 = vpop.f32.mrf.mxu0
        %v3237 = vadd.f32 %v3196, %v3236
        %v3238 = vpop.f32.mrf.mxu0
        %v3239 = vpop.f32.mrf.mxu0
        %v3240 = vadd.f32 %v3199, %v3239
        %v3241 = vpop.f32.mrf.mxu0
        %3242 = vdwg.mxu0
        %3243 = vmatprep.subr.bf16.mxu0 0
        %3244 = vmatpush1.bf16.msra.mxu0 %v3063
        %3245 = vmatprep.subr.bf16.mxu0 0
        %3246 = vmatpush1.bf16.msra.mxu0 %v3062
        %3247 = vmatprep.subr.bf16.mxu0 0
        %3248 = vmatpush1.bf16.msra.mxu0 %v3061
        %3249 = vmatprep.subr.bf16.mxu0 0
        %3250 = vmatpush1.bf16.msra.mxu0 %v3060
        %3251 = vmatprep.subr.bf16.mxu0 0
        %3252 = vmatpush1.bf16.msra.mxu0 %v3059
        %3253 = vmatprep.subr.bf16.mxu0 0
        %3254 = vmatpush1.bf16.msra.mxu0 %v3058
        %3255 = vmatprep.subr.bf16.mxu0 0
        %3256 = vmatpush1.bf16.msra.mxu0 %v3057
        %3257 = vmatprep.subr.bf16.mxu0 0
        %3258 = vmatpush1.bf16.msra.mxu0 %v3056
        %3259 = vmatprep.subr.bf16.mxu0 0
        %3260 = vmatpush2.bf16.msra.mxu0 0
        %3261 = vmatprep.subr.bf16.mxu0 0
        %3262 = vmatpush2.bf16.msra.mxu0 0
        %3263 = vmatprep.subr.bf16.mxu0 0
        %3264 = vmatpush2.bf16.msra.mxu0 0
        %3265 = vmatprep.subr.bf16.mxu0 0
        %3266 = vmatpush2.bf16.msra.mxu0 0
        %3267 = vmatprep.subr.bf16.mxu0 0
        %3268 = vmatpush2.bf16.msra.mxu0 0
        %3269 = vmatprep.subr.bf16.mxu0 0
        %3270 = vmatpush2.bf16.msra.mxu0 0
        %3271 = vmatprep.subr.bf16.mxu0 0
        %3272 = vmatpush2.bf16.msra.mxu0 0
        %3273 = vmatprep.subr.bf16.mxu0 0
        %3274 = vmatpush2.bf16.msra.mxu0 0
        %3275 = vmatprep.mubr.bf16.mxu0 0
        %3276 = vmatmul.mubr.bf16.gmra.mxu0 %v2663
        %v3277 = vpop.f32.mrf.mxu0
        %v3278 = vadd.f32 %v3237, %v3277
        %v3279 = vpop.f32.mrf.mxu0
        %v3280 = vpop.f32.mrf.mxu0
        %v3281 = vadd.f32 %v3240, %v3280
        %v3282 = vpop.f32.mrf.mxu0
        %3283 = vdwg.mxu0
        %v3284 = vld [vmem:[%s376 + $0x4] sm:$0xe]
        %v3285 = vld [vmem:[%s376 + $0x8] sm:$0xf]
        %v3286 = vld [vmem:[%s376 + $0xc] sm:$0x3]
        %v3287 = vld [vmem:[#allocation12] sm:$0xf]
        %v3288 = vld [vmem:[#allocation12 + $0x4] sm:$0xf]
        %v3289 = vld [vmem:[#allocation12 + $0x8] sm:$0xf]
        %v3290 = vld [vmem:[#allocation12 + $0xc] sm:$0xf]
        %v3291 = vld [vmem:[#allocation12 + $0x10] sm:$0xf]
        %v3292 = vld [vmem:[#allocation12 + $0x14] sm:$0xf]
        %v3293 = vld [vmem:[#allocation12 + $0x18] sm:$0xf]
        %v3294 = vld [vmem:[#allocation12 + $0x1c] sm:$0xf]
        %v3295 = vld [vmem:[#allocation12 + $0x20] sm:$0xf]
        %v3296 = vld [vmem:[#allocation12 + $0x24] sm:$0xf]
        %v3297 = vld [vmem:[#allocation12 + $0x28] sm:$0xf]
        %v3298 = vld [vmem:[#allocation12 + $0x2c] sm:$0xf]
        %v3299 = vld [vmem:[#allocation12 + $0x30] sm:$0xf]
        %v3300 = vld [vmem:[#allocation12 + $0x34] sm:$0xf]
        %v3301 = vld [vmem:[#allocation12 + $0x38] sm:$0xf]
        %v3302 = vld [vmem:[#allocation12 + $0x3c] sm:$0xf]
        %v3303 = vld [vmem:[%s8] sm:$0x1]
        %v3305 = vlaneseq
        %v3306 = vshrl.u32 %v3305, 7
        %v3307 = vsub.s32 0, %v3306
        %v3308 = vrot.slane %v3303, %v3307
        %v3313 = vunpack.c.l.b16 %v3284
        %v3314 = vunpack.c.l.b16 %v3285
        %v3315 = vunpack.c.l.b16 %v3286
        %v3316 = vpack.c.b16 %v3314, %v3313
        %v3317 = vpack.c.b16 %v3315, %v3315
        %v3319 = vshrl.u32 %v3316, 16
        %v3321 = vrot.slane %v3319, 1
        %v3322 = vshll.u32 %v3316, 16
        %v3324 = vrot.slane %v3322, 2
        %v3325 = vor.u32 %v3321, %v3324
        %v3327 = vshrl.u32 %v3317, 16
        %v3329 = vrot.slane %v3327, 1
        %v3330 = vshll.u32 %v3317, 16
        %v3332 = vrot.slane %v3330, 2
        %v3333 = vor.u32 %v3329, %v3332
        %v3334 = vsel %vm519, %v3325, %v3333
        %v3352 = vunpack.c.l.b16 %v3287
        %v3353 = vunpack.c.l.b16 %v3288
        %v3354 = vunpack.c.l.b16 %v3289
        %v3355 = vunpack.c.l.b16 %v3290
        %v3356 = vunpack.c.l.b16 %v3291
        %v3357 = vunpack.c.l.b16 %v3292
        %v3358 = vunpack.c.l.b16 %v3293
        %v3359 = vunpack.c.l.b16 %v3294
        %v3360 = vunpack.c.l.b16 %v3295
        %v3361 = vunpack.c.l.b16 %v3296
        %v3362 = vunpack.c.l.b16 %v3297
        %v3363 = vunpack.c.l.b16 %v3298
        %v3364 = vunpack.c.l.b16 %v3299
        %v3365 = vunpack.c.l.b16 %v3300
        %v3366 = vunpack.c.l.b16 %v3301
        %v3367 = vunpack.c.l.b16 %v3302
        %v3368 = vpack.c.b16 %v3353, %v3352
        %v3369 = vpack.c.b16 %v3355, %v3354
        %v3370 = vpack.c.b16 %v3357, %v3356
        %v3371 = vpack.c.b16 %v3359, %v3358
        %v3372 = vpack.c.b16 %v3361, %v3360
        %v3373 = vpack.c.b16 %v3363, %v3362
        %v3374 = vpack.c.b16 %v3365, %v3364
        %v3375 = vpack.c.b16 %v3367, %v3366
        %3384 = vmatprep.subr.bf16.mxu0 0
        %3385 = vmatpush1.bf16.msra.mxu0 %v3375
        %3386 = vmatprep.subr.bf16.mxu0 0
        %3387 = vmatpush1.bf16.msra.mxu0 %v3374
        %3388 = vmatprep.subr.bf16.mxu0 0
        %3389 = vmatpush1.bf16.msra.mxu0 %v3373
        %3390 = vmatprep.subr.bf16.mxu0 0
        %3391 = vmatpush1.bf16.msra.mxu0 %v3372
        %3392 = vmatprep.subr.bf16.mxu0 0
        %3393 = vmatpush1.bf16.msra.mxu0 %v3371
        %3394 = vmatprep.subr.bf16.mxu0 0
        %3395 = vmatpush1.bf16.msra.mxu0 %v3370
        %3396 = vmatprep.subr.bf16.mxu0 0
        %3397 = vmatpush1.bf16.msra.mxu0 %v3369
        %3398 = vmatprep.subr.bf16.mxu0 0
        %3399 = vmatpush1.bf16.msra.mxu0 %v3368
        %3400 = vmatprep.subr.bf16.mxu0 0
        %3401 = vmatpush2.bf16.msra.mxu0 0
        %3402 = vmatprep.subr.bf16.mxu0 0
        %3403 = vmatpush2.bf16.msra.mxu0 0
        %3404 = vmatprep.subr.bf16.mxu0 0
        %3405 = vmatpush2.bf16.msra.mxu0 0
        %3406 = vmatprep.subr.bf16.mxu0 0
        %3407 = vmatpush2.bf16.msra.mxu0 0
        %3408 = vmatprep.subr.bf16.mxu0 0
        %3409 = vmatpush2.bf16.msra.mxu0 0
        %3410 = vmatprep.subr.bf16.mxu0 0
        %3411 = vmatpush2.bf16.msra.mxu0 0
        %3412 = vmatprep.subr.bf16.mxu0 0
        %3413 = vmatpush2.bf16.msra.mxu0 0
        %3414 = vmatprep.subr.bf16.mxu0 0
        %3415 = vmatpush2.bf16.msra.mxu0 0
        %3416 = vmatprep.mubr.bf16.mxu0 0
        %3417 = vmatmul.mubr.bf16.gmra.mxu0 %v3334
        %v3418 = vpop.f32.mrf.mxu0
        %v3419 = vadd.f32 %v3308, %v3418
        %v3420 = vpop.f32.mrf.mxu0
        %v3421 = vpop.f32.mrf.mxu0
        %v3422 = vadd.f32 %v3308, %v3421
        %v3423 = vpop.f32.mrf.mxu0
        %3424 = vdwg.mxu0
        %v3425 = vadd.f32 %v3278, %v3419
        %v3426 = vadd.f32 %v3281, %v3422
        %v3427 = vmax.f32 %v3425, 0.0
        %v3428 = vmax.f32 %v3426, 0.0
        %3429 = vst [vmem:[%s426] sm:$0xff] %v3427
        %3430 = vst [vmem:[%s426 + $0x8] sm:$0xff] %v3428
        %s3431 = sand.u32 %s246, 1
        %s3432 = scalar_lea.sflag [#allocation6], %s3431
        %s3433 = sand.u32 %s246, 1
        %s3434 = smul.addr %s3433, 16
        %s3435 = scalar_lea.vmem [#allocation13], %s3434
        // Predicated region
        $region77: #{tpu_custom_call.1} parent=55 // pred_check
          %p3436 = pneg %p256
        $region78: #{tpu_custom_call.1} parent=55 // pred_check_branch
          %3438 = sbr.rel (%p3436) target = $region80
        $region79: #{tpu_custom_call.1} parent=55 // pred_region
          %s3439 = smul.u32 2, %s33
          %s3441 = ssub.s32 256, 256
          %3442 = vsyncadd %s3432, %s3441
          %s3443 = smul.addr %s32, 2
          %s3444 = sadd.s32 %s3439, %s3443
          %s3445 = smul.addr %s3444, 128
          %s3446 = scalar_lea.hbm %s9, %s3445
          %s3447 = sshll.u32 %s3435, 4
          %s3448 = int_to_ptr.vmem [resolvable:$true] %s3447
          %3453 = dma.vmem_to_hbm [thread:$0]  %s3448, 256, %s3446, %s3432, 128, 128, 8
        $region80: #{tpu_custom_call.1} parent=55 // pred_fallthru
          _
      $region56: #{tpu_custom_call.1} parent=5 // pred_fallthru
        _
      %p3454 = scmp.le.s32.totalorder 2, %s23
      // Predicated region
      $region81: #{tpu_custom_call.1} parent=5 // pred_check
        %p3455 = pneg %p3454
      $region82: #{tpu_custom_call.1} parent=5 // pred_check_branch
        %3457 = sbr.rel (%p3455) target = $region84
      $region83: #{tpu_custom_call.1} parent=5 // pred_region
        %s3458 = ssub.s32 %s23, 2
        // Predicated region
        $region85: #{tpu_custom_call.1} parent=83 // pred_check
          %p3459 = pneg %p262
        $region86: #{tpu_custom_call.1} parent=83 // pred_check_branch
          %3461 = sbr.rel (%p3459) target = $region88
        $region87: #{tpu_custom_call.1} parent=83 // pred_region
          %s3462 = sand.u32 %s247, 1
          %s3463 = scalar_lea.sflag [#allocation6], %s3462
          %s3464 = sand.u32 %s247, 1
          %s3465 = smul.addr %s3464, 16
          %s3466 = scalar_lea.vmem [#allocation13], %s3465
          %3467 = dma.done %s3463, 256
        $region88: #{tpu_custom_call.1} parent=83 // pred_fallthru
          _
      $region84: #{tpu_custom_call.1} parent=5 // pred_fallthru
        _
    $region6: #{tpu_custom_call.1} parent=1 // loop_footer
      %s27 = sadd.s32 1, %s23
    $region7: #{tpu_custom_call.1} parent=1 // loop_footer_branch
      %22 = sbr.rel target = $region3
    $region8: #{tpu_custom_call.1} parent=1 // loop_exit
      _
    %3468 = vsyncpa [#allocation5], 1
    %s3469 = scalar_lea.sflag [#allocation5], 1
    %3470 = vsyncpa %s3469, 1
    %3471 = vsyncpa [#allocation8], 1
    %3472 = vsyncpa [#allocation11], 1
    %3473 = vsyncpa [#allocation6], 1
    %s3474 = scalar_lea.sflag [#allocation6], 1
    %3475 = vsyncpa %s3474, 1

</llo_original>
